<compile_context>
chip_gen: v5e
topology: v5e:2x2
jax: 0.10.0
libtpu: 0.0.40
codegen_flags: <defaults>
</compile_context>

<pallas_src>
import jax
import jax.numpy as jnp
from jax import lax
from jax.experimental import pallas as pl
from jax.experimental.pallas import tpu as pltpu

D_EMB = 50       # input_size
H = 64           # hidden_size
T_HALF = 30      # each forward() runs the LSTM on x[:, :30] and x[:, 30:60]
T_TOTAL = 2 * T_HALF
PROJ_CHUNK = 6   # timesteps of input projection per chunked matmul
assert T_HALF % PROJ_CHUNK == 0


def _lstm_mlp_kernel(x_ref,       # (T_HALF*Bp, D_EMB) bf16, time-major, halves stacked on batch
                     wih_t_ref,   # (D_EMB, 4H) bf16   W_ih^T, gate order (i,f,o,g)
                     whh_t_ref,   # (H, 4H)     bf16   W_hh^T, gate order (i,f,o,g)
                     b_ref,       # (1, 4H)     f32    b_ih + b_hh, gate order (i,f,o,g)
                     w1_ref,      # (2H, 32)    f32    linear_hidden_sent W^T
                     b1_ref,      # (1, 32)
                     w2_ref,      # (32, 32)    f32    linear_hidden W^T
                     b2_ref,      # (1, 32)
                     w3_ref,      # (32, 1)     f32    output_layer W^T
                     b3_ref,      # (1, 1)
                     out_ref,     # (B, 1)      f32
                     proj_ref):   # VMEM scratch (T_HALF*Bp, 4H) f32
    Bp = x_ref.shape[0] // T_HALF          # padded stacked batch (multiple of 8)
    B = out_ref.shape[0]                   # real batch
    n_chunks = T_HALF // PROJ_CHUNK
    chunk_rows = PROJ_CHUNK * Bp

    wih_t = wih_t_ref[...]                 # (D_EMB, 4H) bf16
    whh_t = whh_t_ref[...]                 # (H, 4H) bf16 -- 8 vregs, resident across steps
    bias = b_ref[...]                      # (1, 4H) f32

    def project_chunk(c):
        r0 = c * chunk_rows                # static, 8-sublane aligned
        proj_ref[pl.ds(r0, chunk_rows), :] = (
            jnp.dot(x_ref[pl.ds(r0, chunk_rows), :], wih_t,
                    preferred_element_type=jnp.float32) + bias)

    # Only chunk 0 gates step 0; later chunks are issued from inside the
    # unrolled recurrence where the MXU has slack.
    project_chunk(0)

    # Hoisted lane constants (broadcast_in_dim is not CSE'd -- never in-loop).
    lane = lax.broadcasted_iota(jnp.int32, (Bp, 2 * H), 1)
    lane_lo = lane < H                                        # [True x64 | False x64]
    sc = jnp.where(lane_lo, 1.0, 2.0).astype(jnp.float32)     # [1 | 2]
    off = jnp.where(lane_lo, 0.0, 1.0).astype(jnp.float32)    # [0 | 1]

    # State: cc holds the cell state duplicated across both 64-lane halves
    # ([c | c]) so every per-step update is a full-vreg op.
    cc = jnp.zeros((Bp, 2 * H), jnp.float32)
    h = jnp.zeros((Bp, H), jnp.float32)

    # Fully unrolled recurrence: tiny per-step work, so loop/scalar overhead
    # and lack of scheduling visibility would otherwise dominate.
    for t in range(T_HALF):
        if t + 1 < n_chunks:
            project_chunk(t + 1)           # off the critical chain (indep. of h)

        p_t = proj_ref[pl.ds(t * Bp, Bp), :]                  # (Bp, 4H) f32
        if t == 0:
            gates = p_t                                       # h0 == 0: skip matmul
        else:
            gates = jnp.dot(h.astype(jnp.bfloat16), whh_t,
                            preferred_element_type=jnp.float32) + p_t

        g0 = gates[:, :2 * H]              # [i | f] pre-activations (1 vreg)
        g1 = gates[:, 2 * H:]              # [o | g] pre-activations (1 vreg)
        a0 = jax.nn.sigmoid(g0)                               # [sig i | sig f]
        # tanh(x) = 2*sigmoid(2x) - 1 -> one full-vreg sigmoid for [sig o | tanh g]
        a1 = jax.nn.sigmoid(g1 * sc) * sc - off               # [sig o | tanh g]

        ct = jnp.where(lane_lo, cc, a1)                       # [c | tanh g]
        a0r = pltpu.roll(a0, shift=H, axis=1)                 # [sig f | sig i]
        prod = a0r * ct                                       # [f*c | i*tanh g]
        cc = prod + pltpu.roll(prod, shift=H, axis=1)         # [c' | c']
        hfull = a1 * jnp.tanh(cc)                             # [h' | junk]
        h = hfull[:, :H]                                      # lane-0 narrowing, no rotate

    # Rows 0..B-1  -> final hidden of x[:, :30]   (== output_1[:, -1])
    # Rows B..2B-1 -> final hidden of x[:, 30:60] (== output_2[:, -1])
    h1 = h[:B]
    h2 = h[B:2 * B]
    combined = jnp.concatenate([h1, h2], axis=1)              # (B, 2H)

    # --- MLP head ---
    z1 = jnp.maximum(
        jnp.dot(combined, w1_ref[...], preferred_element_type=jnp.float32)
        + b1_ref[...], 0.0)
    z2 = jnp.maximum(
        jnp.dot(z1, w2_ref[...], preferred_element_type=jnp.float32)
        + b2_ref[...], 0.0)
    logits = (jnp.dot(z2, w3_ref[...], preferred_element_type=jnp.float32)
              + b3_ref[...])
    out_ref[...] = jax.nn.sigmoid(logits)


def _permute_gates_ifog(w):
    """Reorder the 4H axis (axis 0) from PyTorch (i,f,g,o) to (i,f,o,g)."""
    i, f, g, o = jnp.split(w, 4, axis=0)
    return jnp.concatenate([i, f, o, g], axis=0)


@jax.jit
def lstm_forward(x, wih, whh, b_ih, b_hh, w1, b1, w2, b2, w3, b3):
    """x: (B, 60, 50) float32, batch-first (PyTorch convention)."""
    B = x.shape[0]

    # Gate permutation so vreg0=[i|f], vreg1=[o|g] in-kernel.
    wih_p = _permute_gates_ifog(wih)                 # (4H, I)
    whh_p = _permute_gates_ifog(whh)                 # (4H, H)
    b_p = _permute_gates_ifog(b_ih + b_hh)           # (4H,)

    # Stack the two independent 30-step windows along batch, pad to a
    # multiple of 8 sublanes.
    xs = jnp.concatenate([x[:, :T_HALF, :], x[:, T_HALF:T_TOTAL, :]], axis=0)
    B2 = 2 * B
    Bp = max(8, ((B2 + 7) // 8) * 8)
    if Bp != B2:
        xs = jnp.pad(xs, ((0, Bp - B2), (0, 0), (0, 0)))
    # Time-major, batch fastest, flattened to 2D so every projection chunk and
    # per-step slice starts on an aligned sublane boundary.
    x_flat = (jnp.transpose(xs, (1, 0, 2))
              .reshape(T_HALF * Bp, D_EMB)
              .astype(jnp.bfloat16))

    operands = (
        x_flat,                                   # (T_HALF*Bp, I) bf16
        wih_p.T.astype(jnp.bfloat16),             # (I, 4H) bf16
        whh_p.T.astype(jnp.bfloat16),             # (H, 4H) bf16
        b_p[None, :].astype(jnp.float32),         # (1, 4H) f32
        w1.T.astype(jnp.float32), b1[None, :].astype(jnp.float32),
        w2.T.astype(jnp.float32), b2[None, :].astype(jnp.float32),
        w3.T.astype(jnp.float32), b3[None, :].astype(jnp.float32),
    )
    vmem = pl.BlockSpec(memory_space=pltpu.MemorySpace.VMEM)
    return pl.pallas_call(
        _lstm_mlp_kernel,
        out_shape=jax.ShapeDtypeStruct((B, 1), jnp.float32),
        in_specs=[vmem] * len(operands),
        out_specs=vmem,
        scratch_shapes=[pltpu.VMEM((T_HALF * Bp, 4 * H), jnp.float32)],
    )(*operands)


def _reference_forward(x, wih, whh, b_ih, b_hh, w1, b1, w2, b2, w3, b3):
    """Pure-JAX reference mirroring the PyTorch module (original gate order)."""
    def run(xh):  # xh: (B, 30, I)
        def step(carry, x_t):
            h, c = carry
            gates = x_t @ wih.T + h @ whh.T + b_ih + b_hh
            i, f, g, o = jnp.split(gates, 4, axis=1)
            c = jax.nn.sigmoid(f) * c + jax.nn.sigmoid(i) * jnp.tanh(g)
            h = jax.nn.sigmoid(o) * jnp.tanh(c)
            return (h, c), None
        B = xh.shape[0]
        init = (jnp.zeros((B, H)), jnp.zeros((B, H)))
        (h, _), _ = lax.scan(step, init, jnp.transpose(xh, (1, 0, 2)))
        return h

    h1 = run(x[:, :T_HALF, :])
    h2 = run(x[:, T_HALF:T_TOTAL, :])
    comb = jnp.concatenate([h1, h2], axis=1)
    z1 = jax.nn.relu(comb @ w1.T + b1)
    z2 = jax.nn.relu(z1 @ w2.T + b2)
    return jax.nn.sigmoid(z2 @ w3.T + b3)


def _init_params(key):
    ks = jax.random.split(key, 10)
    u = lambda k, shape, bound: jax.random.uniform(
        k, shape, jnp.float32, -bound, bound)
    s_lstm = 1.0 / jnp.sqrt(H)
    wih = u(ks[0], (4 * H, D_EMB), s_lstm)
    whh = u(ks[1], (4 * H, H), s_lstm)
    b_ih = u(ks[2], (4 * H,), s_lstm)
    b_hh = u(ks[3], (4 * H,), s_lstm)
    w1 = u(ks[4], (32, 2 * H), 1.0 / jnp.sqrt(2 * H))
    b1 = u(ks[5], (32,), 1.0 / jnp.sqrt(2 * H))
    w2 = u(ks[6], (32, 32), 1.0 / jnp.sqrt(32))
    b2 = u(ks[7], (32,), 1.0 / jnp.sqrt(32))
    w3 = u(ks[8], (1, 32), 1.0 / jnp.sqrt(32))
    b3 = u(ks[9], (1,), 1.0 / jnp.sqrt(32))
    return (wih, whh, b_ih, b_hh, w1, b1, w2, b2, w3, b3)


if __name__ == "__main__":
    key = jax.random.PRNGKey(0)
    k_x, k_p = jax.random.split(key)
    B = 2
    x = jax.random.normal(k_x, (B, T_TOTAL, D_EMB), jnp.float32)
    params = _init_params(k_p)

    out = lstm_forward(x, *params)
    out = jax.block_until_ready(out)
    assert out.shape == (B, 1)

    ref = _reference_forward(x, *params)
    # bf16 MXU operands over the 30-step recurrence: slightly wider bound
    # than the f32-operand version's 2e-3 (accumulation stays f32).
    assert jnp.allclose(out, ref, rtol=3e-3, atol=3e-3), (out, ref)

    print("KERNEL_OK")
</pallas_src>

<mosaic_0001>
module attributes {stable_mosaic.version = 11 : i64} {
  func.func @_lstm_mlp_kernel(%arg0: memref<240x50xbf16, #tpu.memory_space<vmem>>, %arg1: memref<50x256xbf16, #tpu.memory_space<vmem>>, %arg2: memref<64x256xbf16, #tpu.memory_space<vmem>>, %arg3: memref<1x256xf32, #tpu.memory_space<vmem>>, %arg4: memref<128x32xf32, #tpu.memory_space<vmem>>, %arg5: memref<1x32xf32, #tpu.memory_space<vmem>>, %arg6: memref<32x32xf32, #tpu.memory_space<vmem>>, %arg7: memref<1x32xf32, #tpu.memory_space<vmem>>, %arg8: memref<32x1xf32, #tpu.memory_space<vmem>>, %arg9: memref<1x1xf32, #tpu.memory_space<vmem>>, %arg10: memref<2x1xf32, #tpu.memory_space<vmem>>, %arg11: memref<240x256xf32, #tpu.memory_space<vmem>>) attributes {dimension_semantics = [], scalar_prefetch = 0 : i64, scratch_operands = 1 : i64, tpu.core_type = #tpu.core_type<tc>} {
    %c0 = arith.constant 0 : index
    %c0_0 = arith.constant 0 : index
    %0 = vector.load %arg1[%c0, %c0_0] : memref<50x256xbf16, #tpu.memory_space<vmem>>, vector<50x256xbf16>
    %c0_1 = arith.constant 0 : index
    %c0_2 = arith.constant 0 : index
    %1 = vector.load %arg2[%c0_1, %c0_2] : memref<64x256xbf16, #tpu.memory_space<vmem>>, vector<64x256xbf16>
    %c0_3 = arith.constant 0 : index
    %c0_4 = arith.constant 0 : index
    %2 = vector.load %arg3[%c0_3, %c0_4] : memref<1x256xf32, #tpu.memory_space<vmem>>, vector<1x256xf32>
    %c0_5 = arith.constant 0 : index
    %c0_6 = arith.constant 0 : index
    %3 = vector.load %arg0[%c0_5, %c0_6] : memref<240x50xbf16, #tpu.memory_space<vmem>>, vector<48x50xbf16>
    %cst = arith.constant dense<0.000000e+00> : vector<48x256xf32>
    %4 = tpu.matmul %3, %0, %cst {dimension_numbers = #tpu.dot_dimension_numbers<[1], [0], [0], [1], [0, 0, 1, 1], [], []>} : vector<48x50xbf16>, vector<50x256xbf16>, vector<48x256xf32> -> vector<48x256xf32>
    %5 = vector.broadcast %2 : vector<1x256xf32> to vector<48x256xf32>
    %6 = arith.addf %4, %5 : vector<48x256xf32>
    %c0_7 = arith.constant 0 : index
    %c0_8 = arith.constant 0 : index
    %7 = vector.load %arg11[%c0_7, %c0_8] : memref<240x256xf32, #tpu.memory_space<vmem>>, vector<48x256xf32>
    tpu.vector_store %arg11[%c0_7, %c0_8], %6 {strides = array<i32>} : memref<240x256xf32, #tpu.memory_space<vmem>>, vector<48x256xf32>,
    %8 = tpu.iota {dimensions = array<i32: 1>} : vector<8x128xi32>
    %c64_i32 = arith.constant 64 : i32
    %9 = vector.broadcast %c64_i32 : i32 to vector<8x128xi32>
    %10 = arith.cmpi slt, %8, %9 : vector<8x128xi32>
    %cst_9 = arith.constant 1.000000e+00 : f32
    %cst_10 = arith.constant 2.000000e+00 : f32
    %11 = vector.broadcast %cst_9 : f32 to vector<8x128xf32>
    %12 = vector.broadcast %cst_10 : f32 to vector<8x128xf32>
    %13 = arith.select %10, %11, %12 : vector<8x128xi1>, vector<8x128xf32>
    %cst_11 = arith.constant 0.000000e+00 : f32
    %cst_12 = arith.constant 1.000000e+00 : f32
    %14 = vector.broadcast %cst_11 : f32 to vector<8x128xf32>
    %15 = vector.broadcast %cst_12 : f32 to vector<8x128xf32>
    %16 = arith.select %10, %14, %15 : vector<8x128xi1>, vector<8x128xf32>
    %cst_13 = arith.constant 0.000000e+00 : f32
    %17 = vector.broadcast %cst_13 : f32 to vector<8x128xf32>
    %c48 = arith.constant 48 : index
    %c0_14 = arith.constant 0 : index
    %18 = vector.load %arg0[%c48, %c0_14] : memref<240x50xbf16, #tpu.memory_space<vmem>>, vector<48x50xbf16>
    %cst_15 = arith.constant dense<0.000000e+00> : vector<48x256xf32>
    %19 = tpu.matmul %18, %0, %cst_15 {dimension_numbers = #tpu.dot_dimension_numbers<[1], [0], [0], [1], [0, 0, 1, 1], [], []>} : vector<48x50xbf16>, vector<50x256xbf16>, vector<48x256xf32> -> vector<48x256xf32>
    %20 = vector.broadcast %2 : vector<1x256xf32> to vector<48x256xf32>
    %21 = arith.addf %19, %20 : vector<48x256xf32>
    %c48_16 = arith.constant 48 : index
    %c0_17 = arith.constant 0 : index
    %22 = vector.load %arg11[%c48_16, %c0_17] : memref<240x256xf32, #tpu.memory_space<vmem>>, vector<48x256xf32>
    tpu.vector_store %arg11[%c48_16, %c0_17], %21 {strides = array<i32>} : memref<240x256xf32, #tpu.memory_space<vmem>>, vector<48x256xf32>,
    %c0_18 = arith.constant 0 : index
    %c0_19 = arith.constant 0 : index
    %23 = vector.load %arg11[%c0_18, %c0_19] : memref<240x256xf32, #tpu.memory_space<vmem>>, vector<8x256xf32>
    %24 = vector.extract_strided_slice %23 {offsets = [0, 0], sizes = [8, 128], strides = [1, 1]} : vector<8x256xf32> to vector<8x128xf32>
    %25 = vector.extract_strided_slice %23 {offsets = [0, 128], sizes = [8, 128], strides = [1, 1]} : vector<8x256xf32> to vector<8x128xf32>
    %26 = arith.negf %24 : vector<8x128xf32>
    %27 = math.exp %26 : vector<8x128xf32>
    %cst_20 = arith.constant 1.000000e+00 : f32
    %28 = vector.broadcast %cst_20 : f32 to vector<8x128xf32>
    %29 = arith.addf %28, %27 : vector<8x128xf32>
    %30 = arith.divf %28, %29 : vector<8x128xf32>
    %31 = arith.mulf %25, %13 : vector<8x128xf32>
    %32 = arith.negf %31 : vector<8x128xf32>
    %33 = math.exp %32 : vector<8x128xf32>
    %cst_21 = arith.constant 1.000000e+00 : f32
    %34 = vector.broadcast %cst_21 : f32 to vector<8x128xf32>
    %35 = arith.addf %34, %33 : vector<8x128xf32>
    %36 = arith.divf %34, %35 : vector<8x128xf32>
    %37 = arith.mulf %36, %13 : vector<8x128xf32>
    %38 = arith.subf %37, %16 : vector<8x128xf32>
    %39 = arith.select %10, %17, %38 : vector<8x128xi1>, vector<8x128xf32>
    %c64_i32_22 = arith.constant 64 : i32
    %40 = tpu.dynamic_rotate %30 by %c64_i32_22 dim 1 : vector<8x128xf32>, i32 -> vector<8x128xf32>
    %41 = arith.mulf %40, %39 : vector<8x128xf32>
    %c64_i32_23 = arith.constant 64 : i32
    %42 = tpu.dynamic_rotate %41 by %c64_i32_23 dim 1 : vector<8x128xf32>, i32 -> vector<8x128xf32>
    %43 = arith.addf %41, %42 : vector<8x128xf32>
    %44 = math.tanh %43 : vector<8x128xf32>
    %45 = arith.mulf %38, %44 : vector<8x128xf32>
    %46 = vector.extract_strided_slice %45 {offsets = [0, 0], sizes = [8, 64], strides = [1, 1]} : vector<8x128xf32> to vector<8x64xf32>
    %c96 = arith.constant 96 : index
    %c0_24 = arith.constant 0 : index
    %47 = vector.load %arg0[%c96, %c0_24] : memref<240x50xbf16, #tpu.memory_space<vmem>>, vector<48x50xbf16>
    %cst_25 = arith.constant dense<0.000000e+00> : vector<48x256xf32>
    %48 = tpu.matmul %47, %0, %cst_25 {dimension_numbers = #tpu.dot_dimension_numbers<[1], [0], [0], [1], [0, 0, 1, 1], [], []>} : vector<48x50xbf16>, vector<50x256xbf16>, vector<48x256xf32> -> vector<48x256xf32>
    %49 = vector.broadcast %2 : vector<1x256xf32> to vector<48x256xf32>
    %50 = arith.addf %48, %49 : vector<48x256xf32>
    %c96_26 = arith.constant 96 : index
    %c0_27 = arith.constant 0 : index
    %51 = vector.load %arg11[%c96_26, %c0_27] : memref<240x256xf32, #tpu.memory_space<vmem>>, vector<48x256xf32>
    tpu.vector_store %arg11[%c96_26, %c0_27], %50 {strides = array<i32>} : memref<240x256xf32, #tpu.memory_space<vmem>>, vector<48x256xf32>,
    %c8 = arith.constant 8 : index
    %c0_28 = arith.constant 0 : index
    %52 = vector.load %arg11[%c8, %c0_28] : memref<240x256xf32, #tpu.memory_space<vmem>>, vector<8x256xf32>
    %53 = arith.truncf %46 : vector<8x64xf32> to vector<8x64xbf16>
    %cst_29 = arith.constant dense<0.000000e+00> : vector<8x256xf32>
    %54 = tpu.matmul %53, %1, %cst_29 {dimension_numbers = #tpu.dot_dimension_numbers<[1], [0], [0], [1], [0, 0, 1, 1], [], []>} : vector<8x64xbf16>, vector<64x256xbf16>, vector<8x256xf32> -> vector<8x256xf32>
    %55 = arith.addf %54, %52 : vector<8x256xf32>
    %56 = vector.extract_strided_slice %55 {offsets = [0, 0], sizes = [8, 128], strides = [1, 1]} : vector<8x256xf32> to vector<8x128xf32>
    %57 = vector.extract_strided_slice %55 {offsets = [0, 128], sizes = [8, 128], strides = [1, 1]} : vector<8x256xf32> to vector<8x128xf32>
    %58 = arith.negf %56 : vector<8x128xf32>
    %59 = math.exp %58 : vector<8x128xf32>
    %cst_30 = arith.constant 1.000000e+00 : f32
    %60 = vector.broadcast %cst_30 : f32 to vector<8x128xf32>
    %61 = arith.addf %60, %59 : vector<8x128xf32>
    %62 = arith.divf %60, %61 : vector<8x128xf32>
    %63 = arith.mulf %57, %13 : vector<8x128xf32>
    %64 = arith.negf %63 : vector<8x128xf32>
    %65 = math.exp %64 : vector<8x128xf32>
    %cst_31 = arith.constant 1.000000e+00 : f32
    %66 = vector.broadcast %cst_31 : f32 to vector<8x128xf32>
    %67 = arith.addf %66, %65 : vector<8x128xf32>
    %68 = arith.divf %66, %67 : vector<8x128xf32>
    %69 = arith.mulf %68, %13 : vector<8x128xf32>
    %70 = arith.subf %69, %16 : vector<8x128xf32>
    %71 = arith.select %10, %43, %70 : vector<8x128xi1>, vector<8x128xf32>
    %c64_i32_32 = arith.constant 64 : i32
    %72 = tpu.dynamic_rotate %62 by %c64_i32_32 dim 1 : vector<8x128xf32>, i32 -> vector<8x128xf32>
    %73 = arith.mulf %72, %71 : vector<8x128xf32>
    %c64_i32_33 = arith.constant 64 : i32
    %74 = tpu.dynamic_rotate %73 by %c64_i32_33 dim 1 : vector<8x128xf32>, i32 -> vector<8x128xf32>
    %75 = arith.addf %73, %74 : vector<8x128xf32>
    %76 = math.tanh %75 : vector<8x128xf32>
    %77 = arith.mulf %70, %76 : vector<8x128xf32>
    %78 = vector.extract_strided_slice %77 {offsets = [0, 0], sizes = [8, 64], strides = [1, 1]} : vector<8x128xf32> to vector<8x64xf32>
    %c144 = arith.constant 144 : index
    %c0_34 = arith.constant 0 : index
    %79 = vector.load %arg0[%c144, %c0_34] : memref<240x50xbf16, #tpu.memory_space<vmem>>, vector<48x50xbf16>
    %cst_35 = arith.constant dense<0.000000e+00> : vector<48x256xf32>
    %80 = tpu.matmul %79, %0, %cst_35 {dimension_numbers = #tpu.dot_dimension_numbers<[1], [0], [0], [1], [0, 0, 1, 1], [], []>} : vector<48x50xbf16>, vector<50x256xbf16>, vector<48x256xf32> -> vector<48x256xf32>
    %81 = vector.broadcast %2 : vector<1x256xf32> to vector<48x256xf32>
    %82 = arith.addf %80, %81 : vector<48x256xf32>
    %c144_36 = arith.constant 144 : index
    %c0_37 = arith.constant 0 : index
    %83 = vector.load %arg11[%c144_36, %c0_37] : memref<240x256xf32, #tpu.memory_space<vmem>>, vector<48x256xf32>
    tpu.vector_store %arg11[%c144_36, %c0_37], %82 {strides = array<i32>} : memref<240x256xf32, #tpu.memory_space<vmem>>, vector<48x256xf32>,
    %c16 = arith.constant 16 : index
    %c0_38 = arith.constant 0 : index
    %84 = vector.load %arg11[%c16, %c0_38] : memref<240x256xf32, #tpu.memory_space<vmem>>, vector<8x256xf32>
    %85 = arith.truncf %78 : vector<8x64xf32> to vector<8x64xbf16>
    %cst_39 = arith.constant dense<0.000000e+00> : vector<8x256xf32>
    %86 = tpu.matmul %85, %1, %cst_39 {dimension_numbers = #tpu.dot_dimension_numbers<[1], [0], [0], [1], [0, 0, 1, 1], [], []>} : vector<8x64xbf16>, vector<64x256xbf16>, vector<8x256xf32> -> vector<8x256xf32>
    %87 = arith.addf %86, %84 : vector<8x256xf32>
    %88 = vector.extract_strided_slice %87 {offsets = [0, 0], sizes = [8, 128], strides = [1, 1]} : vector<8x256xf32> to vector<8x128xf32>
    %89 = vector.extract_strided_slice %87 {offsets = [0, 128], sizes = [8, 128], strides = [1, 1]} : vector<8x256xf32> to vector<8x128xf32>
    %90 = arith.negf %88 : vector<8x128xf32>
    %91 = math.exp %90 : vector<8x128xf32>
    %cst_40 = arith.constant 1.000000e+00 : f32
    %92 = vector.broadcast %cst_40 : f32 to vector<8x128xf32>
    %93 = arith.addf %92, %91 : vector<8x128xf32>
    %94 = arith.divf %92, %93 : vector<8x128xf32>
    %95 = arith.mulf %89, %13 : vector<8x128xf32>
    %96 = arith.negf %95 : vector<8x128xf32>
    %97 = math.exp %96 : vector<8x128xf32>
    %cst_41 = arith.constant 1.000000e+00 : f32
    %98 = vector.broadcast %cst_41 : f32 to vector<8x128xf32>
    %99 = arith.addf %98, %97 : vector<8x128xf32>
    %100 = arith.divf %98, %99 : vector<8x128xf32>
    %101 = arith.mulf %100, %13 : vector<8x128xf32>
    %102 = arith.subf %101, %16 : vector<8x128xf32>
    %103 = arith.select %10, %75, %102 : vector<8x128xi1>, vector<8x128xf32>
    %c64_i32_42 = arith.constant 64 : i32
    %104 = tpu.dynamic_rotate %94 by %c64_i32_42 dim 1 : vector<8x128xf32>, i32 -> vector<8x128xf32>
    %105 = arith.mulf %104, %103 : vector<8x128xf32>
    %c64_i32_43 = arith.constant 64 : i32
    %106 = tpu.dynamic_rotate %105 by %c64_i32_43 dim 1 : vector<8x128xf32>, i32 -> vector<8x128xf32>
    %107 = arith.addf %105, %106 : vector<8x128xf32>
    %108 = math.tanh %107 : vector<8x128xf32>
    %109 = arith.mulf %102, %108 : vector<8x128xf32>
    %110 = vector.extract_strided_slice %109 {offsets = [0, 0], sizes = [8, 64], strides = [1, 1]} : vector<8x128xf32> to vector<8x64xf32>
    %c192 = arith.constant 192 : index
    %c0_44 = arith.constant 0 : index
    %111 = vector.load %arg0[%c192, %c0_44] : memref<240x50xbf16, #tpu.memory_space<vmem>>, vector<48x50xbf16>
    %cst_45 = arith.constant dense<0.000000e+00> : vector<48x256xf32>
    %112 = tpu.matmul %111, %0, %cst_45 {dimension_numbers = #tpu.dot_dimension_numbers<[1], [0], [0], [1], [0, 0, 1, 1], [], []>} : vector<48x50xbf16>, vector<50x256xbf16>, vector<48x256xf32> -> vector<48x256xf32>
    %113 = vector.broadcast %2 : vector<1x256xf32> to vector<48x256xf32>
    %114 = arith.addf %112, %113 : vector<48x256xf32>
    %c192_46 = arith.constant 192 : index
    %c0_47 = arith.constant 0 : index
    %115 = vector.load %arg11[%c192_46, %c0_47] : memref<240x256xf32, #tpu.memory_space<vmem>>, vector<48x256xf32>
    tpu.vector_store %arg11[%c192_46, %c0_47], %114 {strides = array<i32>} : memref<240x256xf32, #tpu.memory_space<vmem>>, vector<48x256xf32>,
    %c24 = arith.constant 24 : index
    %c0_48 = arith.constant 0 : index
    %116 = vector.load %arg11[%c24, %c0_48] : memref<240x256xf32, #tpu.memory_space<vmem>>, vector<8x256xf32>
    %117 = arith.truncf %110 : vector<8x64xf32> to vector<8x64xbf16>
    %cst_49 = arith.constant dense<0.000000e+00> : vector<8x256xf32>
    %118 = tpu.matmul %117, %1, %cst_49 {dimension_numbers = #tpu.dot_dimension_numbers<[1], [0], [0], [1], [0, 0, 1, 1], [], []>} : vector<8x64xbf16>, vector<64x256xbf16>, vector<8x256xf32> -> vector<8x256xf32>
    %119 = arith.addf %118, %116 : vector<8x256xf32>
    %120 = vector.extract_strided_slice %119 {offsets = [0, 0], sizes = [8, 128], strides = [1, 1]} : vector<8x256xf32> to vector<8x128xf32>
    %121 = vector.extract_strided_slice %119 {offsets = [0, 128], sizes = [8, 128], strides = [1, 1]} : vector<8x256xf32> to vector<8x128xf32>
    %122 = arith.negf %120 : vector<8x128xf32>
    %123 = math.exp %122 : vector<8x128xf32>
    %cst_50 = arith.constant 1.000000e+00 : f32
    %124 = vector.broadcast %cst_50 : f32 to vector<8x128xf32>
    %125 = arith.addf %124, %123 : vector<8x128xf32>
    %126 = arith.divf %124, %125 : vector<8x128xf32>
    %127 = arith.mulf %121, %13 : vector<8x128xf32>
    %128 = arith.negf %127 : vector<8x128xf32>
    %129 = math.exp %128 : vector<8x128xf32>
    %cst_51 = arith.constant 1.000000e+00 : f32
    %130 = vector.broadcast %cst_51 : f32 to vector<8x128xf32>
    %131 = arith.addf %130, %129 : vector<8x128xf32>
    %132 = arith.divf %130, %131 : vector<8x128xf32>
    %133 = arith.mulf %132, %13 : vector<8x128xf32>
    %134 = arith.subf %133, %16 : vector<8x128xf32>
    %135 = arith.select %10, %107, %134 : vector<8x128xi1>, vector<8x128xf32>
    %c64_i32_52 = arith.constant 64 : i32
    %136 = tpu.dynamic_rotate %126 by %c64_i32_52 dim 1 : vector<8x128xf32>, i32 -> vector<8x128xf32>
    %137 = arith.mulf %136, %135 : vector<8x128xf32>
    %c64_i32_53 = arith.constant 64 : i32
    %138 = tpu.dynamic_rotate %137 by %c64_i32_53 dim 1 : vector<8x128xf32>, i32 -> vector<8x128xf32>
    %139 = arith.addf %137, %138 : vector<8x128xf32>
    %140 = math.tanh %139 : vector<8x128xf32>
    %141 = arith.mulf %134, %140 : vector<8x128xf32>
    %142 = vector.extract_strided_slice %141 {offsets = [0, 0], sizes = [8, 64], strides = [1, 1]} : vector<8x128xf32> to vector<8x64xf32>
    %c32 = arith.constant 32 : index
    %c0_54 = arith.constant 0 : index
    %143 = vector.load %arg11[%c32, %c0_54] : memref<240x256xf32, #tpu.memory_space<vmem>>, vector<8x256xf32>
    %144 = arith.truncf %142 : vector<8x64xf32> to vector<8x64xbf16>
    %cst_55 = arith.constant dense<0.000000e+00> : vector<8x256xf32>
    %145 = tpu.matmul %144, %1, %cst_55 {dimension_numbers = #tpu.dot_dimension_numbers<[1], [0], [0], [1], [0, 0, 1, 1], [], []>} : vector<8x64xbf16>, vector<64x256xbf16>, vector<8x256xf32> -> vector<8x256xf32>
    %146 = arith.addf %145, %143 : vector<8x256xf32>
    %147 = vector.extract_strided_slice %146 {offsets = [0, 0], sizes = [8, 128], strides = [1, 1]} : vector<8x256xf32> to vector<8x128xf32>
    %148 = vector.extract_strided_slice %146 {offsets = [0, 128], sizes = [8, 128], strides = [1, 1]} : vector<8x256xf32> to vector<8x128xf32>
    %149 = arith.negf %147 : vector<8x128xf32>
    %150 = math.exp %149 : vector<8x128xf32>
    %cst_56 = arith.constant 1.000000e+00 : f32
    %151 = vector.broadcast %cst_56 : f32 to vector<8x128xf32>
    %152 = arith.addf %151, %150 : vector<8x128xf32>
    %153 = arith.divf %151, %152 : vector<8x128xf32>
    %154 = arith.mulf %148, %13 : vector<8x128xf32>
    %155 = arith.negf %154 : vector<8x128xf32>
    %156 = math.exp %155 : vector<8x128xf32>
    %cst_57 = arith.constant 1.000000e+00 : f32
    %157 = vector.broadcast %cst_57 : f32 to vector<8x128xf32>
    %158 = arith.addf %157, %156 : vector<8x128xf32>
    %159 = arith.divf %157, %158 : vector<8x128xf32>
    %160 = arith.mulf %159, %13 : vector<8x128xf32>
    %161 = arith.subf %160, %16 : vector<8x128xf32>
    %162 = arith.select %10, %139, %161 : vector<8x128xi1>, vector<8x128xf32>
    %c64_i32_58 = arith.constant 64 : i32
    %163 = tpu.dynamic_rotate %153 by %c64_i32_58 dim 1 : vector<8x128xf32>, i32 -> vector<8x128xf32>
    %164 = arith.mulf %163, %162 : vector<8x128xf32>
    %c64_i32_59 = arith.constant 64 : i32
    %165 = tpu.dynamic_rotate %164 by %c64_i32_59 dim 1 : vector<8x128xf32>, i32 -> vector<8x128xf32>
    %166 = arith.addf %164, %165 : vector<8x128xf32>
    %167 = math.tanh %166 : vector<8x128xf32>
    %168 = arith.mulf %161, %167 : vector<8x128xf32>
    %169 = vector.extract_strided_slice %168 {offsets = [0, 0], sizes = [8, 64], strides = [1, 1]} : vector<8x128xf32> to vector<8x64xf32>
    %c40 = arith.constant 40 : index
    %c0_60 = arith.constant 0 : index
    %170 = vector.load %arg11[%c40, %c0_60] : memref<240x256xf32, #tpu.memory_space<vmem>>, vector<8x256xf32>
    %171 = arith.truncf %169 : vector<8x64xf32> to vector<8x64xbf16>
    %cst_61 = arith.constant dense<0.000000e+00> : vector<8x256xf32>
    %172 = tpu.matmul %171, %1, %cst_61 {dimension_numbers = #tpu.dot_dimension_numbers<[1], [0], [0], [1], [0, 0, 1, 1], [], []>} : vector<8x64xbf16>, vector<64x256xbf16>, vector<8x256xf32> -> vector<8x256xf32>
    %173 = arith.addf %172, %170 : vector<8x256xf32>
    %174 = vector.extract_strided_slice %173 {offsets = [0, 0], sizes = [8, 128], strides = [1, 1]} : vector<8x256xf32> to vector<8x128xf32>
    %175 = vector.extract_strided_slice %173 {offsets = [0, 128], sizes = [8, 128], strides = [1, 1]} : vector<8x256xf32> to vector<8x128xf32>
    %176 = arith.negf %174 : vector<8x128xf32>
    %177 = math.exp %176 : vector<8x128xf32>
    %cst_62 = arith.constant 1.000000e+00 : f32
    %178 = vector.broadcast %cst_62 : f32 to vector<8x128xf32>
    %179 = arith.addf %178, %177 : vector<8x128xf32>
    %180 = arith.divf %178, %179 : vector<8x128xf32>
    %181 = arith.mulf %175, %13 : vector<8x128xf32>
    %182 = arith.negf %181 : vector<8x128xf32>
    %183 = math.exp %182 : vector<8x128xf32>
    %cst_63 = arith.constant 1.000000e+00 : f32
    %184 = vector.broadcast %cst_63 : f32 to vector<8x128xf32>
    %185 = arith.addf %184, %183 : vector<8x128xf32>
    %186 = arith.divf %184, %185 : vector<8x128xf32>
    %187 = arith.mulf %186, %13 : vector<8x128xf32>
    %188 = arith.subf %187, %16 : vector<8x128xf32>
    %189 = arith.select %10, %166, %188 : vector<8x128xi1>, vector<8x128xf32>
    %c64_i32_64 = arith.constant 64 : i32
    %190 = tpu.dynamic_rotate %180 by %c64_i32_64 dim 1 : vector<8x128xf32>, i32 -> vector<8x128xf32>
    %191 = arith.mulf %190, %189 : vector<8x128xf32>
    %c64_i32_65 = arith.constant 64 : i32
    %192 = tpu.dynamic_rotate %191 by %c64_i32_65 dim 1 : vector<8x128xf32>, i32 -> vector<8x128xf32>
    %193 = arith.addf %191, %192 : vector<8x128xf32>
    %194 = math.tanh %193 : vector<8x128xf32>
    %195 = arith.mulf %188, %194 : vector<8x128xf32>
    %196 = vector.extract_strided_slice %195 {offsets = [0, 0], sizes = [8, 64], strides = [1, 1]} : vector<8x128xf32> to vector<8x64xf32>
    %c48_66 = arith.constant 48 : index
    %c0_67 = arith.constant 0 : index
    %197 = vector.load %arg11[%c48_66, %c0_67] : memref<240x256xf32, #tpu.memory_space<vmem>>, vector<8x256xf32>
    %198 = arith.truncf %196 : vector<8x64xf32> to vector<8x64xbf16>
    %cst_68 = arith.constant dense<0.000000e+00> : vector<8x256xf32>
    %199 = tpu.matmul %198, %1, %cst_68 {dimension_numbers = #tpu.dot_dimension_numbers<[1], [0], [0], [1], [0, 0, 1, 1], [], []>} : vector<8x64xbf16>, vector<64x256xbf16>, vector<8x256xf32> -> vector<8x256xf32>
    %200 = arith.addf %199, %197 : vector<8x256xf32>
    %201 = vector.extract_strided_slice %200 {offsets = [0, 0], sizes = [8, 128], strides = [1, 1]} : vector<8x256xf32> to vector<8x128xf32>
    %202 = vector.extract_strided_slice %200 {offsets = [0, 128], sizes = [8, 128], strides = [1, 1]} : vector<8x256xf32> to vector<8x128xf32>
    %203 = arith.negf %201 : vector<8x128xf32>
    %204 = math.exp %203 : vector<8x128xf32>
    %cst_69 = arith.constant 1.000000e+00 : f32
    %205 = vector.broadcast %cst_69 : f32 to vector<8x128xf32>
    %206 = arith.addf %205, %204 : vector<8x128xf32>
    %207 = arith.divf %205, %206 : vector<8x128xf32>
    %208 = arith.mulf %202, %13 : vector<8x128xf32>
    %209 = arith.negf %208 : vector<8x128xf32>
    %210 = math.exp %209 : vector<8x128xf32>
    %cst_70 = arith.constant 1.000000e+00 : f32
    %211 = vector.broadcast %cst_70 : f32 to vector<8x128xf32>
    %212 = arith.addf %211, %210 : vector<8x128xf32>
    %213 = arith.divf %211, %212 : vector<8x128xf32>
    %214 = arith.mulf %213, %13 : vector<8x128xf32>
    %215 = arith.subf %214, %16 : vector<8x128xf32>
    %216 = arith.select %10, %193, %215 : vector<8x128xi1>, vector<8x128xf32>
    %c64_i32_71 = arith.constant 64 : i32
    %217 = tpu.dynamic_rotate %207 by %c64_i32_71 dim 1 : vector<8x128xf32>, i32 -> vector<8x128xf32>
    %218 = arith.mulf %217, %216 : vector<8x128xf32>
    %c64_i32_72 = arith.constant 64 : i32
    %219 = tpu.dynamic_rotate %218 by %c64_i32_72 dim 1 : vector<8x128xf32>, i32 -> vector<8x128xf32>
    %220 = arith.addf %218, %219 : vector<8x128xf32>
    %221 = math.tanh %220 : vector<8x128xf32>
    %222 = arith.mulf %215, %221 : vector<8x128xf32>
    %223 = vector.extract_strided_slice %222 {offsets = [0, 0], sizes = [8, 64], strides = [1, 1]} : vector<8x128xf32> to vector<8x64xf32>
    %c56 = arith.constant 56 : index
    %c0_73 = arith.constant 0 : index
    %224 = vector.load %arg11[%c56, %c0_73] : memref<240x256xf32, #tpu.memory_space<vmem>>, vector<8x256xf32>
    %225 = arith.truncf %223 : vector<8x64xf32> to vector<8x64xbf16>
    %cst_74 = arith.constant dense<0.000000e+00> : vector<8x256xf32>
    %226 = tpu.matmul %225, %1, %cst_74 {dimension_numbers = #tpu.dot_dimension_numbers<[1], [0], [0], [1], [0, 0, 1, 1], [], []>} : vector<8x64xbf16>, vector<64x256xbf16>, vector<8x256xf32> -> vector<8x256xf32>
    %227 = arith.addf %226, %224 : vector<8x256xf32>
    %228 = vector.extract_strided_slice %227 {offsets = [0, 0], sizes = [8, 128], strides = [1, 1]} : vector<8x256xf32> to vector<8x128xf32>
    %229 = vector.extract_strided_slice %227 {offsets = [0, 128], sizes = [8, 128], strides = [1, 1]} : vector<8x256xf32> to vector<8x128xf32>
    %230 = arith.negf %228 : vector<8x128xf32>
    %231 = math.exp %230 : vector<8x128xf32>
    %cst_75 = arith.constant 1.000000e+00 : f32
    %232 = vector.broadcast %cst_75 : f32 to vector<8x128xf32>
    %233 = arith.addf %232, %231 : vector<8x128xf32>
    %234 = arith.divf %232, %233 : vector<8x128xf32>
    %235 = arith.mulf %229, %13 : vector<8x128xf32>
    %236 = arith.negf %235 : vector<8x128xf32>
    %237 = math.exp %236 : vector<8x128xf32>
    %cst_76 = arith.constant 1.000000e+00 : f32
    %238 = vector.broadcast %cst_76 : f32 to vector<8x128xf32>
    %239 = arith.addf %238, %237 : vector<8x128xf32>
    %240 = arith.divf %238, %239 : vector<8x128xf32>
    %241 = arith.mulf %240, %13 : vector<8x128xf32>
    %242 = arith.subf %241, %16 : vector<8x128xf32>
    %243 = arith.select %10, %220, %242 : vector<8x128xi1>, vector<8x128xf32>
    %c64_i32_77 = arith.constant 64 : i32
    %244 = tpu.dynamic_rotate %234 by %c64_i32_77 dim 1 : vector<8x128xf32>, i32 -> vector<8x128xf32>
    %245 = arith.mulf %244, %243 : vector<8x128xf32>
    %c64_i32_78 = arith.constant 64 : i32
    %246 = tpu.dynamic_rotate %245 by %c64_i32_78 dim 1 : vector<8x128xf32>, i32 -> vector<8x128xf32>
    %247 = arith.addf %245, %246 : vector<8x128xf32>
    %248 = math.tanh %247 : vector<8x128xf32>
    %249 = arith.mulf %242, %248 : vector<8x128xf32>
    %250 = vector.extract_strided_slice %249 {offsets = [0, 0], sizes = [8, 64], strides = [1, 1]} : vector<8x128xf32> to vector<8x64xf32>
    %c64 = arith.constant 64 : index
    %c0_79 = arith.constant 0 : index
    %251 = vector.load %arg11[%c64, %c0_79] : memref<240x256xf32, #tpu.memory_space<vmem>>, vector<8x256xf32>
    %252 = arith.truncf %250 : vector<8x64xf32> to vector<8x64xbf16>
    %cst_80 = arith.constant dense<0.000000e+00> : vector<8x256xf32>
    %253 = tpu.matmul %252, %1, %cst_80 {dimension_numbers = #tpu.dot_dimension_numbers<[1], [0], [0], [1], [0, 0, 1, 1], [], []>} : vector<8x64xbf16>, vector<64x256xbf16>, vector<8x256xf32> -> vector<8x256xf32>
    %254 = arith.addf %253, %251 : vector<8x256xf32>
    %255 = vector.extract_strided_slice %254 {offsets = [0, 0], sizes = [8, 128], strides = [1, 1]} : vector<8x256xf32> to vector<8x128xf32>
    %256 = vector.extract_strided_slice %254 {offsets = [0, 128], sizes = [8, 128], strides = [1, 1]} : vector<8x256xf32> to vector<8x128xf32>
    %257 = arith.negf %255 : vector<8x128xf32>
    %258 = math.exp %257 : vector<8x128xf32>
    %cst_81 = arith.constant 1.000000e+00 : f32
    %259 = vector.broadcast %cst_81 : f32 to vector<8x128xf32>
    %260 = arith.addf %259, %258 : vector<8x128xf32>
    %261 = arith.divf %259, %260 : vector<8x128xf32>
    %262 = arith.mulf %256, %13 : vector<8x128xf32>
    %263 = arith.negf %262 : vector<8x128xf32>
    %264 = math.exp %263 : vector<8x128xf32>
    %cst_82 = arith.constant 1.000000e+00 : f32
    %265 = vector.broadcast %cst_82 : f32 to vector<8x128xf32>
    %266 = arith.addf %265, %264 : vector<8x128xf32>
    %267 = arith.divf %265, %266 : vector<8x128xf32>
    %268 = arith.mulf %267, %13 : vector<8x128xf32>
    %269 = arith.subf %268, %16 : vector<8x128xf32>
    %270 = arith.select %10, %247, %269 : vector<8x128xi1>, vector<8x128xf32>
    %c64_i32_83 = arith.constant 64 : i32
    %271 = tpu.dynamic_rotate %261 by %c64_i32_83 dim 1 : vector<8x128xf32>, i32 -> vector<8x128xf32>
    %272 = arith.mulf %271, %270 : vector<8x128xf32>
    %c64_i32_84 = arith.constant 64 : i32
    %273 = tpu.dynamic_rotate %272 by %c64_i32_84 dim 1 : vector<8x128xf32>, i32 -> vector<8x128xf32>
    %274 = arith.addf %272, %273 : vector<8x128xf32>
    %275 = math.tanh %274 : vector<8x128xf32>
    %276 = arith.mulf %269, %275 : vector<8x128xf32>
    %277 = vector.extract_strided_slice %276 {offsets = [0, 0], sizes = [8, 64], strides = [1, 1]} : vector<8x128xf32> to vector<8x64xf32>
    %c72 = arith.constant 72 : index
    %c0_85 = arith.constant 0 : index
    %278 = vector.load %arg11[%c72, %c0_85] : memref<240x256xf32, #tpu.memory_space<vmem>>, vector<8x256xf32>
    %279 = arith.truncf %277 : vector<8x64xf32> to vector<8x64xbf16>
    %cst_86 = arith.constant dense<0.000000e+00> : vector<8x256xf32>
    %280 = tpu.matmul %279, %1, %cst_86 {dimension_numbers = #tpu.dot_dimension_numbers<[1], [0], [0], [1], [0, 0, 1, 1], [], []>} : vector<8x64xbf16>, vector<64x256xbf16>, vector<8x256xf32> -> vector<8x256xf32>
    %281 = arith.addf %280, %278 : vector<8x256xf32>
    %282 = vector.extract_strided_slice %281 {offsets = [0, 0], sizes = [8, 128], strides = [1, 1]} : vector<8x256xf32> to vector<8x128xf32>
    %283 = vector.extract_strided_slice %281 {offsets = [0, 128], sizes = [8, 128], strides = [1, 1]} : vector<8x256xf32> to vector<8x128xf32>
    %284 = arith.negf %282 : vector<8x128xf32>
    %285 = math.exp %284 : vector<8x128xf32>
    %cst_87 = arith.constant 1.000000e+00 : f32
    %286 = vector.broadcast %cst_87 : f32 to vector<8x128xf32>
    %287 = arith.addf %286, %285 : vector<8x128xf32>
    %288 = arith.divf %286, %287 : vector<8x128xf32>
    %289 = arith.mulf %283, %13 : vector<8x128xf32>
    %290 = arith.negf %289 : vector<8x128xf32>
    %291 = math.exp %290 : vector<8x128xf32>
    %cst_88 = arith.constant 1.000000e+00 : f32
    %292 = vector.broadcast %cst_88 : f32 to vector<8x128xf32>
    %293 = arith.addf %292, %291 : vector<8x128xf32>
    %294 = arith.divf %292, %293 : vector<8x128xf32>
    %295 = arith.mulf %294, %13 : vector<8x128xf32>
    %296 = arith.subf %295, %16 : vector<8x128xf32>
    %297 = arith.select %10, %274, %296 : vector<8x128xi1>, vector<8x128xf32>
    %c64_i32_89 = arith.constant 64 : i32
    %298 = tpu.dynamic_rotate %288 by %c64_i32_89 dim 1 : vector<8x128xf32>, i32 -> vector<8x128xf32>
    %299 = arith.mulf %298, %297 : vector<8x128xf32>
    %c64_i32_90 = arith.constant 64 : i32
    %300 = tpu.dynamic_rotate %299 by %c64_i32_90 dim 1 : vector<8x128xf32>, i32 -> vector<8x128xf32>
    %301 = arith.addf %299, %300 : vector<8x128xf32>
    %302 = math.tanh %301 : vector<8x128xf32>
    %303 = arith.mulf %296, %302 : vector<8x128xf32>
    %304 = vector.extract_strided_slice %303 {offsets = [0, 0], sizes = [8, 64], strides = [1, 1]} : vector<8x128xf32> to vector<8x64xf32>
    %c80 = arith.constant 80 : index
    %c0_91 = arith.constant 0 : index
    %305 = vector.load %arg11[%c80, %c0_91] : memref<240x256xf32, #tpu.memory_space<vmem>>, vector<8x256xf32>
    %306 = arith.truncf %304 : vector<8x64xf32> to vector<8x64xbf16>
    %cst_92 = arith.constant dense<0.000000e+00> : vector<8x256xf32>
    %307 = tpu.matmul %306, %1, %cst_92 {dimension_numbers = #tpu.dot_dimension_numbers<[1], [0], [0], [1], [0, 0, 1, 1], [], []>} : vector<8x64xbf16>, vector<64x256xbf16>, vector<8x256xf32> -> vector<8x256xf32>
    %308 = arith.addf %307, %305 : vector<8x256xf32>
    %309 = vector.extract_strided_slice %308 {offsets = [0, 0], sizes = [8, 128], strides = [1, 1]} : vector<8x256xf32> to vector<8x128xf32>
    %310 = vector.extract_strided_slice %308 {offsets = [0, 128], sizes = [8, 128], strides = [1, 1]} : vector<8x256xf32> to vector<8x128xf32>
    %311 = arith.negf %309 : vector<8x128xf32>
    %312 = math.exp %311 : vector<8x128xf32>
    %cst_93 = arith.constant 1.000000e+00 : f32
    %313 = vector.broadcast %cst_93 : f32 to vector<8x128xf32>
    %314 = arith.addf %313, %312 : vector<8x128xf32>
    %315 = arith.divf %313, %314 : vector<8x128xf32>
    %316 = arith.mulf %310, %13 : vector<8x128xf32>
    %317 = arith.negf %316 : vector<8x128xf32>
    %318 = math.exp %317 : vector<8x128xf32>
    %cst_94 = arith.constant 1.000000e+00 : f32
    %319 = vector.broadcast %cst_94 : f32 to vector<8x128xf32>
    %320 = arith.addf %319, %318 : vector<8x128xf32>
    %321 = arith.divf %319, %320 : vector<8x128xf32>
    %322 = arith.mulf %321, %13 : vector<8x128xf32>
    %323 = arith.subf %322, %16 : vector<8x128xf32>
    %324 = arith.select %10, %301, %323 : vector<8x128xi1>, vector<8x128xf32>
    %c64_i32_95 = arith.constant 64 : i32
    %325 = tpu.dynamic_rotate %315 by %c64_i32_95 dim 1 : vector<8x128xf32>, i32 -> vector<8x128xf32>
    %326 = arith.mulf %325, %324 : vector<8x128xf32>
    %c64_i32_96 = arith.constant 64 : i32
    %327 = tpu.dynamic_rotate %326 by %c64_i32_96 dim 1 : vector<8x128xf32>, i32 -> vector<8x128xf32>
    %328 = arith.addf %326, %327 : vector<8x128xf32>
    %329 = math.tanh %328 : vector<8x128xf32>
    %330 = arith.mulf %323, %329 : vector<8x128xf32>
    %331 = vector.extract_strided_slice %330 {offsets = [0, 0], sizes = [8, 64], strides = [1, 1]} : vector<8x128xf32> to vector<8x64xf32>
    %c88 = arith.constant 88 : index
    %c0_97 = arith.constant 0 : index
    %332 = vector.load %arg11[%c88, %c0_97] : memref<240x256xf32, #tpu.memory_space<vmem>>, vector<8x256xf32>
    %333 = arith.truncf %331 : vector<8x64xf32> to vector<8x64xbf16>
    %cst_98 = arith.constant dense<0.000000e+00> : vector<8x256xf32>
    %334 = tpu.matmul %333, %1, %cst_98 {dimension_numbers = #tpu.dot_dimension_numbers<[1], [0], [0], [1], [0, 0, 1, 1], [], []>} : vector<8x64xbf16>, vector<64x256xbf16>, vector<8x256xf32> -> vector<8x256xf32>
    %335 = arith.addf %334, %332 : vector<8x256xf32>
    %336 = vector.extract_strided_slice %335 {offsets = [0, 0], sizes = [8, 128], strides = [1, 1]} : vector<8x256xf32> to vector<8x128xf32>
    %337 = vector.extract_strided_slice %335 {offsets = [0, 128], sizes = [8, 128], strides = [1, 1]} : vector<8x256xf32> to vector<8x128xf32>
    %338 = arith.negf %336 : vector<8x128xf32>
    %339 = math.exp %338 : vector<8x128xf32>
    %cst_99 = arith.constant 1.000000e+00 : f32
    %340 = vector.broadcast %cst_99 : f32 to vector<8x128xf32>
    %341 = arith.addf %340, %339 : vector<8x128xf32>
    %342 = arith.divf %340, %341 : vector<8x128xf32>
    %343 = arith.mulf %337, %13 : vector<8x128xf32>
    %344 = arith.negf %343 : vector<8x128xf32>
    %345 = math.exp %344 : vector<8x128xf32>
    %cst_100 = arith.constant 1.000000e+00 : f32
    %346 = vector.broadcast %cst_100 : f32 to vector<8x128xf32>
    %347 = arith.addf %346, %345 : vector<8x128xf32>
    %348 = arith.divf %346, %347 : vector<8x128xf32>
    %349 = arith.mulf %348, %13 : vector<8x128xf32>
    %350 = arith.subf %349, %16 : vector<8x128xf32>
    %351 = arith.select %10, %328, %350 : vector<8x128xi1>, vector<8x128xf32>
    %c64_i32_101 = arith.constant 64 : i32
    %352 = tpu.dynamic_rotate %342 by %c64_i32_101 dim 1 : vector<8x128xf32>, i32 -> vector<8x128xf32>
    %353 = arith.mulf %352, %351 : vector<8x128xf32>
    %c64_i32_102 = arith.constant 64 : i32
    %354 = tpu.dynamic_rotate %353 by %c64_i32_102 dim 1 : vector<8x128xf32>, i32 -> vector<8x128xf32>
    %355 = arith.addf %353, %354 : vector<8x128xf32>
    %356 = math.tanh %355 : vector<8x128xf32>
    %357 = arith.mulf %350, %356 : vector<8x128xf32>
    %358 = vector.extract_strided_slice %357 {offsets = [0, 0], sizes = [8, 64], strides = [1, 1]} : vector<8x128xf32> to vector<8x64xf32>
    %c96_103 = arith.constant 96 : index
    %c0_104 = arith.constant 0 : index
    %359 = vector.load %arg11[%c96_103, %c0_104] : memref<240x256xf32, #tpu.memory_space<vmem>>, vector<8x256xf32>
    %360 = arith.truncf %358 : vector<8x64xf32> to vector<8x64xbf16>
    %cst_105 = arith.constant dense<0.000000e+00> : vector<8x256xf32>
    %361 = tpu.matmul %360, %1, %cst_105 {dimension_numbers = #tpu.dot_dimension_numbers<[1], [0], [0], [1], [0, 0, 1, 1], [], []>} : vector<8x64xbf16>, vector<64x256xbf16>, vector<8x256xf32> -> vector<8x256xf32>
    %362 = arith.addf %361, %359 : vector<8x256xf32>
    %363 = vector.extract_strided_slice %362 {offsets = [0, 0], sizes = [8, 128], strides = [1, 1]} : vector<8x256xf32> to vector<8x128xf32>
    %364 = vector.extract_strided_slice %362 {offsets = [0, 128], sizes = [8, 128], strides = [1, 1]} : vector<8x256xf32> to vector<8x128xf32>
    %365 = arith.negf %363 : vector<8x128xf32>
    %366 = math.exp %365 : vector<8x128xf32>
    %cst_106 = arith.constant 1.000000e+00 : f32
    %367 = vector.broadcast %cst_106 : f32 to vector<8x128xf32>
    %368 = arith.addf %367, %366 : vector<8x128xf32>
    %369 = arith.divf %367, %368 : vector<8x128xf32>
    %370 = arith.mulf %364, %13 : vector<8x128xf32>
    %371 = arith.negf %370 : vector<8x128xf32>
    %372 = math.exp %371 : vector<8x128xf32>
    %cst_107 = arith.constant 1.000000e+00 : f32
    %373 = vector.broadcast %cst_107 : f32 to vector<8x128xf32>
    %374 = arith.addf %373, %372 : vector<8x128xf32>
    %375 = arith.divf %373, %374 : vector<8x128xf32>
    %376 = arith.mulf %375, %13 : vector<8x128xf32>
    %377 = arith.subf %376, %16 : vector<8x128xf32>
    %378 = arith.select %10, %355, %377 : vector<8x128xi1>, vector<8x128xf32>
    %c64_i32_108 = arith.constant 64 : i32
    %379 = tpu.dynamic_rotate %369 by %c64_i32_108 dim 1 : vector<8x128xf32>, i32 -> vector<8x128xf32>
    %380 = arith.mulf %379, %378 : vector<8x128xf32>
    %c64_i32_109 = arith.constant 64 : i32
    %381 = tpu.dynamic_rotate %380 by %c64_i32_109 dim 1 : vector<8x128xf32>, i32 -> vector<8x128xf32>
    %382 = arith.addf %380, %381 : vector<8x128xf32>
    %383 = math.tanh %382 : vector<8x128xf32>
    %384 = arith.mulf %377, %383 : vector<8x128xf32>
    %385 = vector.extract_strided_slice %384 {offsets = [0, 0], sizes = [8, 64], strides = [1, 1]} : vector<8x128xf32> to vector<8x64xf32>
    %c104 = arith.constant 104 : index
    %c0_110 = arith.constant 0 : index
    %386 = vector.load %arg11[%c104, %c0_110] : memref<240x256xf32, #tpu.memory_space<vmem>>, vector<8x256xf32>
    %387 = arith.truncf %385 : vector<8x64xf32> to vector<8x64xbf16>
    %cst_111 = arith.constant dense<0.000000e+00> : vector<8x256xf32>
    %388 = tpu.matmul %387, %1, %cst_111 {dimension_numbers = #tpu.dot_dimension_numbers<[1], [0], [0], [1], [0, 0, 1, 1], [], []>} : vector<8x64xbf16>, vector<64x256xbf16>, vector<8x256xf32> -> vector<8x256xf32>
    %389 = arith.addf %388, %386 : vector<8x256xf32>
    %390 = vector.extract_strided_slice %389 {offsets = [0, 0], sizes = [8, 128], strides = [1, 1]} : vector<8x256xf32> to vector<8x128xf32>
    %391 = vector.extract_strided_slice %389 {offsets = [0, 128], sizes = [8, 128], strides = [1, 1]} : vector<8x256xf32> to vector<8x128xf32>
    %392 = arith.negf %390 : vector<8x128xf32>
    %393 = math.exp %392 : vector<8x128xf32>
    %cst_112 = arith.constant 1.000000e+00 : f32
    %394 = vector.broadcast %cst_112 : f32 to vector<8x128xf32>
    %395 = arith.addf %394, %393 : vector<8x128xf32>
    %396 = arith.divf %394, %395 : vector<8x128xf32>
    %397 = arith.mulf %391, %13 : vector<8x128xf32>
    %398 = arith.negf %397 : vector<8x128xf32>
    %399 = math.exp %398 : vector<8x128xf32>
    %cst_113 = arith.constant 1.000000e+00 : f32
    %400 = vector.broadcast %cst_113 : f32 to vector<8x128xf32>
    %401 = arith.addf %400, %399 : vector<8x128xf32>
    %402 = arith.divf %400, %401 : vector<8x128xf32>
    %403 = arith.mulf %402, %13 : vector<8x128xf32>
    %404 = arith.subf %403, %16 : vector<8x128xf32>
    %405 = arith.select %10, %382, %404 : vector<8x128xi1>, vector<8x128xf32>
    %c64_i32_114 = arith.constant 64 : i32
    %406 = tpu.dynamic_rotate %396 by %c64_i32_114 dim 1 : vector<8x128xf32>, i32 -> vector<8x128xf32>
    %407 = arith.mulf %406, %405 : vector<8x128xf32>
    %c64_i32_115 = arith.constant 64 : i32
    %408 = tpu.dynamic_rotate %407 by %c64_i32_115 dim 1 : vector<8x128xf32>, i32 -> vector<8x128xf32>
    %409 = arith.addf %407, %408 : vector<8x128xf32>
    %410 = math.tanh %409 : vector<8x128xf32>
    %411 = arith.mulf %404, %410 : vector<8x128xf32>
    %412 = vector.extract_strided_slice %411 {offsets = [0, 0], sizes = [8, 64], strides = [1, 1]} : vector<8x128xf32> to vector<8x64xf32>
    %c112 = arith.constant 112 : index
    %c0_116 = arith.constant 0 : index
    %413 = vector.load %arg11[%c112, %c0_116] : memref<240x256xf32, #tpu.memory_space<vmem>>, vector<8x256xf32>
    %414 = arith.truncf %412 : vector<8x64xf32> to vector<8x64xbf16>
    %cst_117 = arith.constant dense<0.000000e+00> : vector<8x256xf32>
    %415 = tpu.matmul %414, %1, %cst_117 {dimension_numbers = #tpu.dot_dimension_numbers<[1], [0], [0], [1], [0, 0, 1, 1], [], []>} : vector<8x64xbf16>, vector<64x256xbf16>, vector<8x256xf32> -> vector<8x256xf32>
    %416 = arith.addf %415, %413 : vector<8x256xf32>
    %417 = vector.extract_strided_slice %416 {offsets = [0, 0], sizes = [8, 128], strides = [1, 1]} : vector<8x256xf32> to vector<8x128xf32>
    %418 = vector.extract_strided_slice %416 {offsets = [0, 128], sizes = [8, 128], strides = [1, 1]} : vector<8x256xf32> to vector<8x128xf32>
    %419 = arith.negf %417 : vector<8x128xf32>
    %420 = math.exp %419 : vector<8x128xf32>
    %cst_118 = arith.constant 1.000000e+00 : f32
    %421 = vector.broadcast %cst_118 : f32 to vector<8x128xf32>
    %422 = arith.addf %421, %420 : vector<8x128xf32>
    %423 = arith.divf %421, %422 : vector<8x128xf32>
    %424 = arith.mulf %418, %13 : vector<8x128xf32>
    %425 = arith.negf %424 : vector<8x128xf32>
    %426 = math.exp %425 : vector<8x128xf32>
    %cst_119 = arith.constant 1.000000e+00 : f32
    %427 = vector.broadcast %cst_119 : f32 to vector<8x128xf32>
    %428 = arith.addf %427, %426 : vector<8x128xf32>
    %429 = arith.divf %427, %428 : vector<8x128xf32>
    %430 = arith.mulf %429, %13 : vector<8x128xf32>
    %431 = arith.subf %430, %16 : vector<8x128xf32>
    %432 = arith.select %10, %409, %431 : vector<8x128xi1>, vector<8x128xf32>
    %c64_i32_120 = arith.constant 64 : i32
    %433 = tpu.dynamic_rotate %423 by %c64_i32_120 dim 1 : vector<8x128xf32>, i32 -> vector<8x128xf32>
    %434 = arith.mulf %433, %432 : vector<8x128xf32>
    %c64_i32_121 = arith.constant 64 : i32
    %435 = tpu.dynamic_rotate %434 by %c64_i32_121 dim 1 : vector<8x128xf32>, i32 -> vector<8x128xf32>
    %436 = arith.addf %434, %435 : vector<8x128xf32>
    %437 = math.tanh %436 : vector<8x128xf32>
    %438 = arith.mulf %431, %437 : vector<8x128xf32>
    %439 = vector.extract_strided_slice %438 {offsets = [0, 0], sizes = [8, 64], strides = [1, 1]} : vector<8x128xf32> to vector<8x64xf32>
    %c120 = arith.constant 120 : index
    %c0_122 = arith.constant 0 : index
    %440 = vector.load %arg11[%c120, %c0_122] : memref<240x256xf32, #tpu.memory_space<vmem>>, vector<8x256xf32>
    %441 = arith.truncf %439 : vector<8x64xf32> to vector<8x64xbf16>
    %cst_123 = arith.constant dense<0.000000e+00> : vector<8x256xf32>
    %442 = tpu.matmul %441, %1, %cst_123 {dimension_numbers = #tpu.dot_dimension_numbers<[1], [0], [0], [1], [0, 0, 1, 1], [], []>} : vector<8x64xbf16>, vector<64x256xbf16>, vector<8x256xf32> -> vector<8x256xf32>
    %443 = arith.addf %442, %440 : vector<8x256xf32>
    %444 = vector.extract_strided_slice %443 {offsets = [0, 0], sizes = [8, 128], strides = [1, 1]} : vector<8x256xf32> to vector<8x128xf32>
    %445 = vector.extract_strided_slice %443 {offsets = [0, 128], sizes = [8, 128], strides = [1, 1]} : vector<8x256xf32> to vector<8x128xf32>
    %446 = arith.negf %444 : vector<8x128xf32>
    %447 = math.exp %446 : vector<8x128xf32>
    %cst_124 = arith.constant 1.000000e+00 : f32
    %448 = vector.broadcast %cst_124 : f32 to vector<8x128xf32>
    %449 = arith.addf %448, %447 : vector<8x128xf32>
    %450 = arith.divf %448, %449 : vector<8x128xf32>
    %451 = arith.mulf %445, %13 : vector<8x128xf32>
    %452 = arith.negf %451 : vector<8x128xf32>
    %453 = math.exp %452 : vector<8x128xf32>
    %cst_125 = arith.constant 1.000000e+00 : f32
    %454 = vector.broadcast %cst_125 : f32 to vector<8x128xf32>
    %455 = arith.addf %454, %453 : vector<8x128xf32>
    %456 = arith.divf %454, %455 : vector<8x128xf32>
    %457 = arith.mulf %456, %13 : vector<8x128xf32>
    %458 = arith.subf %457, %16 : vector<8x128xf32>
    %459 = arith.select %10, %436, %458 : vector<8x128xi1>, vector<8x128xf32>
    %c64_i32_126 = arith.constant 64 : i32
    %460 = tpu.dynamic_rotate %450 by %c64_i32_126 dim 1 : vector<8x128xf32>, i32 -> vector<8x128xf32>
    %461 = arith.mulf %460, %459 : vector<8x128xf32>
    %c64_i32_127 = arith.constant 64 : i32
    %462 = tpu.dynamic_rotate %461 by %c64_i32_127 dim 1 : vector<8x128xf32>, i32 -> vector<8x128xf32>
    %463 = arith.addf %461, %462 : vector<8x128xf32>
    %464 = math.tanh %463 : vector<8x128xf32>
    %465 = arith.mulf %458, %464 : vector<8x128xf32>
    %466 = vector.extract_strided_slice %465 {offsets = [0, 0], sizes = [8, 64], strides = [1, 1]} : vector<8x128xf32> to vector<8x64xf32>
    %c128 = arith.constant 128 : index
    %c0_128 = arith.constant 0 : index
    %467 = vector.load %arg11[%c128, %c0_128] : memref<240x256xf32, #tpu.memory_space<vmem>>, vector<8x256xf32>
    %468 = arith.truncf %466 : vector<8x64xf32> to vector<8x64xbf16>
    %cst_129 = arith.constant dense<0.000000e+00> : vector<8x256xf32>
    %469 = tpu.matmul %468, %1, %cst_129 {dimension_numbers = #tpu.dot_dimension_numbers<[1], [0], [0], [1], [0, 0, 1, 1], [], []>} : vector<8x64xbf16>, vector<64x256xbf16>, vector<8x256xf32> -> vector<8x256xf32>
    %470 = arith.addf %469, %467 : vector<8x256xf32>
    %471 = vector.extract_strided_slice %470 {offsets = [0, 0], sizes = [8, 128], strides = [1, 1]} : vector<8x256xf32> to vector<8x128xf32>
    %472 = vector.extract_strided_slice %470 {offsets = [0, 128], sizes = [8, 128], strides = [1, 1]} : vector<8x256xf32> to vector<8x128xf32>
    %473 = arith.negf %471 : vector<8x128xf32>
    %474 = math.exp %473 : vector<8x128xf32>
    %cst_130 = arith.constant 1.000000e+00 : f32
    %475 = vector.broadcast %cst_130 : f32 to vector<8x128xf32>
    %476 = arith.addf %475, %474 : vector<8x128xf32>
    %477 = arith.divf %475, %476 : vector<8x128xf32>
    %478 = arith.mulf %472, %13 : vector<8x128xf32>
    %479 = arith.negf %478 : vector<8x128xf32>
    %480 = math.exp %479 : vector<8x128xf32>
    %cst_131 = arith.constant 1.000000e+00 : f32
    %481 = vector.broadcast %cst_131 : f32 to vector<8x128xf32>
    %482 = arith.addf %481, %480 : vector<8x128xf32>
    %483 = arith.divf %481, %482 : vector<8x128xf32>
    %484 = arith.mulf %483, %13 : vector<8x128xf32>
    %485 = arith.subf %484, %16 : vector<8x128xf32>
    %486 = arith.select %10, %463, %485 : vector<8x128xi1>, vector<8x128xf32>
    %c64_i32_132 = arith.constant 64 : i32
    %487 = tpu.dynamic_rotate %477 by %c64_i32_132 dim 1 : vector<8x128xf32>, i32 -> vector<8x128xf32>
    %488 = arith.mulf %487, %486 : vector<8x128xf32>
    %c64_i32_133 = arith.constant 64 : i32
    %489 = tpu.dynamic_rotate %488 by %c64_i32_133 dim 1 : vector<8x128xf32>, i32 -> vector<8x128xf32>
    %490 = arith.addf %488, %489 : vector<8x128xf32>
    %491 = math.tanh %490 : vector<8x128xf32>
    %492 = arith.mulf %485, %491 : vector<8x128xf32>
    %493 = vector.extract_strided_slice %492 {offsets = [0, 0], sizes = [8, 64], strides = [1, 1]} : vector<8x128xf32> to vector<8x64xf32>
    %c136 = arith.constant 136 : index
    %c0_134 = arith.constant 0 : index
    %494 = vector.load %arg11[%c136, %c0_134] : memref<240x256xf32, #tpu.memory_space<vmem>>, vector<8x256xf32>
    %495 = arith.truncf %493 : vector<8x64xf32> to vector<8x64xbf16>
    %cst_135 = arith.constant dense<0.000000e+00> : vector<8x256xf32>
    %496 = tpu.matmul %495, %1, %cst_135 {dimension_numbers = #tpu.dot_dimension_numbers<[1], [0], [0], [1], [0, 0, 1, 1], [], []>} : vector<8x64xbf16>, vector<64x256xbf16>, vector<8x256xf32> -> vector<8x256xf32>
    %497 = arith.addf %496, %494 : vector<8x256xf32>
    %498 = vector.extract_strided_slice %497 {offsets = [0, 0], sizes = [8, 128], strides = [1, 1]} : vector<8x256xf32> to vector<8x128xf32>
    %499 = vector.extract_strided_slice %497 {offsets = [0, 128], sizes = [8, 128], strides = [1, 1]} : vector<8x256xf32> to vector<8x128xf32>
    %500 = arith.negf %498 : vector<8x128xf32>
    %501 = math.exp %500 : vector<8x128xf32>
    %cst_136 = arith.constant 1.000000e+00 : f32
    %502 = vector.broadcast %cst_136 : f32 to vector<8x128xf32>
    %503 = arith.addf %502, %501 : vector<8x128xf32>
    %504 = arith.divf %502, %503 : vector<8x128xf32>
    %505 = arith.mulf %499, %13 : vector<8x128xf32>
    %506 = arith.negf %505 : vector<8x128xf32>
    %507 = math.exp %506 : vector<8x128xf32>
    %cst_137 = arith.constant 1.000000e+00 : f32
    %508 = vector.broadcast %cst_137 : f32 to vector<8x128xf32>
    %509 = arith.addf %508, %507 : vector<8x128xf32>
    %510 = arith.divf %508, %509 : vector<8x128xf32>
    %511 = arith.mulf %510, %13 : vector<8x128xf32>
    %512 = arith.subf %511, %16 : vector<8x128xf32>
    %513 = arith.select %10, %490, %512 : vector<8x128xi1>, vector<8x128xf32>
    %c64_i32_138 = arith.constant 64 : i32
    %514 = tpu.dynamic_rotate %504 by %c64_i32_138 dim 1 : vector<8x128xf32>, i32 -> vector<8x128xf32>
    %515 = arith.mulf %514, %513 : vector<8x128xf32>
    %c64_i32_139 = arith.constant 64 : i32
    %516 = tpu.dynamic_rotate %515 by %c64_i32_139 dim 1 : vector<8x128xf32>, i32 -> vector<8x128xf32>
    %517 = arith.addf %515, %516 : vector<8x128xf32>
    %518 = math.tanh %517 : vector<8x128xf32>
    %519 = arith.mulf %512, %518 : vector<8x128xf32>
    %520 = vector.extract_strided_slice %519 {offsets = [0, 0], sizes = [8, 64], strides = [1, 1]} : vector<8x128xf32> to vector<8x64xf32>
    %c144_140 = arith.constant 144 : index
    %c0_141 = arith.constant 0 : index
    %521 = vector.load %arg11[%c144_140, %c0_141] : memref<240x256xf32, #tpu.memory_space<vmem>>, vector<8x256xf32>
    %522 = arith.truncf %520 : vector<8x64xf32> to vector<8x64xbf16>
    %cst_142 = arith.constant dense<0.000000e+00> : vector<8x256xf32>
    %523 = tpu.matmul %522, %1, %cst_142 {dimension_numbers = #tpu.dot_dimension_numbers<[1], [0], [0], [1], [0, 0, 1, 1], [], []>} : vector<8x64xbf16>, vector<64x256xbf16>, vector<8x256xf32> -> vector<8x256xf32>
    %524 = arith.addf %523, %521 : vector<8x256xf32>
    %525 = vector.extract_strided_slice %524 {offsets = [0, 0], sizes = [8, 128], strides = [1, 1]} : vector<8x256xf32> to vector<8x128xf32>
    %526 = vector.extract_strided_slice %524 {offsets = [0, 128], sizes = [8, 128], strides = [1, 1]} : vector<8x256xf32> to vector<8x128xf32>
    %527 = arith.negf %525 : vector<8x128xf32>
    %528 = math.exp %527 : vector<8x128xf32>
    %cst_143 = arith.constant 1.000000e+00 : f32
    %529 = vector.broadcast %cst_143 : f32 to vector<8x128xf32>
    %530 = arith.addf %529, %528 : vector<8x128xf32>
    %531 = arith.divf %529, %530 : vector<8x128xf32>
    %532 = arith.mulf %526, %13 : vector<8x128xf32>
    %533 = arith.negf %532 : vector<8x128xf32>
    %534 = math.exp %533 : vector<8x128xf32>
    %cst_144 = arith.constant 1.000000e+00 : f32
    %535 = vector.broadcast %cst_144 : f32 to vector<8x128xf32>
    %536 = arith.addf %535, %534 : vector<8x128xf32>
    %537 = arith.divf %535, %536 : vector<8x128xf32>
    %538 = arith.mulf %537, %13 : vector<8x128xf32>
    %539 = arith.subf %538, %16 : vector<8x128xf32>
    %540 = arith.select %10, %517, %539 : vector<8x128xi1>, vector<8x128xf32>
    %c64_i32_145 = arith.constant 64 : i32
    %541 = tpu.dynamic_rotate %531 by %c64_i32_145 dim 1 : vector<8x128xf32>, i32 -> vector<8x128xf32>
    %542 = arith.mulf %541, %540 : vector<8x128xf32>
    %c64_i32_146 = arith.constant 64 : i32
    %543 = tpu.dynamic_rotate %542 by %c64_i32_146 dim 1 : vector<8x128xf32>, i32 -> vector<8x128xf32>
    %544 = arith.addf %542, %543 : vector<8x128xf32>
    %545 = math.tanh %544 : vector<8x128xf32>
    %546 = arith.mulf %539, %545 : vector<8x128xf32>
    %547 = vector.extract_strided_slice %546 {offsets = [0, 0], sizes = [8, 64], strides = [1, 1]} : vector<8x128xf32> to vector<8x64xf32>
    %c152 = arith.constant 152 : index
    %c0_147 = arith.constant 0 : index
    %548 = vector.load %arg11[%c152, %c0_147] : memref<240x256xf32, #tpu.memory_space<vmem>>, vector<8x256xf32>
    %549 = arith.truncf %547 : vector<8x64xf32> to vector<8x64xbf16>
    %cst_148 = arith.constant dense<0.000000e+00> : vector<8x256xf32>
    %550 = tpu.matmul %549, %1, %cst_148 {dimension_numbers = #tpu.dot_dimension_numbers<[1], [0], [0], [1], [0, 0, 1, 1], [], []>} : vector<8x64xbf16>, vector<64x256xbf16>, vector<8x256xf32> -> vector<8x256xf32>
    %551 = arith.addf %550, %548 : vector<8x256xf32>
    %552 = vector.extract_strided_slice %551 {offsets = [0, 0], sizes = [8, 128], strides = [1, 1]} : vector<8x256xf32> to vector<8x128xf32>
    %553 = vector.extract_strided_slice %551 {offsets = [0, 128], sizes = [8, 128], strides = [1, 1]} : vector<8x256xf32> to vector<8x128xf32>
    %554 = arith.negf %552 : vector<8x128xf32>
    %555 = math.exp %554 : vector<8x128xf32>
    %cst_149 = arith.constant 1.000000e+00 : f32
    %556 = vector.broadcast %cst_149 : f32 to vector<8x128xf32>
    %557 = arith.addf %556, %555 : vector<8x128xf32>
    %558 = arith.divf %556, %557 : vector<8x128xf32>
    %559 = arith.mulf %553, %13 : vector<8x128xf32>
    %560 = arith.negf %559 : vector<8x128xf32>
    %561 = math.exp %560 : vector<8x128xf32>
    %cst_150 = arith.constant 1.000000e+00 : f32
    %562 = vector.broadcast %cst_150 : f32 to vector<8x128xf32>
    %563 = arith.addf %562, %561 : vector<8x128xf32>
    %564 = arith.divf %562, %563 : vector<8x128xf32>
    %565 = arith.mulf %564, %13 : vector<8x128xf32>
    %566 = arith.subf %565, %16 : vector<8x128xf32>
    %567 = arith.select %10, %544, %566 : vector<8x128xi1>, vector<8x128xf32>
    %c64_i32_151 = arith.constant 64 : i32
    %568 = tpu.dynamic_rotate %558 by %c64_i32_151 dim 1 : vector<8x128xf32>, i32 -> vector<8x128xf32>
    %569 = arith.mulf %568, %567 : vector<8x128xf32>
    %c64_i32_152 = arith.constant 64 : i32
    %570 = tpu.dynamic_rotate %569 by %c64_i32_152 dim 1 : vector<8x128xf32>, i32 -> vector<8x128xf32>
    %571 = arith.addf %569, %570 : vector<8x128xf32>
    %572 = math.tanh %571 : vector<8x128xf32>
    %573 = arith.mulf %566, %572 : vector<8x128xf32>
    %574 = vector.extract_strided_slice %573 {offsets = [0, 0], sizes = [8, 64], strides = [1, 1]} : vector<8x128xf32> to vector<8x64xf32>
    %c160 = arith.constant 160 : index
    %c0_153 = arith.constant 0 : index
    %575 = vector.load %arg11[%c160, %c0_153] : memref<240x256xf32, #tpu.memory_space<vmem>>, vector<8x256xf32>
    %576 = arith.truncf %574 : vector<8x64xf32> to vector<8x64xbf16>
    %cst_154 = arith.constant dense<0.000000e+00> : vector<8x256xf32>
    %577 = tpu.matmul %576, %1, %cst_154 {dimension_numbers = #tpu.dot_dimension_numbers<[1], [0], [0], [1], [0, 0, 1, 1], [], []>} : vector<8x64xbf16>, vector<64x256xbf16>, vector<8x256xf32> -> vector<8x256xf32>
    %578 = arith.addf %577, %575 : vector<8x256xf32>
    %579 = vector.extract_strided_slice %578 {offsets = [0, 0], sizes = [8, 128], strides = [1, 1]} : vector<8x256xf32> to vector<8x128xf32>
    %580 = vector.extract_strided_slice %578 {offsets = [0, 128], sizes = [8, 128], strides = [1, 1]} : vector<8x256xf32> to vector<8x128xf32>
    %581 = arith.negf %579 : vector<8x128xf32>
    %582 = math.exp %581 : vector<8x128xf32>
    %cst_155 = arith.constant 1.000000e+00 : f32
    %583 = vector.broadcast %cst_155 : f32 to vector<8x128xf32>
    %584 = arith.addf %583, %582 : vector<8x128xf32>
    %585 = arith.divf %583, %584 : vector<8x128xf32>
    %586 = arith.mulf %580, %13 : vector<8x128xf32>
    %587 = arith.negf %586 : vector<8x128xf32>
    %588 = math.exp %587 : vector<8x128xf32>
    %cst_156 = arith.constant 1.000000e+00 : f32
    %589 = vector.broadcast %cst_156 : f32 to vector<8x128xf32>
    %590 = arith.addf %589, %588 : vector<8x128xf32>
    %591 = arith.divf %589, %590 : vector<8x128xf32>
    %592 = arith.mulf %591, %13 : vector<8x128xf32>
    %593 = arith.subf %592, %16 : vector<8x128xf32>
    %594 = arith.select %10, %571, %593 : vector<8x128xi1>, vector<8x128xf32>
    %c64_i32_157 = arith.constant 64 : i32
    %595 = tpu.dynamic_rotate %585 by %c64_i32_157 dim 1 : vector<8x128xf32>, i32 -> vector<8x128xf32>
    %596 = arith.mulf %595, %594 : vector<8x128xf32>
    %c64_i32_158 = arith.constant 64 : i32
    %597 = tpu.dynamic_rotate %596 by %c64_i32_158 dim 1 : vector<8x128xf32>, i32 -> vector<8x128xf32>
    %598 = arith.addf %596, %597 : vector<8x128xf32>
    %599 = math.tanh %598 : vector<8x128xf32>
    %600 = arith.mulf %593, %599 : vector<8x128xf32>
    %601 = vector.extract_strided_slice %600 {offsets = [0, 0], sizes = [8, 64], strides = [1, 1]} : vector<8x128xf32> to vector<8x64xf32>
    %c168 = arith.constant 168 : index
    %c0_159 = arith.constant 0 : index
    %602 = vector.load %arg11[%c168, %c0_159] : memref<240x256xf32, #tpu.memory_space<vmem>>, vector<8x256xf32>
    %603 = arith.truncf %601 : vector<8x64xf32> to vector<8x64xbf16>
    %cst_160 = arith.constant dense<0.000000e+00> : vector<8x256xf32>
    %604 = tpu.matmul %603, %1, %cst_160 {dimension_numbers = #tpu.dot_dimension_numbers<[1], [0], [0], [1], [0, 0, 1, 1], [], []>} : vector<8x64xbf16>, vector<64x256xbf16>, vector<8x256xf32> -> vector<8x256xf32>
    %605 = arith.addf %604, %602 : vector<8x256xf32>
    %606 = vector.extract_strided_slice %605 {offsets = [0, 0], sizes = [8, 128], strides = [1, 1]} : vector<8x256xf32> to vector<8x128xf32>
    %607 = vector.extract_strided_slice %605 {offsets = [0, 128], sizes = [8, 128], strides = [1, 1]} : vector<8x256xf32> to vector<8x128xf32>
    %608 = arith.negf %606 : vector<8x128xf32>
    %609 = math.exp %608 : vector<8x128xf32>
    %cst_161 = arith.constant 1.000000e+00 : f32
    %610 = vector.broadcast %cst_161 : f32 to vector<8x128xf32>
    %611 = arith.addf %610, %609 : vector<8x128xf32>
    %612 = arith.divf %610, %611 : vector<8x128xf32>
    %613 = arith.mulf %607, %13 : vector<8x128xf32>
    %614 = arith.negf %613 : vector<8x128xf32>
    %615 = math.exp %614 : vector<8x128xf32>
    %cst_162 = arith.constant 1.000000e+00 : f32
    %616 = vector.broadcast %cst_162 : f32 to vector<8x128xf32>
    %617 = arith.addf %616, %615 : vector<8x128xf32>
    %618 = arith.divf %616, %617 : vector<8x128xf32>
    %619 = arith.mulf %618, %13 : vector<8x128xf32>
    %620 = arith.subf %619, %16 : vector<8x128xf32>
    %621 = arith.select %10, %598, %620 : vector<8x128xi1>, vector<8x128xf32>
    %c64_i32_163 = arith.constant 64 : i32
    %622 = tpu.dynamic_rotate %612 by %c64_i32_163 dim 1 : vector<8x128xf32>, i32 -> vector<8x128xf32>
    %623 = arith.mulf %622, %621 : vector<8x128xf32>
    %c64_i32_164 = arith.constant 64 : i32
    %624 = tpu.dynamic_rotate %623 by %c64_i32_164 dim 1 : vector<8x128xf32>, i32 -> vector<8x128xf32>
    %625 = arith.addf %623, %624 : vector<8x128xf32>
    %626 = math.tanh %625 : vector<8x128xf32>
    %627 = arith.mulf %620, %626 : vector<8x128xf32>
    %628 = vector.extract_strided_slice %627 {offsets = [0, 0], sizes = [8, 64], strides = [1, 1]} : vector<8x128xf32> to vector<8x64xf32>
    %c176 = arith.constant 176 : index
    %c0_165 = arith.constant 0 : index
    %629 = vector.load %arg11[%c176, %c0_165] : memref<240x256xf32, #tpu.memory_space<vmem>>, vector<8x256xf32>
    %630 = arith.truncf %628 : vector<8x64xf32> to vector<8x64xbf16>
    %cst_166 = arith.constant dense<0.000000e+00> : vector<8x256xf32>
    %631 = tpu.matmul %630, %1, %cst_166 {dimension_numbers = #tpu.dot_dimension_numbers<[1], [0], [0], [1], [0, 0, 1, 1], [], []>} : vector<8x64xbf16>, vector<64x256xbf16>, vector<8x256xf32> -> vector<8x256xf32>
    %632 = arith.addf %631, %629 : vector<8x256xf32>
    %633 = vector.extract_strided_slice %632 {offsets = [0, 0], sizes = [8, 128], strides = [1, 1]} : vector<8x256xf32> to vector<8x128xf32>
    %634 = vector.extract_strided_slice %632 {offsets = [0, 128], sizes = [8, 128], strides = [1, 1]} : vector<8x256xf32> to vector<8x128xf32>
    %635 = arith.negf %633 : vector<8x128xf32>
    %636 = math.exp %635 : vector<8x128xf32>
    %cst_167 = arith.constant 1.000000e+00 : f32
    %637 = vector.broadcast %cst_167 : f32 to vector<8x128xf32>
    %638 = arith.addf %637, %636 : vector<8x128xf32>
    %639 = arith.divf %637, %638 : vector<8x128xf32>
    %640 = arith.mulf %634, %13 : vector<8x128xf32>
    %641 = arith.negf %640 : vector<8x128xf32>
    %642 = math.exp %641 : vector<8x128xf32>
    %cst_168 = arith.constant 1.000000e+00 : f32
    %643 = vector.broadcast %cst_168 : f32 to vector<8x128xf32>
    %644 = arith.addf %643, %642 : vector<8x128xf32>
    %645 = arith.divf %643, %644 : vector<8x128xf32>
    %646 = arith.mulf %645, %13 : vector<8x128xf32>
    %647 = arith.subf %646, %16 : vector<8x128xf32>
    %648 = arith.select %10, %625, %647 : vector<8x128xi1>, vector<8x128xf32>
    %c64_i32_169 = arith.constant 64 : i32
    %649 = tpu.dynamic_rotate %639 by %c64_i32_169 dim 1 : vector<8x128xf32>, i32 -> vector<8x128xf32>
    %650 = arith.mulf %649, %648 : vector<8x128xf32>
    %c64_i32_170 = arith.constant 64 : i32
    %651 = tpu.dynamic_rotate %650 by %c64_i32_170 dim 1 : vector<8x128xf32>, i32 -> vector<8x128xf32>
    %652 = arith.addf %650, %651 : vector<8x128xf32>
    %653 = math.tanh %652 : vector<8x128xf32>
    %654 = arith.mulf %647, %653 : vector<8x128xf32>
    %655 = vector.extract_strided_slice %654 {offsets = [0, 0], sizes = [8, 64], strides = [1, 1]} : vector<8x128xf32> to vector<8x64xf32>
    %c184 = arith.constant 184 : index
    %c0_171 = arith.constant 0 : index
    %656 = vector.load %arg11[%c184, %c0_171] : memref<240x256xf32, #tpu.memory_space<vmem>>, vector<8x256xf32>
    %657 = arith.truncf %655 : vector<8x64xf32> to vector<8x64xbf16>
    %cst_172 = arith.constant dense<0.000000e+00> : vector<8x256xf32>
    %658 = tpu.matmul %657, %1, %cst_172 {dimension_numbers = #tpu.dot_dimension_numbers<[1], [0], [0], [1], [0, 0, 1, 1], [], []>} : vector<8x64xbf16>, vector<64x256xbf16>, vector<8x256xf32> -> vector<8x256xf32>
    %659 = arith.addf %658, %656 : vector<8x256xf32>
    %660 = vector.extract_strided_slice %659 {offsets = [0, 0], sizes = [8, 128], strides = [1, 1]} : vector<8x256xf32> to vector<8x128xf32>
    %661 = vector.extract_strided_slice %659 {offsets = [0, 128], sizes = [8, 128], strides = [1, 1]} : vector<8x256xf32> to vector<8x128xf32>
    %662 = arith.negf %660 : vector<8x128xf32>
    %663 = math.exp %662 : vector<8x128xf32>
    %cst_173 = arith.constant 1.000000e+00 : f32
    %664 = vector.broadcast %cst_173 : f32 to vector<8x128xf32>
    %665 = arith.addf %664, %663 : vector<8x128xf32>
    %666 = arith.divf %664, %665 : vector<8x128xf32>
    %667 = arith.mulf %661, %13 : vector<8x128xf32>
    %668 = arith.negf %667 : vector<8x128xf32>
    %669 = math.exp %668 : vector<8x128xf32>
    %cst_174 = arith.constant 1.000000e+00 : f32
    %670 = vector.broadcast %cst_174 : f32 to vector<8x128xf32>
    %671 = arith.addf %670, %669 : vector<8x128xf32>
    %672 = arith.divf %670, %671 : vector<8x128xf32>
    %673 = arith.mulf %672, %13 : vector<8x128xf32>
    %674 = arith.subf %673, %16 : vector<8x128xf32>
    %675 = arith.select %10, %652, %674 : vector<8x128xi1>, vector<8x128xf32>
    %c64_i32_175 = arith.constant 64 : i32
    %676 = tpu.dynamic_rotate %666 by %c64_i32_175 dim 1 : vector<8x128xf32>, i32 -> vector<8x128xf32>
    %677 = arith.mulf %676, %675 : vector<8x128xf32>
    %c64_i32_176 = arith.constant 64 : i32
    %678 = tpu.dynamic_rotate %677 by %c64_i32_176 dim 1 : vector<8x128xf32>, i32 -> vector<8x128xf32>
    %679 = arith.addf %677, %678 : vector<8x128xf32>
    %680 = math.tanh %679 : vector<8x128xf32>
    %681 = arith.mulf %674, %680 : vector<8x128xf32>
    %682 = vector.extract_strided_slice %681 {offsets = [0, 0], sizes = [8, 64], strides = [1, 1]} : vector<8x128xf32> to vector<8x64xf32>
    %c192_177 = arith.constant 192 : index
    %c0_178 = arith.constant 0 : index
    %683 = vector.load %arg11[%c192_177, %c0_178] : memref<240x256xf32, #tpu.memory_space<vmem>>, vector<8x256xf32>
    %684 = arith.truncf %682 : vector<8x64xf32> to vector<8x64xbf16>
    %cst_179 = arith.constant dense<0.000000e+00> : vector<8x256xf32>
    %685 = tpu.matmul %684, %1, %cst_179 {dimension_numbers = #tpu.dot_dimension_numbers<[1], [0], [0], [1], [0, 0, 1, 1], [], []>} : vector<8x64xbf16>, vector<64x256xbf16>, vector<8x256xf32> -> vector<8x256xf32>
    %686 = arith.addf %685, %683 : vector<8x256xf32>
    %687 = vector.extract_strided_slice %686 {offsets = [0, 0], sizes = [8, 128], strides = [1, 1]} : vector<8x256xf32> to vector<8x128xf32>
    %688 = vector.extract_strided_slice %686 {offsets = [0, 128], sizes = [8, 128], strides = [1, 1]} : vector<8x256xf32> to vector<8x128xf32>
    %689 = arith.negf %687 : vector<8x128xf32>
    %690 = math.exp %689 : vector<8x128xf32>
    %cst_180 = arith.constant 1.000000e+00 : f32
    %691 = vector.broadcast %cst_180 : f32 to vector<8x128xf32>
    %692 = arith.addf %691, %690 : vector<8x128xf32>
    %693 = arith.divf %691, %692 : vector<8x128xf32>
    %694 = arith.mulf %688, %13 : vector<8x128xf32>
    %695 = arith.negf %694 : vector<8x128xf32>
    %696 = math.exp %695 : vector<8x128xf32>
    %cst_181 = arith.constant 1.000000e+00 : f32
    %697 = vector.broadcast %cst_181 : f32 to vector<8x128xf32>
    %698 = arith.addf %697, %696 : vector<8x128xf32>
    %699 = arith.divf %697, %698 : vector<8x128xf32>
    %700 = arith.mulf %699, %13 : vector<8x128xf32>
    %701 = arith.subf %700, %16 : vector<8x128xf32>
    %702 = arith.select %10, %679, %701 : vector<8x128xi1>, vector<8x128xf32>
    %c64_i32_182 = arith.constant 64 : i32
    %703 = tpu.dynamic_rotate %693 by %c64_i32_182 dim 1 : vector<8x128xf32>, i32 -> vector<8x128xf32>
    %704 = arith.mulf %703, %702 : vector<8x128xf32>
    %c64_i32_183 = arith.constant 64 : i32
    %705 = tpu.dynamic_rotate %704 by %c64_i32_183 dim 1 : vector<8x128xf32>, i32 -> vector<8x128xf32>
    %706 = arith.addf %704, %705 : vector<8x128xf32>
    %707 = math.tanh %706 : vector<8x128xf32>
    %708 = arith.mulf %701, %707 : vector<8x128xf32>
    %709 = vector.extract_strided_slice %708 {offsets = [0, 0], sizes = [8, 64], strides = [1, 1]} : vector<8x128xf32> to vector<8x64xf32>
    %c200 = arith.constant 200 : index
    %c0_184 = arith.constant 0 : index
    %710 = vector.load %arg11[%c200, %c0_184] : memref<240x256xf32, #tpu.memory_space<vmem>>, vector<8x256xf32>
    %711 = arith.truncf %709 : vector<8x64xf32> to vector<8x64xbf16>
    %cst_185 = arith.constant dense<0.000000e+00> : vector<8x256xf32>
    %712 = tpu.matmul %711, %1, %cst_185 {dimension_numbers = #tpu.dot_dimension_numbers<[1], [0], [0], [1], [0, 0, 1, 1], [], []>} : vector<8x64xbf16>, vector<64x256xbf16>, vector<8x256xf32> -> vector<8x256xf32>
    %713 = arith.addf %712, %710 : vector<8x256xf32>
    %714 = vector.extract_strided_slice %713 {offsets = [0, 0], sizes = [8, 128], strides = [1, 1]} : vector<8x256xf32> to vector<8x128xf32>
    %715 = vector.extract_strided_slice %713 {offsets = [0, 128], sizes = [8, 128], strides = [1, 1]} : vector<8x256xf32> to vector<8x128xf32>
    %716 = arith.negf %714 : vector<8x128xf32>
    %717 = math.exp %716 : vector<8x128xf32>
    %cst_186 = arith.constant 1.000000e+00 : f32
    %718 = vector.broadcast %cst_186 : f32 to vector<8x128xf32>
    %719 = arith.addf %718, %717 : vector<8x128xf32>
    %720 = arith.divf %718, %719 : vector<8x128xf32>
    %721 = arith.mulf %715, %13 : vector<8x128xf32>
    %722 = arith.negf %721 : vector<8x128xf32>
    %723 = math.exp %722 : vector<8x128xf32>
    %cst_187 = arith.constant 1.000000e+00 : f32
    %724 = vector.broadcast %cst_187 : f32 to vector<8x128xf32>
    %725 = arith.addf %724, %723 : vector<8x128xf32>
    %726 = arith.divf %724, %725 : vector<8x128xf32>
    %727 = arith.mulf %726, %13 : vector<8x128xf32>
    %728 = arith.subf %727, %16 : vector<8x128xf32>
    %729 = arith.select %10, %706, %728 : vector<8x128xi1>, vector<8x128xf32>
    %c64_i32_188 = arith.constant 64 : i32
    %730 = tpu.dynamic_rotate %720 by %c64_i32_188 dim 1 : vector<8x128xf32>, i32 -> vector<8x128xf32>
    %731 = arith.mulf %730, %729 : vector<8x128xf32>
    %c64_i32_189 = arith.constant 64 : i32
    %732 = tpu.dynamic_rotate %731 by %c64_i32_189 dim 1 : vector<8x128xf32>, i32 -> vector<8x128xf32>
    %733 = arith.addf %731, %732 : vector<8x128xf32>
    %734 = math.tanh %733 : vector<8x128xf32>
    %735 = arith.mulf %728, %734 : vector<8x128xf32>
    %736 = vector.extract_strided_slice %735 {offsets = [0, 0], sizes = [8, 64], strides = [1, 1]} : vector<8x128xf32> to vector<8x64xf32>
    %c208 = arith.constant 208 : index
    %c0_190 = arith.constant 0 : index
    %737 = vector.load %arg11[%c208, %c0_190] : memref<240x256xf32, #tpu.memory_space<vmem>>, vector<8x256xf32>
    %738 = arith.truncf %736 : vector<8x64xf32> to vector<8x64xbf16>
    %cst_191 = arith.constant dense<0.000000e+00> : vector<8x256xf32>
    %739 = tpu.matmul %738, %1, %cst_191 {dimension_numbers = #tpu.dot_dimension_numbers<[1], [0], [0], [1], [0, 0, 1, 1], [], []>} : vector<8x64xbf16>, vector<64x256xbf16>, vector<8x256xf32> -> vector<8x256xf32>
    %740 = arith.addf %739, %737 : vector<8x256xf32>
    %741 = vector.extract_strided_slice %740 {offsets = [0, 0], sizes = [8, 128], strides = [1, 1]} : vector<8x256xf32> to vector<8x128xf32>
    %742 = vector.extract_strided_slice %740 {offsets = [0, 128], sizes = [8, 128], strides = [1, 1]} : vector<8x256xf32> to vector<8x128xf32>
    %743 = arith.negf %741 : vector<8x128xf32>
    %744 = math.exp %743 : vector<8x128xf32>
    %cst_192 = arith.constant 1.000000e+00 : f32
    %745 = vector.broadcast %cst_192 : f32 to vector<8x128xf32>
    %746 = arith.addf %745, %744 : vector<8x128xf32>
    %747 = arith.divf %745, %746 : vector<8x128xf32>
    %748 = arith.mulf %742, %13 : vector<8x128xf32>
    %749 = arith.negf %748 : vector<8x128xf32>
    %750 = math.exp %749 : vector<8x128xf32>
    %cst_193 = arith.constant 1.000000e+00 : f32
    %751 = vector.broadcast %cst_193 : f32 to vector<8x128xf32>
    %752 = arith.addf %751, %750 : vector<8x128xf32>
    %753 = arith.divf %751, %752 : vector<8x128xf32>
    %754 = arith.mulf %753, %13 : vector<8x128xf32>
    %755 = arith.subf %754, %16 : vector<8x128xf32>
    %756 = arith.select %10, %733, %755 : vector<8x128xi1>, vector<8x128xf32>
    %c64_i32_194 = arith.constant 64 : i32
    %757 = tpu.dynamic_rotate %747 by %c64_i32_194 dim 1 : vector<8x128xf32>, i32 -> vector<8x128xf32>
    %758 = arith.mulf %757, %756 : vector<8x128xf32>
    %c64_i32_195 = arith.constant 64 : i32
    %759 = tpu.dynamic_rotate %758 by %c64_i32_195 dim 1 : vector<8x128xf32>, i32 -> vector<8x128xf32>
    %760 = arith.addf %758, %759 : vector<8x128xf32>
    %761 = math.tanh %760 : vector<8x128xf32>
    %762 = arith.mulf %755, %761 : vector<8x128xf32>
    %763 = vector.extract_strided_slice %762 {offsets = [0, 0], sizes = [8, 64], strides = [1, 1]} : vector<8x128xf32> to vector<8x64xf32>
    %c216 = arith.constant 216 : index
    %c0_196 = arith.constant 0 : index
    %764 = vector.load %arg11[%c216, %c0_196] : memref<240x256xf32, #tpu.memory_space<vmem>>, vector<8x256xf32>
    %765 = arith.truncf %763 : vector<8x64xf32> to vector<8x64xbf16>
    %cst_197 = arith.constant dense<0.000000e+00> : vector<8x256xf32>
    %766 = tpu.matmul %765, %1, %cst_197 {dimension_numbers = #tpu.dot_dimension_numbers<[1], [0], [0], [1], [0, 0, 1, 1], [], []>} : vector<8x64xbf16>, vector<64x256xbf16>, vector<8x256xf32> -> vector<8x256xf32>
    %767 = arith.addf %766, %764 : vector<8x256xf32>
    %768 = vector.extract_strided_slice %767 {offsets = [0, 0], sizes = [8, 128], strides = [1, 1]} : vector<8x256xf32> to vector<8x128xf32>
    %769 = vector.extract_strided_slice %767 {offsets = [0, 128], sizes = [8, 128], strides = [1, 1]} : vector<8x256xf32> to vector<8x128xf32>
    %770 = arith.negf %768 : vector<8x128xf32>
    %771 = math.exp %770 : vector<8x128xf32>
    %cst_198 = arith.constant 1.000000e+00 : f32
    %772 = vector.broadcast %cst_198 : f32 to vector<8x128xf32>
    %773 = arith.addf %772, %771 : vector<8x128xf32>
    %774 = arith.divf %772, %773 : vector<8x128xf32>
    %775 = arith.mulf %769, %13 : vector<8x128xf32>
    %776 = arith.negf %775 : vector<8x128xf32>
    %777 = math.exp %776 : vector<8x128xf32>
    %cst_199 = arith.constant 1.000000e+00 : f32
    %778 = vector.broadcast %cst_199 : f32 to vector<8x128xf32>
    %779 = arith.addf %778, %777 : vector<8x128xf32>
    %780 = arith.divf %778, %779 : vector<8x128xf32>
    %781 = arith.mulf %780, %13 : vector<8x128xf32>
    %782 = arith.subf %781, %16 : vector<8x128xf32>
    %783 = arith.select %10, %760, %782 : vector<8x128xi1>, vector<8x128xf32>
    %c64_i32_200 = arith.constant 64 : i32
    %784 = tpu.dynamic_rotate %774 by %c64_i32_200 dim 1 : vector<8x128xf32>, i32 -> vector<8x128xf32>
    %785 = arith.mulf %784, %783 : vector<8x128xf32>
    %c64_i32_201 = arith.constant 64 : i32
    %786 = tpu.dynamic_rotate %785 by %c64_i32_201 dim 1 : vector<8x128xf32>, i32 -> vector<8x128xf32>
    %787 = arith.addf %785, %786 : vector<8x128xf32>
    %788 = math.tanh %787 : vector<8x128xf32>
    %789 = arith.mulf %782, %788 : vector<8x128xf32>
    %790 = vector.extract_strided_slice %789 {offsets = [0, 0], sizes = [8, 64], strides = [1, 1]} : vector<8x128xf32> to vector<8x64xf32>
    %c224 = arith.constant 224 : index
    %c0_202 = arith.constant 0 : index
    %791 = vector.load %arg11[%c224, %c0_202] : memref<240x256xf32, #tpu.memory_space<vmem>>, vector<8x256xf32>
    %792 = arith.truncf %790 : vector<8x64xf32> to vector<8x64xbf16>
    %cst_203 = arith.constant dense<0.000000e+00> : vector<8x256xf32>
    %793 = tpu.matmul %792, %1, %cst_203 {dimension_numbers = #tpu.dot_dimension_numbers<[1], [0], [0], [1], [0, 0, 1, 1], [], []>} : vector<8x64xbf16>, vector<64x256xbf16>, vector<8x256xf32> -> vector<8x256xf32>
    %794 = arith.addf %793, %791 : vector<8x256xf32>
    %795 = vector.extract_strided_slice %794 {offsets = [0, 0], sizes = [8, 128], strides = [1, 1]} : vector<8x256xf32> to vector<8x128xf32>
    %796 = vector.extract_strided_slice %794 {offsets = [0, 128], sizes = [8, 128], strides = [1, 1]} : vector<8x256xf32> to vector<8x128xf32>
    %797 = arith.negf %795 : vector<8x128xf32>
    %798 = math.exp %797 : vector<8x128xf32>
    %cst_204 = arith.constant 1.000000e+00 : f32
    %799 = vector.broadcast %cst_204 : f32 to vector<8x128xf32>
    %800 = arith.addf %799, %798 : vector<8x128xf32>
    %801 = arith.divf %799, %800 : vector<8x128xf32>
    %802 = arith.mulf %796, %13 : vector<8x128xf32>
    %803 = arith.negf %802 : vector<8x128xf32>
    %804 = math.exp %803 : vector<8x128xf32>
    %cst_205 = arith.constant 1.000000e+00 : f32
    %805 = vector.broadcast %cst_205 : f32 to vector<8x128xf32>
    %806 = arith.addf %805, %804 : vector<8x128xf32>
    %807 = arith.divf %805, %806 : vector<8x128xf32>
    %808 = arith.mulf %807, %13 : vector<8x128xf32>
    %809 = arith.subf %808, %16 : vector<8x128xf32>
    %810 = arith.select %10, %787, %809 : vector<8x128xi1>, vector<8x128xf32>
    %c64_i32_206 = arith.constant 64 : i32
    %811 = tpu.dynamic_rotate %801 by %c64_i32_206 dim 1 : vector<8x128xf32>, i32 -> vector<8x128xf32>
    %812 = arith.mulf %811, %810 : vector<8x128xf32>
    %c64_i32_207 = arith.constant 64 : i32
    %813 = tpu.dynamic_rotate %812 by %c64_i32_207 dim 1 : vector<8x128xf32>, i32 -> vector<8x128xf32>
    %814 = arith.addf %812, %813 : vector<8x128xf32>
    %815 = math.tanh %814 : vector<8x128xf32>
    %816 = arith.mulf %809, %815 : vector<8x128xf32>
    %817 = vector.extract_strided_slice %816 {offsets = [0, 0], sizes = [8, 64], strides = [1, 1]} : vector<8x128xf32> to vector<8x64xf32>
    %c232 = arith.constant 232 : index
    %c0_208 = arith.constant 0 : index
    %818 = vector.load %arg11[%c232, %c0_208] : memref<240x256xf32, #tpu.memory_space<vmem>>, vector<8x256xf32>
    %819 = arith.truncf %817 : vector<8x64xf32> to vector<8x64xbf16>
    %cst_209 = arith.constant dense<0.000000e+00> : vector<8x256xf32>
    %820 = tpu.matmul %819, %1, %cst_209 {dimension_numbers = #tpu.dot_dimension_numbers<[1], [0], [0], [1], [0, 0, 1, 1], [], []>} : vector<8x64xbf16>, vector<64x256xbf16>, vector<8x256xf32> -> vector<8x256xf32>
    %821 = arith.addf %820, %818 : vector<8x256xf32>
    %822 = vector.extract_strided_slice %821 {offsets = [0, 0], sizes = [8, 128], strides = [1, 1]} : vector<8x256xf32> to vector<8x128xf32>
    %823 = vector.extract_strided_slice %821 {offsets = [0, 128], sizes = [8, 128], strides = [1, 1]} : vector<8x256xf32> to vector<8x128xf32>
    %824 = arith.negf %822 : vector<8x128xf32>
    %825 = math.exp %824 : vector<8x128xf32>
    %cst_210 = arith.constant 1.000000e+00 : f32
    %826 = vector.broadcast %cst_210 : f32 to vector<8x128xf32>
    %827 = arith.addf %826, %825 : vector<8x128xf32>
    %828 = arith.divf %826, %827 : vector<8x128xf32>
    %829 = arith.mulf %823, %13 : vector<8x128xf32>
    %830 = arith.negf %829 : vector<8x128xf32>
    %831 = math.exp %830 : vector<8x128xf32>
    %cst_211 = arith.constant 1.000000e+00 : f32
    %832 = vector.broadcast %cst_211 : f32 to vector<8x128xf32>
    %833 = arith.addf %832, %831 : vector<8x128xf32>
    %834 = arith.divf %832, %833 : vector<8x128xf32>
    %835 = arith.mulf %834, %13 : vector<8x128xf32>
    %836 = arith.subf %835, %16 : vector<8x128xf32>
    %837 = arith.select %10, %814, %836 : vector<8x128xi1>, vector<8x128xf32>
    %c64_i32_212 = arith.constant 64 : i32
    %838 = tpu.dynamic_rotate %828 by %c64_i32_212 dim 1 : vector<8x128xf32>, i32 -> vector<8x128xf32>
    %839 = arith.mulf %838, %837 : vector<8x128xf32>
    %c64_i32_213 = arith.constant 64 : i32
    %840 = tpu.dynamic_rotate %839 by %c64_i32_213 dim 1 : vector<8x128xf32>, i32 -> vector<8x128xf32>
    %841 = arith.addf %839, %840 : vector<8x128xf32>
    %842 = math.tanh %841 : vector<8x128xf32>
    %843 = arith.mulf %836, %842 : vector<8x128xf32>
    %844 = vector.extract_strided_slice %843 {offsets = [0, 0], sizes = [8, 64], strides = [1, 1]} : vector<8x128xf32> to vector<8x64xf32>
    %845 = vector.extract_strided_slice %844 {offsets = [0, 0], sizes = [2, 64], strides = [1, 1]} : vector<8x64xf32> to vector<2x64xf32>
    %846 = vector.extract_strided_slice %844 {offsets = [2, 0], sizes = [2, 64], strides = [1, 1]} : vector<8x64xf32> to vector<2x64xf32>
    %847 = tpu.concatenate %845, %846 in 1 : vector<2x64xf32>, vector<2x64xf32> -> vector<2x128xf32>
    %c0_214 = arith.constant 0 : index
    %c0_215 = arith.constant 0 : index
    %848 = vector.load %arg4[%c0_214, %c0_215] : memref<128x32xf32, #tpu.memory_space<vmem>>, vector<128x32xf32>
    %cst_216 = arith.constant dense<0.000000e+00> : vector<2x32xf32>
    %849 = tpu.matmul %847, %848, %cst_216 {dimension_numbers = #tpu.dot_dimension_numbers<[1], [0], [0], [1], [0, 0, 1, 1], [], []>} : vector<2x128xf32>, vector<128x32xf32>, vector<2x32xf32> -> vector<2x32xf32>
    %c0_217 = arith.constant 0 : index
    %c0_218 = arith.constant 0 : index
    %850 = vector.load %arg5[%c0_217, %c0_218] : memref<1x32xf32, #tpu.memory_space<vmem>>, vector<1x32xf32>
    %851 = vector.broadcast %850 : vector<1x32xf32> to vector<2x32xf32>
    %852 = arith.addf %849, %851 : vector<2x32xf32>
    %cst_219 = arith.constant 0.000000e+00 : f32
    %853 = vector.broadcast %cst_219 : f32 to vector<2x32xf32>
    %854 = arith.maximumf %852, %853 : vector<2x32xf32>
    %c0_220 = arith.constant 0 : index
    %c0_221 = arith.constant 0 : index
    %855 = vector.load %arg6[%c0_220, %c0_221] : memref<32x32xf32, #tpu.memory_space<vmem>>, vector<32x32xf32>
    %cst_222 = arith.constant dense<0.000000e+00> : vector<2x32xf32>
    %856 = tpu.matmul %854, %855, %cst_222 {dimension_numbers = #tpu.dot_dimension_numbers<[1], [0], [0], [1], [0, 0, 1, 1], [], []>} : vector<2x32xf32>, vector<32x32xf32>, vector<2x32xf32> -> vector<2x32xf32>
    %c0_223 = arith.constant 0 : index
    %c0_224 = arith.constant 0 : index
    %857 = vector.load %arg7[%c0_223, %c0_224] : memref<1x32xf32, #tpu.memory_space<vmem>>, vector<1x32xf32>
    %858 = vector.broadcast %857 : vector<1x32xf32> to vector<2x32xf32>
    %859 = arith.addf %856, %858 : vector<2x32xf32>
    %cst_225 = arith.constant 0.000000e+00 : f32
    %860 = vector.broadcast %cst_225 : f32 to vector<2x32xf32>
    %861 = arith.maximumf %859, %860 : vector<2x32xf32>
    %c0_226 = arith.constant 0 : index
    %c0_227 = arith.constant 0 : index
    %862 = vector.load %arg8[%c0_226, %c0_227] : memref<32x1xf32, #tpu.memory_space<vmem>>, vector<32x1xf32>
    %cst_228 = arith.constant dense<0.000000e+00> : vector<2x1xf32>
    %863 = tpu.matmul %861, %862, %cst_228 {dimension_numbers = #tpu.dot_dimension_numbers<[1], [0], [0], [1], [0, 0, 1, 1], [], []>} : vector<2x32xf32>, vector<32x1xf32>, vector<2x1xf32> -> vector<2x1xf32>
    %c0_229 = arith.constant 0 : index
    %c0_230 = arith.constant 0 : index
    %864 = vector.load %arg9[%c0_229, %c0_230] : memref<1x1xf32, #tpu.memory_space<vmem>>, vector<1x1xf32>
    %865 = vector.broadcast %864 : vector<1x1xf32> to vector<2x1xf32>
    %866 = arith.addf %863, %865 : vector<2x1xf32>
    %867 = arith.negf %866 : vector<2x1xf32>
    %868 = math.exp %867 : vector<2x1xf32>
    %cst_231 = arith.constant 1.000000e+00 : f32
    %869 = vector.broadcast %cst_231 : f32 to vector<2x1xf32>
    %870 = arith.addf %869, %868 : vector<2x1xf32>
    %871 = arith.divf %869, %870 : vector<2x1xf32>
    %c0_232 = arith.constant 0 : index
    %c0_233 = arith.constant 0 : index
    %872 = vector.load %arg10[%c0_232, %c0_233] : memref<2x1xf32, #tpu.memory_space<vmem>>, vector<2x1xf32>
    tpu.vector_store %arg10[%c0_232, %c0_233], %871 {strides = array<i32>} : memref<2x1xf32, #tpu.memory_space<vmem>>, vector<2x1xf32>,
    return
  }
}

</mosaic_0001>

<llo_original>
// kernel: lstm_forward.1
$region0: #{lstm_forward.1}
  #allocation0 [shape = 'u32[]', space=smem, size = 0x4, offset = 0x4, fixed_abs, tag = 'smem constant byte address 0x4 - core index']
  #allocation1 [shape = 'u32[72,128]{1,0:T(1,128)}', space=vmem, size = 0x9000, scoped, tag = 'internal scratch']
  #allocation2 [shape = 'f32[240,256]{1,0:T(8,128)}', space=vmem, size = 0x3c000, scoped, tag = 'scratch operand']
  #allocation3 [shape = 'f32[1,1]{1,0:T(1,128)S(1)}', space=vmem, size = 0x200, scoped, tag = 'scoped memory for lstm_forward.1']
  %s0 = inlined_call_operand.vmem [shape: bf16[240,50], index: 0, kind: input, shape index: {}]
  %s1 = inlined_call_operand.vmem [shape: bf16[50,256], index: 1, kind: input, shape index: {}]
  %s2 = inlined_call_operand.vmem [shape: bf16[64,256], index: 2, kind: input, shape index: {}]
  %s3 = inlined_call_operand.vmem [shape: f32[1,256], index: 3, kind: input, shape index: {}]
  %s4 = inlined_call_operand.vmem [shape: f32[128,32], index: 4, kind: input, shape index: {}]
  %s5 = inlined_call_operand.vmem [shape: f32[1,32], index: 5, kind: input, shape index: {}]
  %s6 = inlined_call_operand.vmem [shape: f32[32,32], index: 6, kind: input, shape index: {}]
  %s7 = inlined_call_operand.vmem [shape: f32[1,32], index: 7, kind: input, shape index: {}]
  %s8 = inlined_call_operand.vmem [shape: f32[32,1], index: 8, kind: input, shape index: {}]
  %s9 = inlined_call_operand.<no memory space> [shape: f32[1,1], index: 9, kind: input, shape index: {}]
  %s10 = inlined_call_operand.vmem [shape: f32[2,1], index: 10, kind: output, shape index: {}]
  %s11 = sld [smem:[#allocation0]]
  $region50: #{lstm_forward.1} parent=0
    _
  %s13 = ssub.s32 1, %s11
  %s14 = scalar_select 0, %s13, %s11
  %v15 = vstv %s9
  %16 = vst [vmem:[#allocation3] sm:$0x1] %v15
  // Predicated region
  $region2: #{lstm_forward.1} parent=0 // pred_check
    _
  $region3: #{lstm_forward.1} parent=0 // pred_check_branch
    %18 = sbr.rel (0) target = $region5
  $region4: #{lstm_forward.1} parent=0 // pred_region
    _
  $region5: #{lstm_forward.1} parent=0 // pred_fallthru
    _
  // Predicated region
  $region6: #{lstm_forward.1} parent=0 // pred_check
    _
  $region7: #{lstm_forward.1} parent=0 // pred_check_branch
    %20 = sbr.rel (0) target = $region9
  $region8: #{lstm_forward.1} parent=0 // pred_region
    _
  $region9: #{lstm_forward.1} parent=0 // pred_fallthru
    _
  // Predicated region
  $region10: #{lstm_forward.1} parent=0 // pred_check
    _
  $region11: #{lstm_forward.1} parent=0 // pred_check_branch
    %22 = sbr.rel (0) target = $region13
  $region12: #{lstm_forward.1} parent=0 // pred_region
    _
  $region13: #{lstm_forward.1} parent=0 // pred_fallthru
    _
  // Predicated region
  $region14: #{lstm_forward.1} parent=0 // pred_check
    _
  $region15: #{lstm_forward.1} parent=0 // pred_check_branch
    %24 = sbr.rel (0) target = $region17
  $region16: #{lstm_forward.1} parent=0 // pred_region
    _
  $region17: #{lstm_forward.1} parent=0 // pred_fallthru
    _
  // Predicated region
  $region18: #{lstm_forward.1} parent=0 // pred_check
    _
  $region19: #{lstm_forward.1} parent=0 // pred_check_branch
    %26 = sbr.rel (0) target = $region21
  $region20: #{lstm_forward.1} parent=0 // pred_region
    _
  $region21: #{lstm_forward.1} parent=0 // pred_fallthru
    _
  // Predicated region
  $region22: #{lstm_forward.1} parent=0 // pred_check
    _
  $region23: #{lstm_forward.1} parent=0 // pred_check_branch
    %28 = sbr.rel (0) target = $region25
  $region24: #{lstm_forward.1} parent=0 // pred_region
    _
  $region25: #{lstm_forward.1} parent=0 // pred_fallthru
    _
  // Predicated region
  $region26: #{lstm_forward.1} parent=0 // pred_check
    _
  $region27: #{lstm_forward.1} parent=0 // pred_check_branch
    %30 = sbr.rel (0) target = $region29
  $region28: #{lstm_forward.1} parent=0 // pred_region
    _
  $region29: #{lstm_forward.1} parent=0 // pred_fallthru
    _
  // Predicated region
  $region30: #{lstm_forward.1} parent=0 // pred_check
    _
  $region31: #{lstm_forward.1} parent=0 // pred_check_branch
    %32 = sbr.rel (0) target = $region33
  $region32: #{lstm_forward.1} parent=0 // pred_region
    _
  $region33: #{lstm_forward.1} parent=0 // pred_fallthru
    _
  // Predicated region
  $region34: #{lstm_forward.1} parent=0 // pred_check
    _
  $region35: #{lstm_forward.1} parent=0 // pred_check_branch
    %34 = sbr.rel (0) target = $region37
  $region36: #{lstm_forward.1} parent=0 // pred_region
    _
  $region37: #{lstm_forward.1} parent=0 // pred_fallthru
    _
  // Predicated region
  $region38: #{lstm_forward.1} parent=0 // pred_check
    _
  $region39: #{lstm_forward.1} parent=0 // pred_check_branch
    %36 = sbr.rel (0) target = $region41
  $region40: #{lstm_forward.1} parent=0 // pred_region
    _
  $region41: #{lstm_forward.1} parent=0 // pred_fallthru
    _
  %v38 = vld [vmem:[%s1] sm:$0xff]
  %v39 = vld [vmem:[%s1 + $0x8] sm:$0xff]
  %v40 = vld [vmem:[%s1 + $0x10] sm:$0xff]
  %v41 = vld [vmem:[%s1 + $0x18] sm:$0xff]
  %v42 = vld [vmem:[%s1 + $0x20] sm:$0xff]
  %v43 = vld [vmem:[%s1 + $0x28] sm:$0xff]
  %v44 = vld [vmem:[%s1 + $0x30] sm:$0x11]
  %v45 = vld [vmem:[%s2] sm:$0xff]
  %v46 = vld [vmem:[%s2 + $0x8] sm:$0xff]
  %v47 = vld [vmem:[%s2 + $0x10] sm:$0xff]
  %v48 = vld [vmem:[%s2 + $0x18] sm:$0xff]
  %v49 = vld [vmem:[%s2 + $0x20] sm:$0xff]
  %v50 = vld [vmem:[%s2 + $0x28] sm:$0xff]
  %v51 = vld [vmem:[%s2 + $0x30] sm:$0xff]
  %v52 = vld [vmem:[%s2 + $0x38] sm:$0xff]
  %v53 = vld [vmem:[%s3] sm:$0x3]
  %v54 = vld [vmem:[%s0] sm:$0xf]
  %v55 = vld [vmem:[%s0 + $0x4] sm:$0xf]
  %v56 = vld [vmem:[%s0 + $0x8] sm:$0xf]
  %v57 = vld [vmem:[%s0 + $0xc] sm:$0xf]
  %v58 = vld [vmem:[%s0 + $0x10] sm:$0xf]
  %v59 = vld [vmem:[%s0 + $0x14] sm:$0xf]
  %v61 = vperm.slane %v53, 0
  %v62 = vperm.slane %v53, 1
  %v71 = vunpack.c.l.b16 %v54
  %v72 = vunpack.c.l.b16 %v55
  %v73 = vunpack.c.l.b16 %v56
  %v74 = vunpack.c.l.b16 %v57
  %v75 = vunpack.c.l.b16 %v58
  %v76 = vunpack.c.l.b16 %v59
  %v77 = vpack.c.b16 %v72, %v71
  %v78 = vpack.c.b16 %v74, %v73
  %v79 = vpack.c.b16 %v76, %v75
  %v87 = vunpack.c.l.b16 %v38
  %v88 = vunpack.c.h.b16 %v38
  %v89 = vunpack.c.l.b16 %v39
  %v90 = vunpack.c.h.b16 %v39
  %v91 = vunpack.c.l.b16 %v40
  %v92 = vunpack.c.h.b16 %v40
  %v93 = vunpack.c.l.b16 %v41
  %v94 = vunpack.c.h.b16 %v41
  %v95 = vunpack.c.l.b16 %v42
  %v96 = vunpack.c.h.b16 %v42
  %v97 = vunpack.c.l.b16 %v43
  %v98 = vunpack.c.h.b16 %v43
  %v99 = vunpack.c.l.b16 %v44
  %v100 = vunpack.c.h.b16 %v44
  %v101 = vpack.c.b16 %v89, %v87
  %v102 = vpack.c.b16 %v90, %v88
  %v103 = vpack.c.b16 %v93, %v91
  %v104 = vpack.c.b16 %v94, %v92
  %v105 = vpack.c.b16 %v97, %v95
  %v106 = vpack.c.b16 %v98, %v96
  %v107 = vpack.c.b16 %v99, %v99
  %v108 = vpack.c.b16 %v100, %v100
  %vm115 = vcmask 408576
  %v117 = vsel %vm115, %v77, 0
  %v120 = vsel %vm115, %v78, 0
  %v123 = vsel %vm115, %v79, 0
  %vm125 = vcmask 1040384
  %v127 = vsel %vm125, %v107, 0
  %v130 = vsel %vm125, %v108, 0
  %132 = vmatpush.bf16.msra.mxu0 0
  %133 = vmatpush.bf16.msra.mxu0 0
  %134 = vmatpush.bf16.msra.mxu0 0
  %135 = vmatpush.bf16.msra.mxu0 0
  %136 = vmatpush.bf16.msra.mxu0 %v127
  %137 = vmatpush.bf16.msra.mxu0 %v105
  %138 = vmatpush.bf16.msra.mxu0 %v103
  %139 = vmatpush.bf16.msra.mxu0 %v101
  %140 = vmatmul.bf16.gmra.mxu0 %v117
  %v141 = vpop.f32.mrf.mxu0
  %v142 = vadd.f32 %v61, %v141
  %v143 = vpop.f32.mrf.mxu0
  %v144 = vadd.f32 %v61, %v143
  %145 = vmatmul.bf16.gmra.mxu0 %v120
  %v146 = vpop.f32.mrf.mxu0
  %v147 = vadd.f32 %v61, %v146
  %v148 = vpop.f32.mrf.mxu0
  %v149 = vadd.f32 %v61, %v148
  %150 = vmatmul.bf16.gmra.mxu0 %v123
  %v151 = vpop.f32.mrf.mxu0
  %v152 = vadd.f32 %v61, %v151
  %v153 = vpop.f32.mrf.mxu0
  %v154 = vadd.f32 %v61, %v153
  %155 = vdwg.mxu0
  %156 = vmatpush.bf16.msra.mxu0 0
  %157 = vmatpush.bf16.msra.mxu0 0
  %158 = vmatpush.bf16.msra.mxu0 0
  %159 = vmatpush.bf16.msra.mxu0 0
  %160 = vmatpush.bf16.msra.mxu0 %v130
  %161 = vmatpush.bf16.msra.mxu0 %v106
  %162 = vmatpush.bf16.msra.mxu0 %v104
  %163 = vmatpush.bf16.msra.mxu0 %v102
  %164 = vmatmul.bf16.gmra.mxu0 %v117
  %v165 = vpop.f32.mrf.mxu0
  %v166 = vadd.f32 %v62, %v165
  %v167 = vpop.f32.mrf.mxu0
  %v168 = vadd.f32 %v62, %v167
  %169 = vmatmul.bf16.gmra.mxu0 %v120
  %v170 = vpop.f32.mrf.mxu0
  %v171 = vadd.f32 %v62, %v170
  %v172 = vpop.f32.mrf.mxu0
  %v173 = vadd.f32 %v62, %v172
  %174 = vmatmul.bf16.gmra.mxu0 %v123
  %v175 = vpop.f32.mrf.mxu0
  %v176 = vadd.f32 %v62, %v175
  %v177 = vpop.f32.mrf.mxu0
  %v178 = vadd.f32 %v62, %v177
  %179 = vdwg.mxu0
  %180 = vst [vmem:[#allocation2] sm:$0xff] %v142
  %181 = vst [vmem:[#allocation2 + $0x8] sm:$0xff] %v166
  %182 = vst [vmem:[#allocation2 + $0x10] sm:$0xff] %v144
  %183 = vst [vmem:[#allocation2 + $0x18] sm:$0xff] %v168
  %184 = vst [vmem:[#allocation2 + $0x20] sm:$0xff] %v147
  %185 = vst [vmem:[#allocation2 + $0x28] sm:$0xff] %v171
  %186 = vst [vmem:[#allocation2 + $0x30] sm:$0xff] %v149
  %187 = vst [vmem:[#allocation2 + $0x38] sm:$0xff] %v173
  %188 = vst [vmem:[#allocation2 + $0x40] sm:$0xff] %v152
  %189 = vst [vmem:[#allocation2 + $0x48] sm:$0xff] %v176
  %190 = vst [vmem:[#allocation2 + $0x50] sm:$0xff] %v154
  %191 = vst [vmem:[#allocation2 + $0x58] sm:$0xff] %v178
  %v192 = vlaneseq
  %v193 = vand.u32 %v192, 127
  %vm194 = vcmp.lt.s32.totalorder %v193, 64
  %v195 = vsel %vm194, 1.0, 2.0
  %v196 = vsel %vm194, 0.0, 1.0
  %v197 = vld [vmem:[%s0 + $0x18] sm:$0xf]
  %v198 = vld [vmem:[%s0 + $0x1c] sm:$0xf]
  %v199 = vld [vmem:[%s0 + $0x20] sm:$0xf]
  %v200 = vld [vmem:[%s0 + $0x24] sm:$0xf]
  %v201 = vld [vmem:[%s0 + $0x28] sm:$0xf]
  %v202 = vld [vmem:[%s0 + $0x2c] sm:$0xf]
  %v209 = vunpack.c.l.b16 %v197
  %v210 = vunpack.c.l.b16 %v198
  %v211 = vunpack.c.l.b16 %v199
  %v212 = vunpack.c.l.b16 %v200
  %v213 = vunpack.c.l.b16 %v201
  %v214 = vunpack.c.l.b16 %v202
  %v215 = vpack.c.b16 %v210, %v209
  %v216 = vpack.c.b16 %v212, %v211
  %v217 = vpack.c.b16 %v214, %v213
  %v219 = vsel %vm115, %v215, 0
  %v222 = vsel %vm115, %v216, 0
  %v225 = vsel %vm115, %v217, 0
  %227 = vmatpush.bf16.msra.mxu0 0
  %228 = vmatpush.bf16.msra.mxu0 0
  %229 = vmatpush.bf16.msra.mxu0 0
  %230 = vmatpush.bf16.msra.mxu0 0
  %231 = vmatpush.bf16.msra.mxu0 %v127
  %232 = vmatpush.bf16.msra.mxu0 %v105
  %233 = vmatpush.bf16.msra.mxu0 %v103
  %234 = vmatpush.bf16.msra.mxu0 %v101
  %235 = vmatmul.bf16.gmra.mxu0 %v219
  %v236 = vpop.f32.mrf.mxu0
  %v237 = vadd.f32 %v61, %v236
  %v238 = vpop.f32.mrf.mxu0
  %v239 = vadd.f32 %v61, %v238
  %240 = vmatmul.bf16.gmra.mxu0 %v222
  %v241 = vpop.f32.mrf.mxu0
  %v242 = vadd.f32 %v61, %v241
  %v243 = vpop.f32.mrf.mxu0
  %v244 = vadd.f32 %v61, %v243
  %245 = vmatmul.bf16.gmra.mxu0 %v225
  %v246 = vpop.f32.mrf.mxu0
  %v247 = vadd.f32 %v61, %v246
  %v248 = vpop.f32.mrf.mxu0
  %v249 = vadd.f32 %v61, %v248
  %250 = vdwg.mxu0
  %251 = vmatpush.bf16.msra.mxu0 0
  %252 = vmatpush.bf16.msra.mxu0 0
  %253 = vmatpush.bf16.msra.mxu0 0
  %254 = vmatpush.bf16.msra.mxu0 0
  %255 = vmatpush.bf16.msra.mxu0 %v130
  %256 = vmatpush.bf16.msra.mxu0 %v106
  %257 = vmatpush.bf16.msra.mxu0 %v104
  %258 = vmatpush.bf16.msra.mxu0 %v102
  %259 = vmatmul.bf16.gmra.mxu0 %v219
  %v260 = vpop.f32.mrf.mxu0
  %v261 = vadd.f32 %v62, %v260
  %v262 = vpop.f32.mrf.mxu0
  %v263 = vadd.f32 %v62, %v262
  %264 = vmatmul.bf16.gmra.mxu0 %v222
  %v265 = vpop.f32.mrf.mxu0
  %v266 = vadd.f32 %v62, %v265
  %v267 = vpop.f32.mrf.mxu0
  %v268 = vadd.f32 %v62, %v267
  %269 = vmatmul.bf16.gmra.mxu0 %v225
  %v270 = vpop.f32.mrf.mxu0
  %v271 = vadd.f32 %v62, %v270
  %v272 = vpop.f32.mrf.mxu0
  %v273 = vadd.f32 %v62, %v272
  %274 = vdwg.mxu0
  %275 = vst [vmem:[#allocation2 + $0x60] sm:$0xff] %v237
  %276 = vst [vmem:[#allocation2 + $0x68] sm:$0xff] %v261
  %277 = vst [vmem:[#allocation2 + $0x70] sm:$0xff] %v239
  %278 = vst [vmem:[#allocation2 + $0x78] sm:$0xff] %v263
  %279 = vst [vmem:[#allocation2 + $0x80] sm:$0xff] %v242
  %280 = vst [vmem:[#allocation2 + $0x88] sm:$0xff] %v266
  %281 = vst [vmem:[#allocation2 + $0x90] sm:$0xff] %v244
  %282 = vst [vmem:[#allocation2 + $0x98] sm:$0xff] %v268
  %283 = vst [vmem:[#allocation2 + $0xa0] sm:$0xff] %v247
  %284 = vst [vmem:[#allocation2 + $0xa8] sm:$0xff] %v271
  %285 = vst [vmem:[#allocation2 + $0xb0] sm:$0xff] %v249
  %286 = vst [vmem:[#allocation2 + $0xb8] sm:$0xff] %v273
  %v287 = vld [vmem:[#allocation2] sm:$0xff]
  %v288 = vld [vmem:[#allocation2 + $0x8] sm:$0xff]
  %v289 = vxor.u32 %v287, 2147483648
  %v290 = vmul.f32 %v289, 1.442695
  %v291 = vpow.pop %v290
  %v292 = vadd.f32 %v291, 1.0
  %v293 = vrcp.pop %v292
  %v294 = vmul.f32 %v292, %v293
  %v295 = vsub.f32 1.0, %v294
  %v296 = vmul.f32 %v293, %v295
  %v297 = vadd.f32 %v293, %v296
  %vm298 = vweird.f32 %v292
  %vm299 = vweird.f32 %v293
  %vm300 = vmor %vm298, %vm299
  %v301 = vsel %vm300, %v293, %v297
  %v302 = vand.u32 2147483647, %v292
  %vm303 = vcmp.eq.f32.partialorder %v302, 8.507059e+37
  %v304 = vand.u32 %v292, 2147483648
  %v305 = vor.u32 1.1754944e-38, %v304
  %v306 = vsel %vm303, %v305, %v301
  %v307 = vmul.f32 1.0, %v306
  %v308 = vmul.f32 %v288, %v195
  %v309 = vxor.u32 %v308, 2147483648
  %v310 = vmul.f32 %v309, 1.442695
  %v311 = vpow.pop %v310
  %v312 = vadd.f32 %v311, 1.0
  %v313 = vrcp.pop %v312
  %v314 = vmul.f32 %v312, %v313
  %v315 = vsub.f32 1.0, %v314
  %v316 = vmul.f32 %v313, %v315
  %v317 = vadd.f32 %v313, %v316
  %vm318 = vweird.f32 %v312
  %vm319 = vweird.f32 %v313
  %vm320 = vmor %vm318, %vm319
  %v321 = vsel %vm320, %v313, %v317
  %v322 = vand.u32 2147483647, %v312
  %vm323 = vcmp.eq.f32.partialorder %v322, 8.507059e+37
  %v324 = vand.u32 %v312, 2147483648
  %v325 = vor.u32 1.1754944e-38, %v324
  %v326 = vsel %vm323, %v325, %v321
  %v327 = vmul.f32 1.0, %v326
  %v328 = vmul.f32 %v327, %v195
  %v329 = vsub.f32 %v328, %v196
  %v330 = vsel %vm194, 0.0, %v329
  %331 = vrot.lane.b32.xlu0 %v307, 64
  %v332 = vpop.permute.xlu0 %331
  %v333 = vmul.f32 %v332, %v330
  %334 = vrot.lane.b32.xlu0 %v333, 64
  %v335 = vpop.permute.xlu0 %334
  %v336 = vadd.f32 %v333, %v335
  %v337 = vtanh.pop %v336
  %v338 = vmul.f32 %v329, %v337
  %v339 = vld [vmem:[%s0 + $0x30] sm:$0xf]
  %v340 = vld [vmem:[%s0 + $0x34] sm:$0xf]
  %v341 = vld [vmem:[%s0 + $0x38] sm:$0xf]
  %v342 = vld [vmem:[%s0 + $0x3c] sm:$0xf]
  %v343 = vld [vmem:[%s0 + $0x40] sm:$0xf]
  %v344 = vld [vmem:[%s0 + $0x44] sm:$0xf]
  %v351 = vunpack.c.l.b16 %v339
  %v352 = vunpack.c.l.b16 %v340
  %v353 = vunpack.c.l.b16 %v341
  %v354 = vunpack.c.l.b16 %v342
  %v355 = vunpack.c.l.b16 %v343
  %v356 = vunpack.c.l.b16 %v344
  %v357 = vpack.c.b16 %v352, %v351
  %v358 = vpack.c.b16 %v354, %v353
  %v359 = vpack.c.b16 %v356, %v355
  %v361 = vsel %vm115, %v357, 0
  %v364 = vsel %vm115, %v358, 0
  %v367 = vsel %vm115, %v359, 0
  %369 = vmatpush.bf16.msra.mxu0 0
  %370 = vmatpush.bf16.msra.mxu0 0
  %371 = vmatpush.bf16.msra.mxu0 0
  %372 = vmatpush.bf16.msra.mxu0 0
  %373 = vmatpush.bf16.msra.mxu0 %v127
  %374 = vmatpush.bf16.msra.mxu0 %v105
  %375 = vmatpush.bf16.msra.mxu0 %v103
  %376 = vmatpush.bf16.msra.mxu0 %v101
  %377 = vmatmul.bf16.gmra.mxu0 %v361
  %v378 = vpop.f32.mrf.mxu0
  %v379 = vadd.f32 %v61, %v378
  %v380 = vpop.f32.mrf.mxu0
  %v381 = vadd.f32 %v61, %v380
  %382 = vmatmul.bf16.gmra.mxu0 %v364
  %v383 = vpop.f32.mrf.mxu0
  %v384 = vadd.f32 %v61, %v383
  %v385 = vpop.f32.mrf.mxu0
  %v386 = vadd.f32 %v61, %v385
  %387 = vmatmul.bf16.gmra.mxu0 %v367
  %v388 = vpop.f32.mrf.mxu0
  %v389 = vadd.f32 %v61, %v388
  %v390 = vpop.f32.mrf.mxu0
  %v391 = vadd.f32 %v61, %v390
  %392 = vdwg.mxu0
  %393 = vmatpush.bf16.msra.mxu0 0
  %394 = vmatpush.bf16.msra.mxu0 0
  %395 = vmatpush.bf16.msra.mxu0 0
  %396 = vmatpush.bf16.msra.mxu0 0
  %397 = vmatpush.bf16.msra.mxu0 %v130
  %398 = vmatpush.bf16.msra.mxu0 %v106
  %399 = vmatpush.bf16.msra.mxu0 %v104
  %400 = vmatpush.bf16.msra.mxu0 %v102
  %401 = vmatmul.bf16.gmra.mxu0 %v361
  %v402 = vpop.f32.mrf.mxu0
  %v403 = vadd.f32 %v62, %v402
  %v404 = vpop.f32.mrf.mxu0
  %v405 = vadd.f32 %v62, %v404
  %406 = vmatmul.bf16.gmra.mxu0 %v364
  %v407 = vpop.f32.mrf.mxu0
  %v408 = vadd.f32 %v62, %v407
  %v409 = vpop.f32.mrf.mxu0
  %v410 = vadd.f32 %v62, %v409
  %411 = vmatmul.bf16.gmra.mxu0 %v367
  %v412 = vpop.f32.mrf.mxu0
  %v413 = vadd.f32 %v62, %v412
  %v414 = vpop.f32.mrf.mxu0
  %v415 = vadd.f32 %v62, %v414
  %416 = vdwg.mxu0
  %417 = vst [vmem:[#allocation2 + $0xc0] sm:$0xff] %v379
  %418 = vst [vmem:[#allocation2 + $0xc8] sm:$0xff] %v403
  %419 = vst [vmem:[#allocation2 + $0xd0] sm:$0xff] %v381
  %420 = vst [vmem:[#allocation2 + $0xd8] sm:$0xff] %v405
  %421 = vst [vmem:[#allocation2 + $0xe0] sm:$0xff] %v384
  %422 = vst [vmem:[#allocation2 + $0xe8] sm:$0xff] %v408
  %423 = vst [vmem:[#allocation2 + $0xf0] sm:$0xff] %v386
  %424 = vst [vmem:[#allocation2 + $0xf8] sm:$0xff] %v410
  %425 = vst [vmem:[#allocation2 + $0x100] sm:$0xff] %v389
  %426 = vst [vmem:[#allocation2 + $0x108] sm:$0xff] %v413
  %427 = vst [vmem:[#allocation2 + $0x110] sm:$0xff] %v391
  %428 = vst [vmem:[#allocation2 + $0x118] sm:$0xff] %v415
  %v429 = vld [vmem:[#allocation2 + $0x10] sm:$0xff]
  %v430 = vld [vmem:[#allocation2 + $0x18] sm:$0xff]
  %v431 = vpack.c.bf16 %v338, %v338
  %v440 = vunpack.c.l.b16 %v45
  %v441 = vunpack.c.h.b16 %v45
  %v442 = vunpack.c.l.b16 %v46
  %v443 = vunpack.c.h.b16 %v46
  %v444 = vunpack.c.l.b16 %v47
  %v445 = vunpack.c.h.b16 %v47
  %v446 = vunpack.c.l.b16 %v48
  %v447 = vunpack.c.h.b16 %v48
  %v448 = vunpack.c.l.b16 %v49
  %v449 = vunpack.c.h.b16 %v49
  %v450 = vunpack.c.l.b16 %v50
  %v451 = vunpack.c.h.b16 %v50
  %v452 = vunpack.c.l.b16 %v51
  %v453 = vunpack.c.h.b16 %v51
  %v454 = vunpack.c.l.b16 %v52
  %v455 = vunpack.c.h.b16 %v52
  %v456 = vpack.c.b16 %v442, %v440
  %v457 = vpack.c.b16 %v443, %v441
  %v458 = vpack.c.b16 %v446, %v444
  %v459 = vpack.c.b16 %v447, %v445
  %v460 = vpack.c.b16 %v450, %v448
  %v461 = vpack.c.b16 %v451, %v449
  %v462 = vpack.c.b16 %v454, %v452
  %v463 = vpack.c.b16 %v455, %v453
  %vm472 = vcmask 523264
  %v474 = vsel %vm472, %v431, 0
  %476 = vmatpush.bf16.msra.mxu0 0
  %477 = vmatpush.bf16.msra.mxu0 0
  %478 = vmatpush.bf16.msra.mxu0 0
  %479 = vmatpush.bf16.msra.mxu0 0
  %480 = vmatpush.bf16.msra.mxu0 %v462
  %481 = vmatpush.bf16.msra.mxu0 %v460
  %482 = vmatpush.bf16.msra.mxu0 %v458
  %483 = vmatpush.bf16.msra.mxu0 %v456
  %484 = vmatmul.bf16.gmra.mxu0 %v474
  %v485 = vpop.f32.mrf.mxu0
  %v486 = vadd.f32 %v429, %v485
  %v487 = vpop.f32.mrf.mxu0
  %488 = vdwg.mxu0
  %489 = vmatpush.bf16.msra.mxu0 0
  %490 = vmatpush.bf16.msra.mxu0 0
  %491 = vmatpush.bf16.msra.mxu0 0
  %492 = vmatpush.bf16.msra.mxu0 0
  %493 = vmatpush.bf16.msra.mxu0 %v463
  %494 = vmatpush.bf16.msra.mxu0 %v461
  %495 = vmatpush.bf16.msra.mxu0 %v459
  %496 = vmatpush.bf16.msra.mxu0 %v457
  %497 = vmatmul.bf16.gmra.mxu0 %v474
  %v498 = vpop.f32.mrf.mxu0
  %v499 = vadd.f32 %v430, %v498
  %v500 = vpop.f32.mrf.mxu0
  %501 = vdwg.mxu0
  %v502 = vxor.u32 %v486, 2147483648
  %v503 = vmul.f32 %v502, 1.442695
  %v504 = vpow.pop %v503
  %v505 = vadd.f32 %v504, 1.0
  %v506 = vrcp.pop %v505
  %v507 = vmul.f32 %v505, %v506
  %v508 = vsub.f32 1.0, %v507
  %v509 = vmul.f32 %v506, %v508
  %v510 = vadd.f32 %v506, %v509
  %vm511 = vweird.f32 %v505
  %vm512 = vweird.f32 %v506
  %vm513 = vmor %vm511, %vm512
  %v514 = vsel %vm513, %v506, %v510
  %v515 = vand.u32 2147483647, %v505
  %vm516 = vcmp.eq.f32.partialorder %v515, 8.507059e+37
  %v517 = vand.u32 %v505, 2147483648
  %v518 = vor.u32 1.1754944e-38, %v517
  %v519 = vsel %vm516, %v518, %v514
  %v520 = vmul.f32 1.0, %v519
  %v521 = vmul.f32 %v499, %v195
  %v522 = vxor.u32 %v521, 2147483648
  %v523 = vmul.f32 %v522, 1.442695
  %v524 = vpow.pop %v523
  %v525 = vadd.f32 %v524, 1.0
  %v526 = vrcp.pop %v525
  %v527 = vmul.f32 %v525, %v526
  %v528 = vsub.f32 1.0, %v527
  %v529 = vmul.f32 %v526, %v528
  %v530 = vadd.f32 %v526, %v529
  %vm531 = vweird.f32 %v525
  %vm532 = vweird.f32 %v526
  %vm533 = vmor %vm531, %vm532
  %v534 = vsel %vm533, %v526, %v530
  %v535 = vand.u32 2147483647, %v525
  %vm536 = vcmp.eq.f32.partialorder %v535, 8.507059e+37
  %v537 = vand.u32 %v525, 2147483648
  %v538 = vor.u32 1.1754944e-38, %v537
  %v539 = vsel %vm536, %v538, %v534
  %v540 = vmul.f32 1.0, %v539
  %v541 = vmul.f32 %v540, %v195
  %v542 = vsub.f32 %v541, %v196
  %v543 = vsel %vm194, %v336, %v542
  %544 = vrot.lane.b32.xlu0 %v520, 64
  %v545 = vpop.permute.xlu0 %544
  %v546 = vmul.f32 %v545, %v543
  %547 = vrot.lane.b32.xlu0 %v546, 64
  %v548 = vpop.permute.xlu0 %547
  %v549 = vadd.f32 %v546, %v548
  %v550 = vtanh.pop %v549
  %v551 = vmul.f32 %v542, %v550
  %v552 = vld [vmem:[%s0 + $0x48] sm:$0xf]
  %v553 = vld [vmem:[%s0 + $0x4c] sm:$0xf]
  %v554 = vld [vmem:[%s0 + $0x50] sm:$0xf]
  %v555 = vld [vmem:[%s0 + $0x54] sm:$0xf]
  %v556 = vld [vmem:[%s0 + $0x58] sm:$0xf]
  %v557 = vld [vmem:[%s0 + $0x5c] sm:$0xf]
  %v564 = vunpack.c.l.b16 %v552
  %v565 = vunpack.c.l.b16 %v553
  %v566 = vunpack.c.l.b16 %v554
  %v567 = vunpack.c.l.b16 %v555
  %v568 = vunpack.c.l.b16 %v556
  %v569 = vunpack.c.l.b16 %v557
  %v570 = vpack.c.b16 %v565, %v564
  %v571 = vpack.c.b16 %v567, %v566
  %v572 = vpack.c.b16 %v569, %v568
  %v574 = vsel %vm115, %v570, 0
  %v577 = vsel %vm115, %v571, 0
  %v580 = vsel %vm115, %v572, 0
  %582 = vmatpush.bf16.msra.mxu0 0
  %583 = vmatpush.bf16.msra.mxu0 0
  %584 = vmatpush.bf16.msra.mxu0 0
  %585 = vmatpush.bf16.msra.mxu0 0
  %586 = vmatpush.bf16.msra.mxu0 %v127
  %587 = vmatpush.bf16.msra.mxu0 %v105
  %588 = vmatpush.bf16.msra.mxu0 %v103
  %589 = vmatpush.bf16.msra.mxu0 %v101
  %590 = vmatmul.bf16.gmra.mxu0 %v574
  %v591 = vpop.f32.mrf.mxu0
  %v592 = vadd.f32 %v61, %v591
  %v593 = vpop.f32.mrf.mxu0
  %v594 = vadd.f32 %v61, %v593
  %595 = vmatmul.bf16.gmra.mxu0 %v577
  %v596 = vpop.f32.mrf.mxu0
  %v597 = vadd.f32 %v61, %v596
  %v598 = vpop.f32.mrf.mxu0
  %v599 = vadd.f32 %v61, %v598
  %600 = vmatmul.bf16.gmra.mxu0 %v580
  %v601 = vpop.f32.mrf.mxu0
  %v602 = vadd.f32 %v61, %v601
  %v603 = vpop.f32.mrf.mxu0
  %v604 = vadd.f32 %v61, %v603
  %605 = vdwg.mxu0
  %606 = vmatpush.bf16.msra.mxu0 0
  %607 = vmatpush.bf16.msra.mxu0 0
  %608 = vmatpush.bf16.msra.mxu0 0
  %609 = vmatpush.bf16.msra.mxu0 0
  %610 = vmatpush.bf16.msra.mxu0 %v130
  %611 = vmatpush.bf16.msra.mxu0 %v106
  %612 = vmatpush.bf16.msra.mxu0 %v104
  %613 = vmatpush.bf16.msra.mxu0 %v102
  %614 = vmatmul.bf16.gmra.mxu0 %v574
  %v615 = vpop.f32.mrf.mxu0
  %v616 = vadd.f32 %v62, %v615
  %v617 = vpop.f32.mrf.mxu0
  %v618 = vadd.f32 %v62, %v617
  %619 = vmatmul.bf16.gmra.mxu0 %v577
  %v620 = vpop.f32.mrf.mxu0
  %v621 = vadd.f32 %v62, %v620
  %v622 = vpop.f32.mrf.mxu0
  %v623 = vadd.f32 %v62, %v622
  %624 = vmatmul.bf16.gmra.mxu0 %v580
  %v625 = vpop.f32.mrf.mxu0
  %v626 = vadd.f32 %v62, %v625
  %v627 = vpop.f32.mrf.mxu0
  %v628 = vadd.f32 %v62, %v627
  %629 = vdwg.mxu0
  %630 = vst [vmem:[#allocation2 + $0x120] sm:$0xff] %v592
  %631 = vst [vmem:[#allocation2 + $0x128] sm:$0xff] %v616
  %632 = vst [vmem:[#allocation2 + $0x130] sm:$0xff] %v594
  %633 = vst [vmem:[#allocation2 + $0x138] sm:$0xff] %v618
  %634 = vst [vmem:[#allocation2 + $0x140] sm:$0xff] %v597
  %635 = vst [vmem:[#allocation2 + $0x148] sm:$0xff] %v621
  %636 = vst [vmem:[#allocation2 + $0x150] sm:$0xff] %v599
  %637 = vst [vmem:[#allocation2 + $0x158] sm:$0xff] %v623
  %638 = vst [vmem:[#allocation2 + $0x160] sm:$0xff] %v602
  %639 = vst [vmem:[#allocation2 + $0x168] sm:$0xff] %v626
  %640 = vst [vmem:[#allocation2 + $0x170] sm:$0xff] %v604
  %641 = vst [vmem:[#allocation2 + $0x178] sm:$0xff] %v628
  %v642 = vld [vmem:[#allocation2 + $0x20] sm:$0xff]
  %v643 = vld [vmem:[#allocation2 + $0x28] sm:$0xff]
  %v644 = vpack.c.bf16 %v551, %v551
  %v646 = vsel %vm472, %v644, 0
  %648 = vmatpush.bf16.msra.mxu0 0
  %649 = vmatpush.bf16.msra.mxu0 0
  %650 = vmatpush.bf16.msra.mxu0 0
  %651 = vmatpush.bf16.msra.mxu0 0
  %652 = vmatpush.bf16.msra.mxu0 %v462
  %653 = vmatpush.bf16.msra.mxu0 %v460
  %654 = vmatpush.bf16.msra.mxu0 %v458
  %655 = vmatpush.bf16.msra.mxu0 %v456
  %656 = vmatmul.bf16.gmra.mxu0 %v646
  %v657 = vpop.f32.mrf.mxu0
  %v658 = vadd.f32 %v642, %v657
  %v659 = vpop.f32.mrf.mxu0
  %660 = vdwg.mxu0
  %661 = vmatpush.bf16.msra.mxu0 0
  %662 = vmatpush.bf16.msra.mxu0 0
  %663 = vmatpush.bf16.msra.mxu0 0
  %664 = vmatpush.bf16.msra.mxu0 0
  %665 = vmatpush.bf16.msra.mxu0 %v463
  %666 = vmatpush.bf16.msra.mxu0 %v461
  %667 = vmatpush.bf16.msra.mxu0 %v459
  %668 = vmatpush.bf16.msra.mxu0 %v457
  %669 = vmatmul.bf16.gmra.mxu0 %v646
  %v670 = vpop.f32.mrf.mxu0
  %v671 = vadd.f32 %v643, %v670
  %v672 = vpop.f32.mrf.mxu0
  %673 = vdwg.mxu0
  %v674 = vxor.u32 %v658, 2147483648
  %v675 = vmul.f32 %v674, 1.442695
  %v676 = vpow.pop %v675
  %v677 = vadd.f32 %v676, 1.0
  %v678 = vrcp.pop %v677
  %v679 = vmul.f32 %v677, %v678
  %v680 = vsub.f32 1.0, %v679
  %v681 = vmul.f32 %v678, %v680
  %v682 = vadd.f32 %v678, %v681
  %vm683 = vweird.f32 %v677
  %vm684 = vweird.f32 %v678
  %vm685 = vmor %vm683, %vm684
  %v686 = vsel %vm685, %v678, %v682
  %v687 = vand.u32 2147483647, %v677
  %vm688 = vcmp.eq.f32.partialorder %v687, 8.507059e+37
  %v689 = vand.u32 %v677, 2147483648
  %v690 = vor.u32 1.1754944e-38, %v689
  %v691 = vsel %vm688, %v690, %v686
  %v692 = vmul.f32 1.0, %v691
  %v693 = vmul.f32 %v671, %v195
  %v694 = vxor.u32 %v693, 2147483648
  %v695 = vmul.f32 %v694, 1.442695
  %v696 = vpow.pop %v695
  %v697 = vadd.f32 %v696, 1.0
  %v698 = vrcp.pop %v697
  %v699 = vmul.f32 %v697, %v698
  %v700 = vsub.f32 1.0, %v699
  %v701 = vmul.f32 %v698, %v700
  %v702 = vadd.f32 %v698, %v701
  %vm703 = vweird.f32 %v697
  %vm704 = vweird.f32 %v698
  %vm705 = vmor %vm703, %vm704
  %v706 = vsel %vm705, %v698, %v702
  %v707 = vand.u32 2147483647, %v697
  %vm708 = vcmp.eq.f32.partialorder %v707, 8.507059e+37
  %v709 = vand.u32 %v697, 2147483648
  %v710 = vor.u32 1.1754944e-38, %v709
  %v711 = vsel %vm708, %v710, %v706
  %v712 = vmul.f32 1.0, %v711
  %v713 = vmul.f32 %v712, %v195
  %v714 = vsub.f32 %v713, %v196
  %v715 = vsel %vm194, %v549, %v714
  %716 = vrot.lane.b32.xlu0 %v692, 64
  %v717 = vpop.permute.xlu0 %716
  %v718 = vmul.f32 %v717, %v715
  %719 = vrot.lane.b32.xlu0 %v718, 64
  %v720 = vpop.permute.xlu0 %719
  %v721 = vadd.f32 %v718, %v720
  %v722 = vtanh.pop %v721
  %v723 = vmul.f32 %v714, %v722
  %v724 = vld [vmem:[%s0 + $0x60] sm:$0xf]
  %v725 = vld [vmem:[%s0 + $0x64] sm:$0xf]
  %v726 = vld [vmem:[%s0 + $0x68] sm:$0xf]
  %v727 = vld [vmem:[%s0 + $0x6c] sm:$0xf]
  %v728 = vld [vmem:[%s0 + $0x70] sm:$0xf]
  %v729 = vld [vmem:[%s0 + $0x74] sm:$0xf]
  %v736 = vunpack.c.l.b16 %v724
  %v737 = vunpack.c.l.b16 %v725
  %v738 = vunpack.c.l.b16 %v726
  %v739 = vunpack.c.l.b16 %v727
  %v740 = vunpack.c.l.b16 %v728
  %v741 = vunpack.c.l.b16 %v729
  %v742 = vpack.c.b16 %v737, %v736
  %v743 = vpack.c.b16 %v739, %v738
  %v744 = vpack.c.b16 %v741, %v740
  %v746 = vsel %vm115, %v742, 0
  %v749 = vsel %vm115, %v743, 0
  %v752 = vsel %vm115, %v744, 0
  %754 = vmatpush.bf16.msra.mxu0 0
  %755 = vmatpush.bf16.msra.mxu0 0
  %756 = vmatpush.bf16.msra.mxu0 0
  %757 = vmatpush.bf16.msra.mxu0 0
  %758 = vmatpush.bf16.msra.mxu0 %v127
  %759 = vmatpush.bf16.msra.mxu0 %v105
  %760 = vmatpush.bf16.msra.mxu0 %v103
  %761 = vmatpush.bf16.msra.mxu0 %v101
  %762 = vmatmul.bf16.gmra.mxu0 %v746
  %v763 = vpop.f32.mrf.mxu0
  %v764 = vadd.f32 %v61, %v763
  %v765 = vpop.f32.mrf.mxu0
  %v766 = vadd.f32 %v61, %v765
  %767 = vmatmul.bf16.gmra.mxu0 %v749
  %v768 = vpop.f32.mrf.mxu0
  %v769 = vadd.f32 %v61, %v768
  %v770 = vpop.f32.mrf.mxu0
  %v771 = vadd.f32 %v61, %v770
  %772 = vmatmul.bf16.gmra.mxu0 %v752
  %v773 = vpop.f32.mrf.mxu0
  %v774 = vadd.f32 %v61, %v773
  %v775 = vpop.f32.mrf.mxu0
  %v776 = vadd.f32 %v61, %v775
  %777 = vdwg.mxu0
  %778 = vmatpush.bf16.msra.mxu0 0
  %779 = vmatpush.bf16.msra.mxu0 0
  %780 = vmatpush.bf16.msra.mxu0 0
  %781 = vmatpush.bf16.msra.mxu0 0
  %782 = vmatpush.bf16.msra.mxu0 %v130
  %783 = vmatpush.bf16.msra.mxu0 %v106
  %784 = vmatpush.bf16.msra.mxu0 %v104
  %785 = vmatpush.bf16.msra.mxu0 %v102
  %786 = vmatmul.bf16.gmra.mxu0 %v746
  %v787 = vpop.f32.mrf.mxu0
  %v788 = vadd.f32 %v62, %v787
  %v789 = vpop.f32.mrf.mxu0
  %v790 = vadd.f32 %v62, %v789
  %791 = vmatmul.bf16.gmra.mxu0 %v749
  %v792 = vpop.f32.mrf.mxu0
  %v793 = vadd.f32 %v62, %v792
  %v794 = vpop.f32.mrf.mxu0
  %v795 = vadd.f32 %v62, %v794
  %796 = vmatmul.bf16.gmra.mxu0 %v752
  %v797 = vpop.f32.mrf.mxu0
  %v798 = vadd.f32 %v62, %v797
  %v799 = vpop.f32.mrf.mxu0
  %v800 = vadd.f32 %v62, %v799
  %801 = vdwg.mxu0
  %802 = vst [vmem:[#allocation2 + $0x180] sm:$0xff] %v764
  %803 = vst [vmem:[#allocation2 + $0x188] sm:$0xff] %v788
  %804 = vst [vmem:[#allocation2 + $0x190] sm:$0xff] %v766
  %805 = vst [vmem:[#allocation2 + $0x198] sm:$0xff] %v790
  %806 = vst [vmem:[#allocation2 + $0x1a0] sm:$0xff] %v769
  %807 = vst [vmem:[#allocation2 + $0x1a8] sm:$0xff] %v793
  %808 = vst [vmem:[#allocation2 + $0x1b0] sm:$0xff] %v771
  %809 = vst [vmem:[#allocation2 + $0x1b8] sm:$0xff] %v795
  %810 = vst [vmem:[#allocation2 + $0x1c0] sm:$0xff] %v774
  %811 = vst [vmem:[#allocation2 + $0x1c8] sm:$0xff] %v798
  %812 = vst [vmem:[#allocation2 + $0x1d0] sm:$0xff] %v776
  %813 = vst [vmem:[#allocation2 + $0x1d8] sm:$0xff] %v800
  %v814 = vld [vmem:[#allocation2 + $0x30] sm:$0xff]
  %v815 = vld [vmem:[#allocation2 + $0x38] sm:$0xff]
  %v816 = vpack.c.bf16 %v723, %v723
  %v818 = vsel %vm472, %v816, 0
  %820 = vmatpush.bf16.msra.mxu0 0
  %821 = vmatpush.bf16.msra.mxu0 0
  %822 = vmatpush.bf16.msra.mxu0 0
  %823 = vmatpush.bf16.msra.mxu0 0
  %824 = vmatpush.bf16.msra.mxu0 %v462
  %825 = vmatpush.bf16.msra.mxu0 %v460
  %826 = vmatpush.bf16.msra.mxu0 %v458
  %827 = vmatpush.bf16.msra.mxu0 %v456
  %828 = vmatmul.bf16.gmra.mxu0 %v818
  %v829 = vpop.f32.mrf.mxu0
  %v830 = vadd.f32 %v814, %v829
  %v831 = vpop.f32.mrf.mxu0
  %832 = vdwg.mxu0
  %833 = vmatpush.bf16.msra.mxu0 0
  %834 = vmatpush.bf16.msra.mxu0 0
  %835 = vmatpush.bf16.msra.mxu0 0
  %836 = vmatpush.bf16.msra.mxu0 0
  %837 = vmatpush.bf16.msra.mxu0 %v463
  %838 = vmatpush.bf16.msra.mxu0 %v461
  %839 = vmatpush.bf16.msra.mxu0 %v459
  %840 = vmatpush.bf16.msra.mxu0 %v457
  %841 = vmatmul.bf16.gmra.mxu0 %v818
  %v842 = vpop.f32.mrf.mxu0
  %v843 = vadd.f32 %v815, %v842
  %v844 = vpop.f32.mrf.mxu0
  %845 = vdwg.mxu0
  %v846 = vxor.u32 %v830, 2147483648
  %v847 = vmul.f32 %v846, 1.442695
  %v848 = vpow.pop %v847
  %v849 = vadd.f32 %v848, 1.0
  %v850 = vrcp.pop %v849
  %v851 = vmul.f32 %v849, %v850
  %v852 = vsub.f32 1.0, %v851
  %v853 = vmul.f32 %v850, %v852
  %v854 = vadd.f32 %v850, %v853
  %vm855 = vweird.f32 %v849
  %vm856 = vweird.f32 %v850
  %vm857 = vmor %vm855, %vm856
  %v858 = vsel %vm857, %v850, %v854
  %v859 = vand.u32 2147483647, %v849
  %vm860 = vcmp.eq.f32.partialorder %v859, 8.507059e+37
  %v861 = vand.u32 %v849, 2147483648
  %v862 = vor.u32 1.1754944e-38, %v861
  %v863 = vsel %vm860, %v862, %v858
  %v864 = vmul.f32 1.0, %v863
  %v865 = vmul.f32 %v843, %v195
  %v866 = vxor.u32 %v865, 2147483648
  %v867 = vmul.f32 %v866, 1.442695
  %v868 = vpow.pop %v867
  %v869 = vadd.f32 %v868, 1.0
  %v870 = vrcp.pop %v869
  %v871 = vmul.f32 %v869, %v870
  %v872 = vsub.f32 1.0, %v871
  %v873 = vmul.f32 %v870, %v872
  %v874 = vadd.f32 %v870, %v873
  %vm875 = vweird.f32 %v869
  %vm876 = vweird.f32 %v870
  %vm877 = vmor %vm875, %vm876
  %v878 = vsel %vm877, %v870, %v874
  %v879 = vand.u32 2147483647, %v869
  %vm880 = vcmp.eq.f32.partialorder %v879, 8.507059e+37
  %v881 = vand.u32 %v869, 2147483648
  %v882 = vor.u32 1.1754944e-38, %v881
  %v883 = vsel %vm880, %v882, %v878
  %v884 = vmul.f32 1.0, %v883
  %v885 = vmul.f32 %v884, %v195
  %v886 = vsub.f32 %v885, %v196
  %v887 = vsel %vm194, %v721, %v886
  %888 = vrot.lane.b32.xlu0 %v864, 64
  %v889 = vpop.permute.xlu0 %888
  %v890 = vmul.f32 %v889, %v887
  %891 = vrot.lane.b32.xlu0 %v890, 64
  %v892 = vpop.permute.xlu0 %891
  %v893 = vadd.f32 %v890, %v892
  %v894 = vtanh.pop %v893
  %v895 = vmul.f32 %v886, %v894
  %v896 = vld [vmem:[#allocation2 + $0x40] sm:$0xff]
  %v897 = vld [vmem:[#allocation2 + $0x48] sm:$0xff]
  %v898 = vpack.c.bf16 %v895, %v895
  %v900 = vsel %vm472, %v898, 0
  %902 = vmatpush.bf16.msra.mxu0 0
  %903 = vmatpush.bf16.msra.mxu0 0
  %904 = vmatpush.bf16.msra.mxu0 0
  %905 = vmatpush.bf16.msra.mxu0 0
  %906 = vmatpush.bf16.msra.mxu0 %v462
  %907 = vmatpush.bf16.msra.mxu0 %v460
  %908 = vmatpush.bf16.msra.mxu0 %v458
  %909 = vmatpush.bf16.msra.mxu0 %v456
  %910 = vmatmul.bf16.gmra.mxu0 %v900
  %v911 = vpop.f32.mrf.mxu0
  %v912 = vadd.f32 %v896, %v911
  %v913 = vpop.f32.mrf.mxu0
  %914 = vdwg.mxu0
  %915 = vmatpush.bf16.msra.mxu0 0
  %916 = vmatpush.bf16.msra.mxu0 0
  %917 = vmatpush.bf16.msra.mxu0 0
  %918 = vmatpush.bf16.msra.mxu0 0
  %919 = vmatpush.bf16.msra.mxu0 %v463
  %920 = vmatpush.bf16.msra.mxu0 %v461
  %921 = vmatpush.bf16.msra.mxu0 %v459
  %922 = vmatpush.bf16.msra.mxu0 %v457
  %923 = vmatmul.bf16.gmra.mxu0 %v900
  %v924 = vpop.f32.mrf.mxu0
  %v925 = vadd.f32 %v897, %v924
  %v926 = vpop.f32.mrf.mxu0
  %927 = vdwg.mxu0
  %v928 = vxor.u32 %v912, 2147483648
  %v929 = vmul.f32 %v928, 1.442695
  %v930 = vpow.pop %v929
  %v931 = vadd.f32 %v930, 1.0
  %v932 = vrcp.pop %v931
  %v933 = vmul.f32 %v931, %v932
  %v934 = vsub.f32 1.0, %v933
  %v935 = vmul.f32 %v932, %v934
  %v936 = vadd.f32 %v932, %v935
  %vm937 = vweird.f32 %v931
  %vm938 = vweird.f32 %v932
  %vm939 = vmor %vm937, %vm938
  %v940 = vsel %vm939, %v932, %v936
  %v941 = vand.u32 2147483647, %v931
  %vm942 = vcmp.eq.f32.partialorder %v941, 8.507059e+37
  %v943 = vand.u32 %v931, 2147483648
  %v944 = vor.u32 1.1754944e-38, %v943
  %v945 = vsel %vm942, %v944, %v940
  %v946 = vmul.f32 1.0, %v945
  %v947 = vmul.f32 %v925, %v195
  %v948 = vxor.u32 %v947, 2147483648
  %v949 = vmul.f32 %v948, 1.442695
  %v950 = vpow.pop %v949
  %v951 = vadd.f32 %v950, 1.0
  %v952 = vrcp.pop %v951
  %v953 = vmul.f32 %v951, %v952
  %v954 = vsub.f32 1.0, %v953
  %v955 = vmul.f32 %v952, %v954
  %v956 = vadd.f32 %v952, %v955
  %vm957 = vweird.f32 %v951
  %vm958 = vweird.f32 %v952
  %vm959 = vmor %vm957, %vm958
  %v960 = vsel %vm959, %v952, %v956
  %v961 = vand.u32 2147483647, %v951
  %vm962 = vcmp.eq.f32.partialorder %v961, 8.507059e+37
  %v963 = vand.u32 %v951, 2147483648
  %v964 = vor.u32 1.1754944e-38, %v963
  %v965 = vsel %vm962, %v964, %v960
  %v966 = vmul.f32 1.0, %v965
  %v967 = vmul.f32 %v966, %v195
  %v968 = vsub.f32 %v967, %v196
  %v969 = vsel %vm194, %v893, %v968
  %970 = vrot.lane.b32.xlu0 %v946, 64
  %v971 = vpop.permute.xlu0 %970
  %v972 = vmul.f32 %v971, %v969
  %973 = vrot.lane.b32.xlu0 %v972, 64
  %v974 = vpop.permute.xlu0 %973
  %v975 = vadd.f32 %v972, %v974
  %v976 = vtanh.pop %v975
  %v977 = vmul.f32 %v968, %v976
  %v978 = vld [vmem:[#allocation2 + $0x50] sm:$0xff]
  %v979 = vld [vmem:[#allocation2 + $0x58] sm:$0xff]
  %v980 = vpack.c.bf16 %v977, %v977
  %v982 = vsel %vm472, %v980, 0
  %984 = vmatpush.bf16.msra.mxu0 0
  %985 = vmatpush.bf16.msra.mxu0 0
  %986 = vmatpush.bf16.msra.mxu0 0
  %987 = vmatpush.bf16.msra.mxu0 0
  %988 = vmatpush.bf16.msra.mxu0 %v462
  %989 = vmatpush.bf16.msra.mxu0 %v460
  %990 = vmatpush.bf16.msra.mxu0 %v458
  %991 = vmatpush.bf16.msra.mxu0 %v456
  %992 = vmatmul.bf16.gmra.mxu0 %v982
  %v993 = vpop.f32.mrf.mxu0
  %v994 = vadd.f32 %v978, %v993
  %v995 = vpop.f32.mrf.mxu0
  %996 = vdwg.mxu0
  %997 = vmatpush.bf16.msra.mxu0 0
  %998 = vmatpush.bf16.msra.mxu0 0
  %999 = vmatpush.bf16.msra.mxu0 0
  %1000 = vmatpush.bf16.msra.mxu0 0
  %1001 = vmatpush.bf16.msra.mxu0 %v463
  %1002 = vmatpush.bf16.msra.mxu0 %v461
  %1003 = vmatpush.bf16.msra.mxu0 %v459
  %1004 = vmatpush.bf16.msra.mxu0 %v457
  %1005 = vmatmul.bf16.gmra.mxu0 %v982
  %v1006 = vpop.f32.mrf.mxu0
  %v1007 = vadd.f32 %v979, %v1006
  %v1008 = vpop.f32.mrf.mxu0
  %1009 = vdwg.mxu0
  %v1010 = vxor.u32 %v994, 2147483648
  %v1011 = vmul.f32 %v1010, 1.442695
  %v1012 = vpow.pop %v1011
  %v1013 = vadd.f32 %v1012, 1.0
  %v1014 = vrcp.pop %v1013
  %v1015 = vmul.f32 %v1013, %v1014
  %v1016 = vsub.f32 1.0, %v1015
  %v1017 = vmul.f32 %v1014, %v1016
  %v1018 = vadd.f32 %v1014, %v1017
  %vm1019 = vweird.f32 %v1013
  %vm1020 = vweird.f32 %v1014
  %vm1021 = vmor %vm1019, %vm1020
  %v1022 = vsel %vm1021, %v1014, %v1018
  %v1023 = vand.u32 2147483647, %v1013
  %vm1024 = vcmp.eq.f32.partialorder %v1023, 8.507059e+37
  %v1025 = vand.u32 %v1013, 2147483648
  %v1026 = vor.u32 1.1754944e-38, %v1025
  %v1027 = vsel %vm1024, %v1026, %v1022
  %v1028 = vmul.f32 1.0, %v1027
  %v1029 = vmul.f32 %v1007, %v195
  %v1030 = vxor.u32 %v1029, 2147483648
  %v1031 = vmul.f32 %v1030, 1.442695
  %v1032 = vpow.pop %v1031
  %v1033 = vadd.f32 %v1032, 1.0
  %v1034 = vrcp.pop %v1033
  %v1035 = vmul.f32 %v1033, %v1034
  %v1036 = vsub.f32 1.0, %v1035
  %v1037 = vmul.f32 %v1034, %v1036
  %v1038 = vadd.f32 %v1034, %v1037
  %vm1039 = vweird.f32 %v1033
  %vm1040 = vweird.f32 %v1034
  %vm1041 = vmor %vm1039, %vm1040
  %v1042 = vsel %vm1041, %v1034, %v1038
  %v1043 = vand.u32 2147483647, %v1033
  %vm1044 = vcmp.eq.f32.partialorder %v1043, 8.507059e+37
  %v1045 = vand.u32 %v1033, 2147483648
  %v1046 = vor.u32 1.1754944e-38, %v1045
  %v1047 = vsel %vm1044, %v1046, %v1042
  %v1048 = vmul.f32 1.0, %v1047
  %v1049 = vmul.f32 %v1048, %v195
  %v1050 = vsub.f32 %v1049, %v196
  %v1051 = vsel %vm194, %v975, %v1050
  %1052 = vrot.lane.b32.xlu0 %v1028, 64
  %v1053 = vpop.permute.xlu0 %1052
  %v1054 = vmul.f32 %v1053, %v1051
  %1055 = vrot.lane.b32.xlu0 %v1054, 64
  %v1056 = vpop.permute.xlu0 %1055
  %v1057 = vadd.f32 %v1054, %v1056
  %v1058 = vtanh.pop %v1057
  %v1059 = vmul.f32 %v1050, %v1058
  %v1060 = vld [vmem:[#allocation2 + $0x60] sm:$0xff]
  %v1061 = vld [vmem:[#allocation2 + $0x68] sm:$0xff]
  %v1062 = vpack.c.bf16 %v1059, %v1059
  %v1064 = vsel %vm472, %v1062, 0
  %1066 = vmatpush.bf16.msra.mxu0 0
  %1067 = vmatpush.bf16.msra.mxu0 0
  %1068 = vmatpush.bf16.msra.mxu0 0
  %1069 = vmatpush.bf16.msra.mxu0 0
  %1070 = vmatpush.bf16.msra.mxu0 %v462
  %1071 = vmatpush.bf16.msra.mxu0 %v460
  %1072 = vmatpush.bf16.msra.mxu0 %v458
  %1073 = vmatpush.bf16.msra.mxu0 %v456
  %1074 = vmatmul.bf16.gmra.mxu0 %v1064
  %v1075 = vpop.f32.mrf.mxu0
  %v1076 = vadd.f32 %v1060, %v1075
  %v1077 = vpop.f32.mrf.mxu0
  %1078 = vdwg.mxu0
  %1079 = vmatpush.bf16.msra.mxu0 0
  %1080 = vmatpush.bf16.msra.mxu0 0
  %1081 = vmatpush.bf16.msra.mxu0 0
  %1082 = vmatpush.bf16.msra.mxu0 0
  %1083 = vmatpush.bf16.msra.mxu0 %v463
  %1084 = vmatpush.bf16.msra.mxu0 %v461
  %1085 = vmatpush.bf16.msra.mxu0 %v459
  %1086 = vmatpush.bf16.msra.mxu0 %v457
  %1087 = vmatmul.bf16.gmra.mxu0 %v1064
  %v1088 = vpop.f32.mrf.mxu0
  %v1089 = vadd.f32 %v1061, %v1088
  %v1090 = vpop.f32.mrf.mxu0
  %1091 = vdwg.mxu0
  %v1092 = vxor.u32 %v1076, 2147483648
  %v1093 = vmul.f32 %v1092, 1.442695
  %v1094 = vpow.pop %v1093
  %v1095 = vadd.f32 %v1094, 1.0
  %v1096 = vrcp.pop %v1095
  %v1097 = vmul.f32 %v1095, %v1096
  %v1098 = vsub.f32 1.0, %v1097
  %v1099 = vmul.f32 %v1096, %v1098
  %v1100 = vadd.f32 %v1096, %v1099
  %vm1101 = vweird.f32 %v1095
  %vm1102 = vweird.f32 %v1096
  %vm1103 = vmor %vm1101, %vm1102
  %v1104 = vsel %vm1103, %v1096, %v1100
  %v1105 = vand.u32 2147483647, %v1095
  %vm1106 = vcmp.eq.f32.partialorder %v1105, 8.507059e+37
  %v1107 = vand.u32 %v1095, 2147483648
  %v1108 = vor.u32 1.1754944e-38, %v1107
  %v1109 = vsel %vm1106, %v1108, %v1104
  %v1110 = vmul.f32 1.0, %v1109
  %v1111 = vmul.f32 %v1089, %v195
  %v1112 = vxor.u32 %v1111, 2147483648
  %v1113 = vmul.f32 %v1112, 1.442695
  %v1114 = vpow.pop %v1113
  %v1115 = vadd.f32 %v1114, 1.0
  %v1116 = vrcp.pop %v1115
  %v1117 = vmul.f32 %v1115, %v1116
  %v1118 = vsub.f32 1.0, %v1117
  %v1119 = vmul.f32 %v1116, %v1118
  %v1120 = vadd.f32 %v1116, %v1119
  %vm1121 = vweird.f32 %v1115
  %vm1122 = vweird.f32 %v1116
  %vm1123 = vmor %vm1121, %vm1122
  %v1124 = vsel %vm1123, %v1116, %v1120
  %v1125 = vand.u32 2147483647, %v1115
  %vm1126 = vcmp.eq.f32.partialorder %v1125, 8.507059e+37
  %v1127 = vand.u32 %v1115, 2147483648
  %v1128 = vor.u32 1.1754944e-38, %v1127
  %v1129 = vsel %vm1126, %v1128, %v1124
  %v1130 = vmul.f32 1.0, %v1129
  %v1131 = vmul.f32 %v1130, %v195
  %v1132 = vsub.f32 %v1131, %v196
  %v1133 = vsel %vm194, %v1057, %v1132
  %1134 = vrot.lane.b32.xlu0 %v1110, 64
  %v1135 = vpop.permute.xlu0 %1134
  %v1136 = vmul.f32 %v1135, %v1133
  %1137 = vrot.lane.b32.xlu0 %v1136, 64
  %v1138 = vpop.permute.xlu0 %1137
  %v1139 = vadd.f32 %v1136, %v1138
  %v1140 = vtanh.pop %v1139
  %v1141 = vmul.f32 %v1132, %v1140
  %v1142 = vld [vmem:[#allocation2 + $0x70] sm:$0xff]
  %v1143 = vld [vmem:[#allocation2 + $0x78] sm:$0xff]
  %v1144 = vpack.c.bf16 %v1141, %v1141
  %v1146 = vsel %vm472, %v1144, 0
  %1148 = vmatpush.bf16.msra.mxu0 0
  %1149 = vmatpush.bf16.msra.mxu0 0
  %1150 = vmatpush.bf16.msra.mxu0 0
  %1151 = vmatpush.bf16.msra.mxu0 0
  %1152 = vmatpush.bf16.msra.mxu0 %v462
  %1153 = vmatpush.bf16.msra.mxu0 %v460
  %1154 = vmatpush.bf16.msra.mxu0 %v458
  %1155 = vmatpush.bf16.msra.mxu0 %v456
  %1156 = vmatmul.bf16.gmra.mxu0 %v1146
  %v1157 = vpop.f32.mrf.mxu0
  %v1158 = vadd.f32 %v1142, %v1157
  %v1159 = vpop.f32.mrf.mxu0
  %1160 = vdwg.mxu0
  %1161 = vmatpush.bf16.msra.mxu0 0
  %1162 = vmatpush.bf16.msra.mxu0 0
  %1163 = vmatpush.bf16.msra.mxu0 0
  %1164 = vmatpush.bf16.msra.mxu0 0
  %1165 = vmatpush.bf16.msra.mxu0 %v463
  %1166 = vmatpush.bf16.msra.mxu0 %v461
  %1167 = vmatpush.bf16.msra.mxu0 %v459
  %1168 = vmatpush.bf16.msra.mxu0 %v457
  %1169 = vmatmul.bf16.gmra.mxu0 %v1146
  %v1170 = vpop.f32.mrf.mxu0
  %v1171 = vadd.f32 %v1143, %v1170
  %v1172 = vpop.f32.mrf.mxu0
  %1173 = vdwg.mxu0
  %v1174 = vxor.u32 %v1158, 2147483648
  %v1175 = vmul.f32 %v1174, 1.442695
  %v1176 = vpow.pop %v1175
  %v1177 = vadd.f32 %v1176, 1.0
  %v1178 = vrcp.pop %v1177
  %v1179 = vmul.f32 %v1177, %v1178
  %v1180 = vsub.f32 1.0, %v1179
  %v1181 = vmul.f32 %v1178, %v1180
  %v1182 = vadd.f32 %v1178, %v1181
  %vm1183 = vweird.f32 %v1177
  %vm1184 = vweird.f32 %v1178
  %vm1185 = vmor %vm1183, %vm1184
  %v1186 = vsel %vm1185, %v1178, %v1182
  %v1187 = vand.u32 2147483647, %v1177
  %vm1188 = vcmp.eq.f32.partialorder %v1187, 8.507059e+37
  %v1189 = vand.u32 %v1177, 2147483648
  %v1190 = vor.u32 1.1754944e-38, %v1189
  %v1191 = vsel %vm1188, %v1190, %v1186
  %v1192 = vmul.f32 1.0, %v1191
  %v1193 = vmul.f32 %v1171, %v195
  %v1194 = vxor.u32 %v1193, 2147483648
  %v1195 = vmul.f32 %v1194, 1.442695
  %v1196 = vpow.pop %v1195
  %v1197 = vadd.f32 %v1196, 1.0
  %v1198 = vrcp.pop %v1197
  %v1199 = vmul.f32 %v1197, %v1198
  %v1200 = vsub.f32 1.0, %v1199
  %v1201 = vmul.f32 %v1198, %v1200
  %v1202 = vadd.f32 %v1198, %v1201
  %vm1203 = vweird.f32 %v1197
  %vm1204 = vweird.f32 %v1198
  %vm1205 = vmor %vm1203, %vm1204
  %v1206 = vsel %vm1205, %v1198, %v1202
  %v1207 = vand.u32 2147483647, %v1197
  %vm1208 = vcmp.eq.f32.partialorder %v1207, 8.507059e+37
  %v1209 = vand.u32 %v1197, 2147483648
  %v1210 = vor.u32 1.1754944e-38, %v1209
  %v1211 = vsel %vm1208, %v1210, %v1206
  %v1212 = vmul.f32 1.0, %v1211
  %v1213 = vmul.f32 %v1212, %v195
  %v1214 = vsub.f32 %v1213, %v196
  %v1215 = vsel %vm194, %v1139, %v1214
  %1216 = vrot.lane.b32.xlu0 %v1192, 64
  %v1217 = vpop.permute.xlu0 %1216
  %v1218 = vmul.f32 %v1217, %v1215
  %1219 = vrot.lane.b32.xlu0 %v1218, 64
  %v1220 = vpop.permute.xlu0 %1219
  %v1221 = vadd.f32 %v1218, %v1220
  %v1222 = vtanh.pop %v1221
  %v1223 = vmul.f32 %v1214, %v1222
  %v1224 = vld [vmem:[#allocation2 + $0x80] sm:$0xff]
  %v1225 = vld [vmem:[#allocation2 + $0x88] sm:$0xff]
  %v1226 = vpack.c.bf16 %v1223, %v1223
  %v1228 = vsel %vm472, %v1226, 0
  %1230 = vmatpush.bf16.msra.mxu0 0
  %1231 = vmatpush.bf16.msra.mxu0 0
  %1232 = vmatpush.bf16.msra.mxu0 0
  %1233 = vmatpush.bf16.msra.mxu0 0
  %1234 = vmatpush.bf16.msra.mxu0 %v462
  %1235 = vmatpush.bf16.msra.mxu0 %v460
  %1236 = vmatpush.bf16.msra.mxu0 %v458
  %1237 = vmatpush.bf16.msra.mxu0 %v456
  %1238 = vmatmul.bf16.gmra.mxu0 %v1228
  %v1239 = vpop.f32.mrf.mxu0
  %v1240 = vadd.f32 %v1224, %v1239
  %v1241 = vpop.f32.mrf.mxu0
  %1242 = vdwg.mxu0
  %1243 = vmatpush.bf16.msra.mxu0 0
  %1244 = vmatpush.bf16.msra.mxu0 0
  %1245 = vmatpush.bf16.msra.mxu0 0
  %1246 = vmatpush.bf16.msra.mxu0 0
  %1247 = vmatpush.bf16.msra.mxu0 %v463
  %1248 = vmatpush.bf16.msra.mxu0 %v461
  %1249 = vmatpush.bf16.msra.mxu0 %v459
  %1250 = vmatpush.bf16.msra.mxu0 %v457
  %1251 = vmatmul.bf16.gmra.mxu0 %v1228
  %v1252 = vpop.f32.mrf.mxu0
  %v1253 = vadd.f32 %v1225, %v1252
  %v1254 = vpop.f32.mrf.mxu0
  %1255 = vdwg.mxu0
  %v1256 = vxor.u32 %v1240, 2147483648
  %v1257 = vmul.f32 %v1256, 1.442695
  %v1258 = vpow.pop %v1257
  %v1259 = vadd.f32 %v1258, 1.0
  %v1260 = vrcp.pop %v1259
  %v1261 = vmul.f32 %v1259, %v1260
  %v1262 = vsub.f32 1.0, %v1261
  %v1263 = vmul.f32 %v1260, %v1262
  %v1264 = vadd.f32 %v1260, %v1263
  %vm1265 = vweird.f32 %v1259
  %vm1266 = vweird.f32 %v1260
  %vm1267 = vmor %vm1265, %vm1266
  %v1268 = vsel %vm1267, %v1260, %v1264
  %v1269 = vand.u32 2147483647, %v1259
  %vm1270 = vcmp.eq.f32.partialorder %v1269, 8.507059e+37
  %v1271 = vand.u32 %v1259, 2147483648
  %v1272 = vor.u32 1.1754944e-38, %v1271
  %v1273 = vsel %vm1270, %v1272, %v1268
  %v1274 = vmul.f32 1.0, %v1273
  %v1275 = vmul.f32 %v1253, %v195
  %v1276 = vxor.u32 %v1275, 2147483648
  %v1277 = vmul.f32 %v1276, 1.442695
  %v1278 = vpow.pop %v1277
  %v1279 = vadd.f32 %v1278, 1.0
  %v1280 = vrcp.pop %v1279
  %v1281 = vmul.f32 %v1279, %v1280
  %v1282 = vsub.f32 1.0, %v1281
  %v1283 = vmul.f32 %v1280, %v1282
  %v1284 = vadd.f32 %v1280, %v1283
  %vm1285 = vweird.f32 %v1279
  %vm1286 = vweird.f32 %v1280
  %vm1287 = vmor %vm1285, %vm1286
  %v1288 = vsel %vm1287, %v1280, %v1284
  %v1289 = vand.u32 2147483647, %v1279
  %vm1290 = vcmp.eq.f32.partialorder %v1289, 8.507059e+37
  %v1291 = vand.u32 %v1279, 2147483648
  %v1292 = vor.u32 1.1754944e-38, %v1291
  %v1293 = vsel %vm1290, %v1292, %v1288
  %v1294 = vmul.f32 1.0, %v1293
  %v1295 = vmul.f32 %v1294, %v195
  %v1296 = vsub.f32 %v1295, %v196
  %v1297 = vsel %vm194, %v1221, %v1296
  %1298 = vrot.lane.b32.xlu0 %v1274, 64
  %v1299 = vpop.permute.xlu0 %1298
  %v1300 = vmul.f32 %v1299, %v1297
  %1301 = vrot.lane.b32.xlu0 %v1300, 64
  %v1302 = vpop.permute.xlu0 %1301
  %v1303 = vadd.f32 %v1300, %v1302
  %v1304 = vtanh.pop %v1303
  %v1305 = vmul.f32 %v1296, %v1304
  %v1306 = vld [vmem:[#allocation2 + $0x90] sm:$0xff]
  %v1307 = vld [vmem:[#allocation2 + $0x98] sm:$0xff]
  %v1308 = vpack.c.bf16 %v1305, %v1305
  %v1310 = vsel %vm472, %v1308, 0
  %1312 = vmatpush.bf16.msra.mxu0 0
  %1313 = vmatpush.bf16.msra.mxu0 0
  %1314 = vmatpush.bf16.msra.mxu0 0
  %1315 = vmatpush.bf16.msra.mxu0 0
  %1316 = vmatpush.bf16.msra.mxu0 %v462
  %1317 = vmatpush.bf16.msra.mxu0 %v460
  %1318 = vmatpush.bf16.msra.mxu0 %v458
  %1319 = vmatpush.bf16.msra.mxu0 %v456
  %1320 = vmatmul.bf16.gmra.mxu0 %v1310
  %v1321 = vpop.f32.mrf.mxu0
  %v1322 = vadd.f32 %v1306, %v1321
  %v1323 = vpop.f32.mrf.mxu0
  %1324 = vdwg.mxu0
  %1325 = vmatpush.bf16.msra.mxu0 0
  %1326 = vmatpush.bf16.msra.mxu0 0
  %1327 = vmatpush.bf16.msra.mxu0 0
  %1328 = vmatpush.bf16.msra.mxu0 0
  %1329 = vmatpush.bf16.msra.mxu0 %v463
  %1330 = vmatpush.bf16.msra.mxu0 %v461
  %1331 = vmatpush.bf16.msra.mxu0 %v459
  %1332 = vmatpush.bf16.msra.mxu0 %v457
  %1333 = vmatmul.bf16.gmra.mxu0 %v1310
  %v1334 = vpop.f32.mrf.mxu0
  %v1335 = vadd.f32 %v1307, %v1334
  %v1336 = vpop.f32.mrf.mxu0
  %1337 = vdwg.mxu0
  %v1338 = vxor.u32 %v1322, 2147483648
  %v1339 = vmul.f32 %v1338, 1.442695
  %v1340 = vpow.pop %v1339
  %v1341 = vadd.f32 %v1340, 1.0
  %v1342 = vrcp.pop %v1341
  %v1343 = vmul.f32 %v1341, %v1342
  %v1344 = vsub.f32 1.0, %v1343
  %v1345 = vmul.f32 %v1342, %v1344
  %v1346 = vadd.f32 %v1342, %v1345
  %vm1347 = vweird.f32 %v1341
  %vm1348 = vweird.f32 %v1342
  %vm1349 = vmor %vm1347, %vm1348
  %v1350 = vsel %vm1349, %v1342, %v1346
  %v1351 = vand.u32 2147483647, %v1341
  %vm1352 = vcmp.eq.f32.partialorder %v1351, 8.507059e+37
  %v1353 = vand.u32 %v1341, 2147483648
  %v1354 = vor.u32 1.1754944e-38, %v1353
  %v1355 = vsel %vm1352, %v1354, %v1350
  %v1356 = vmul.f32 1.0, %v1355
  %v1357 = vmul.f32 %v1335, %v195
  %v1358 = vxor.u32 %v1357, 2147483648
  %v1359 = vmul.f32 %v1358, 1.442695
  %v1360 = vpow.pop %v1359
  %v1361 = vadd.f32 %v1360, 1.0
  %v1362 = vrcp.pop %v1361
  %v1363 = vmul.f32 %v1361, %v1362
  %v1364 = vsub.f32 1.0, %v1363
  %v1365 = vmul.f32 %v1362, %v1364
  %v1366 = vadd.f32 %v1362, %v1365
  %vm1367 = vweird.f32 %v1361
  %vm1368 = vweird.f32 %v1362
  %vm1369 = vmor %vm1367, %vm1368
  %v1370 = vsel %vm1369, %v1362, %v1366
  %v1371 = vand.u32 2147483647, %v1361
  %vm1372 = vcmp.eq.f32.partialorder %v1371, 8.507059e+37
  %v1373 = vand.u32 %v1361, 2147483648
  %v1374 = vor.u32 1.1754944e-38, %v1373
  %v1375 = vsel %vm1372, %v1374, %v1370
  %v1376 = vmul.f32 1.0, %v1375
  %v1377 = vmul.f32 %v1376, %v195
  %v1378 = vsub.f32 %v1377, %v196
  %v1379 = vsel %vm194, %v1303, %v1378
  %1380 = vrot.lane.b32.xlu0 %v1356, 64
  %v1381 = vpop.permute.xlu0 %1380
  %v1382 = vmul.f32 %v1381, %v1379
  %1383 = vrot.lane.b32.xlu0 %v1382, 64
  %v1384 = vpop.permute.xlu0 %1383
  %v1385 = vadd.f32 %v1382, %v1384
  %v1386 = vtanh.pop %v1385
  %v1387 = vmul.f32 %v1378, %v1386
  %v1388 = vld [vmem:[#allocation2 + $0xa0] sm:$0xff]
  %v1389 = vld [vmem:[#allocation2 + $0xa8] sm:$0xff]
  %v1390 = vpack.c.bf16 %v1387, %v1387
  %v1392 = vsel %vm472, %v1390, 0
  %1394 = vmatpush.bf16.msra.mxu0 0
  %1395 = vmatpush.bf16.msra.mxu0 0
  %1396 = vmatpush.bf16.msra.mxu0 0
  %1397 = vmatpush.bf16.msra.mxu0 0
  %1398 = vmatpush.bf16.msra.mxu0 %v462
  %1399 = vmatpush.bf16.msra.mxu0 %v460
  %1400 = vmatpush.bf16.msra.mxu0 %v458
  %1401 = vmatpush.bf16.msra.mxu0 %v456
  %1402 = vmatmul.bf16.gmra.mxu0 %v1392
  %v1403 = vpop.f32.mrf.mxu0
  %v1404 = vadd.f32 %v1388, %v1403
  %v1405 = vpop.f32.mrf.mxu0
  %1406 = vdwg.mxu0
  %1407 = vmatpush.bf16.msra.mxu0 0
  %1408 = vmatpush.bf16.msra.mxu0 0
  %1409 = vmatpush.bf16.msra.mxu0 0
  %1410 = vmatpush.bf16.msra.mxu0 0
  %1411 = vmatpush.bf16.msra.mxu0 %v463
  %1412 = vmatpush.bf16.msra.mxu0 %v461
  %1413 = vmatpush.bf16.msra.mxu0 %v459
  %1414 = vmatpush.bf16.msra.mxu0 %v457
  %1415 = vmatmul.bf16.gmra.mxu0 %v1392
  %v1416 = vpop.f32.mrf.mxu0
  %v1417 = vadd.f32 %v1389, %v1416
  %v1418 = vpop.f32.mrf.mxu0
  %1419 = vdwg.mxu0
  %v1420 = vxor.u32 %v1404, 2147483648
  %v1421 = vmul.f32 %v1420, 1.442695
  %v1422 = vpow.pop %v1421
  %v1423 = vadd.f32 %v1422, 1.0
  %v1424 = vrcp.pop %v1423
  %v1425 = vmul.f32 %v1423, %v1424
  %v1426 = vsub.f32 1.0, %v1425
  %v1427 = vmul.f32 %v1424, %v1426
  %v1428 = vadd.f32 %v1424, %v1427
  %vm1429 = vweird.f32 %v1423
  %vm1430 = vweird.f32 %v1424
  %vm1431 = vmor %vm1429, %vm1430
  %v1432 = vsel %vm1431, %v1424, %v1428
  %v1433 = vand.u32 2147483647, %v1423
  %vm1434 = vcmp.eq.f32.partialorder %v1433, 8.507059e+37
  %v1435 = vand.u32 %v1423, 2147483648
  %v1436 = vor.u32 1.1754944e-38, %v1435
  %v1437 = vsel %vm1434, %v1436, %v1432
  %v1438 = vmul.f32 1.0, %v1437
  %v1439 = vmul.f32 %v1417, %v195
  %v1440 = vxor.u32 %v1439, 2147483648
  %v1441 = vmul.f32 %v1440, 1.442695
  %v1442 = vpow.pop %v1441
  %v1443 = vadd.f32 %v1442, 1.0
  %v1444 = vrcp.pop %v1443
  %v1445 = vmul.f32 %v1443, %v1444
  %v1446 = vsub.f32 1.0, %v1445
  %v1447 = vmul.f32 %v1444, %v1446
  %v1448 = vadd.f32 %v1444, %v1447
  %vm1449 = vweird.f32 %v1443
  %vm1450 = vweird.f32 %v1444
  %vm1451 = vmor %vm1449, %vm1450
  %v1452 = vsel %vm1451, %v1444, %v1448
  %v1453 = vand.u32 2147483647, %v1443
  %vm1454 = vcmp.eq.f32.partialorder %v1453, 8.507059e+37
  %v1455 = vand.u32 %v1443, 2147483648
  %v1456 = vor.u32 1.1754944e-38, %v1455
  %v1457 = vsel %vm1454, %v1456, %v1452
  %v1458 = vmul.f32 1.0, %v1457
  %v1459 = vmul.f32 %v1458, %v195
  %v1460 = vsub.f32 %v1459, %v196
  %v1461 = vsel %vm194, %v1385, %v1460
  %1462 = vrot.lane.b32.xlu0 %v1438, 64
  %v1463 = vpop.permute.xlu0 %1462
  %v1464 = vmul.f32 %v1463, %v1461
  %1465 = vrot.lane.b32.xlu0 %v1464, 64
  %v1466 = vpop.permute.xlu0 %1465
  %v1467 = vadd.f32 %v1464, %v1466
  %v1468 = vtanh.pop %v1467
  %v1469 = vmul.f32 %v1460, %v1468
  %v1470 = vld [vmem:[#allocation2 + $0xb0] sm:$0xff]
  %v1471 = vld [vmem:[#allocation2 + $0xb8] sm:$0xff]
  %v1472 = vpack.c.bf16 %v1469, %v1469
  %v1474 = vsel %vm472, %v1472, 0
  %1476 = vmatpush.bf16.msra.mxu0 0
  %1477 = vmatpush.bf16.msra.mxu0 0
  %1478 = vmatpush.bf16.msra.mxu0 0
  %1479 = vmatpush.bf16.msra.mxu0 0
  %1480 = vmatpush.bf16.msra.mxu0 %v462
  %1481 = vmatpush.bf16.msra.mxu0 %v460
  %1482 = vmatpush.bf16.msra.mxu0 %v458
  %1483 = vmatpush.bf16.msra.mxu0 %v456
  %1484 = vmatmul.bf16.gmra.mxu0 %v1474
  %v1485 = vpop.f32.mrf.mxu0
  %v1486 = vadd.f32 %v1470, %v1485
  %v1487 = vpop.f32.mrf.mxu0
  %1488 = vdwg.mxu0
  %1489 = vmatpush.bf16.msra.mxu0 0
  %1490 = vmatpush.bf16.msra.mxu0 0
  %1491 = vmatpush.bf16.msra.mxu0 0
  %1492 = vmatpush.bf16.msra.mxu0 0
  %1493 = vmatpush.bf16.msra.mxu0 %v463
  %1494 = vmatpush.bf16.msra.mxu0 %v461
  %1495 = vmatpush.bf16.msra.mxu0 %v459
  %1496 = vmatpush.bf16.msra.mxu0 %v457
  %1497 = vmatmul.bf16.gmra.mxu0 %v1474
  %v1498 = vpop.f32.mrf.mxu0
  %v1499 = vadd.f32 %v1471, %v1498
  %v1500 = vpop.f32.mrf.mxu0
  %1501 = vdwg.mxu0
  %v1502 = vxor.u32 %v1486, 2147483648
  %v1503 = vmul.f32 %v1502, 1.442695
  %v1504 = vpow.pop %v1503
  %v1505 = vadd.f32 %v1504, 1.0
  %v1506 = vrcp.pop %v1505
  %v1507 = vmul.f32 %v1505, %v1506
  %v1508 = vsub.f32 1.0, %v1507
  %v1509 = vmul.f32 %v1506, %v1508
  %v1510 = vadd.f32 %v1506, %v1509
  %vm1511 = vweird.f32 %v1505
  %vm1512 = vweird.f32 %v1506
  %vm1513 = vmor %vm1511, %vm1512
  %v1514 = vsel %vm1513, %v1506, %v1510
  %v1515 = vand.u32 2147483647, %v1505
  %vm1516 = vcmp.eq.f32.partialorder %v1515, 8.507059e+37
  %v1517 = vand.u32 %v1505, 2147483648
  %v1518 = vor.u32 1.1754944e-38, %v1517
  %v1519 = vsel %vm1516, %v1518, %v1514
  %v1520 = vmul.f32 1.0, %v1519
  %v1521 = vmul.f32 %v1499, %v195
  %v1522 = vxor.u32 %v1521, 2147483648
  %v1523 = vmul.f32 %v1522, 1.442695
  %v1524 = vpow.pop %v1523
  %v1525 = vadd.f32 %v1524, 1.0
  %v1526 = vrcp.pop %v1525
  %v1527 = vmul.f32 %v1525, %v1526
  %v1528 = vsub.f32 1.0, %v1527
  %v1529 = vmul.f32 %v1526, %v1528
  %v1530 = vadd.f32 %v1526, %v1529
  %vm1531 = vweird.f32 %v1525
  %vm1532 = vweird.f32 %v1526
  %vm1533 = vmor %vm1531, %vm1532
  %v1534 = vsel %vm1533, %v1526, %v1530
  %v1535 = vand.u32 2147483647, %v1525
  %vm1536 = vcmp.eq.f32.partialorder %v1535, 8.507059e+37
  %v1537 = vand.u32 %v1525, 2147483648
  %v1538 = vor.u32 1.1754944e-38, %v1537
  %v1539 = vsel %vm1536, %v1538, %v1534
  %v1540 = vmul.f32 1.0, %v1539
  %v1541 = vmul.f32 %v1540, %v195
  %v1542 = vsub.f32 %v1541, %v196
  %v1543 = vsel %vm194, %v1467, %v1542
  %1544 = vrot.lane.b32.xlu0 %v1520, 64
  %v1545 = vpop.permute.xlu0 %1544
  %v1546 = vmul.f32 %v1545, %v1543
  %1547 = vrot.lane.b32.xlu0 %v1546, 64
  %v1548 = vpop.permute.xlu0 %1547
  %v1549 = vadd.f32 %v1546, %v1548
  %v1550 = vtanh.pop %v1549
  %v1551 = vmul.f32 %v1542, %v1550
  %v1552 = vld [vmem:[#allocation2 + $0xc0] sm:$0xff]
  %v1553 = vld [vmem:[#allocation2 + $0xc8] sm:$0xff]
  %v1554 = vpack.c.bf16 %v1551, %v1551
  %v1556 = vsel %vm472, %v1554, 0
  %1558 = vmatpush.bf16.msra.mxu0 0
  %1559 = vmatpush.bf16.msra.mxu0 0
  %1560 = vmatpush.bf16.msra.mxu0 0
  %1561 = vmatpush.bf16.msra.mxu0 0
  %1562 = vmatpush.bf16.msra.mxu0 %v462
  %1563 = vmatpush.bf16.msra.mxu0 %v460
  %1564 = vmatpush.bf16.msra.mxu0 %v458
  %1565 = vmatpush.bf16.msra.mxu0 %v456
  %1566 = vmatmul.bf16.gmra.mxu0 %v1556
  %v1567 = vpop.f32.mrf.mxu0
  %v1568 = vadd.f32 %v1552, %v1567
  %v1569 = vpop.f32.mrf.mxu0
  %1570 = vdwg.mxu0
  %1571 = vmatpush.bf16.msra.mxu0 0
  %1572 = vmatpush.bf16.msra.mxu0 0
  %1573 = vmatpush.bf16.msra.mxu0 0
  %1574 = vmatpush.bf16.msra.mxu0 0
  %1575 = vmatpush.bf16.msra.mxu0 %v463
  %1576 = vmatpush.bf16.msra.mxu0 %v461
  %1577 = vmatpush.bf16.msra.mxu0 %v459
  %1578 = vmatpush.bf16.msra.mxu0 %v457
  %1579 = vmatmul.bf16.gmra.mxu0 %v1556
  %v1580 = vpop.f32.mrf.mxu0
  %v1581 = vadd.f32 %v1553, %v1580
  %v1582 = vpop.f32.mrf.mxu0
  %1583 = vdwg.mxu0
  %v1584 = vxor.u32 %v1568, 2147483648
  %v1585 = vmul.f32 %v1584, 1.442695
  %v1586 = vpow.pop %v1585
  %v1587 = vadd.f32 %v1586, 1.0
  %v1588 = vrcp.pop %v1587
  %v1589 = vmul.f32 %v1587, %v1588
  %v1590 = vsub.f32 1.0, %v1589
  %v1591 = vmul.f32 %v1588, %v1590
  %v1592 = vadd.f32 %v1588, %v1591
  %vm1593 = vweird.f32 %v1587
  %vm1594 = vweird.f32 %v1588
  %vm1595 = vmor %vm1593, %vm1594
  %v1596 = vsel %vm1595, %v1588, %v1592
  %v1597 = vand.u32 2147483647, %v1587
  %vm1598 = vcmp.eq.f32.partialorder %v1597, 8.507059e+37
  %v1599 = vand.u32 %v1587, 2147483648
  %v1600 = vor.u32 1.1754944e-38, %v1599
  %v1601 = vsel %vm1598, %v1600, %v1596
  %v1602 = vmul.f32 1.0, %v1601
  %v1603 = vmul.f32 %v1581, %v195
  %v1604 = vxor.u32 %v1603, 2147483648
  %v1605 = vmul.f32 %v1604, 1.442695
  %v1606 = vpow.pop %v1605
  %v1607 = vadd.f32 %v1606, 1.0
  %v1608 = vrcp.pop %v1607
  %v1609 = vmul.f32 %v1607, %v1608
  %v1610 = vsub.f32 1.0, %v1609
  %v1611 = vmul.f32 %v1608, %v1610
  %v1612 = vadd.f32 %v1608, %v1611
  %vm1613 = vweird.f32 %v1607
  %vm1614 = vweird.f32 %v1608
  %vm1615 = vmor %vm1613, %vm1614
  %v1616 = vsel %vm1615, %v1608, %v1612
  %v1617 = vand.u32 2147483647, %v1607
  %vm1618 = vcmp.eq.f32.partialorder %v1617, 8.507059e+37
  %v1619 = vand.u32 %v1607, 2147483648
  %v1620 = vor.u32 1.1754944e-38, %v1619
  %v1621 = vsel %vm1618, %v1620, %v1616
  %v1622 = vmul.f32 1.0, %v1621
  %v1623 = vmul.f32 %v1622, %v195
  %v1624 = vsub.f32 %v1623, %v196
  %v1625 = vsel %vm194, %v1549, %v1624
  %1626 = vrot.lane.b32.xlu0 %v1602, 64
  %v1627 = vpop.permute.xlu0 %1626
  %v1628 = vmul.f32 %v1627, %v1625
  %1629 = vrot.lane.b32.xlu0 %v1628, 64
  %v1630 = vpop.permute.xlu0 %1629
  %v1631 = vadd.f32 %v1628, %v1630
  %v1632 = vtanh.pop %v1631
  %v1633 = vmul.f32 %v1624, %v1632
  %v1634 = vld [vmem:[#allocation2 + $0xd0] sm:$0xff]
  %v1635 = vld [vmem:[#allocation2 + $0xd8] sm:$0xff]
  %v1636 = vpack.c.bf16 %v1633, %v1633
  %v1638 = vsel %vm472, %v1636, 0
  %1640 = vmatpush.bf16.msra.mxu0 0
  %1641 = vmatpush.bf16.msra.mxu0 0
  %1642 = vmatpush.bf16.msra.mxu0 0
  %1643 = vmatpush.bf16.msra.mxu0 0
  %1644 = vmatpush.bf16.msra.mxu0 %v462
  %1645 = vmatpush.bf16.msra.mxu0 %v460
  %1646 = vmatpush.bf16.msra.mxu0 %v458
  %1647 = vmatpush.bf16.msra.mxu0 %v456
  %1648 = vmatmul.bf16.gmra.mxu0 %v1638
  %v1649 = vpop.f32.mrf.mxu0
  %v1650 = vadd.f32 %v1634, %v1649
  %v1651 = vpop.f32.mrf.mxu0
  %1652 = vdwg.mxu0
  %1653 = vmatpush.bf16.msra.mxu0 0
  %1654 = vmatpush.bf16.msra.mxu0 0
  %1655 = vmatpush.bf16.msra.mxu0 0
  %1656 = vmatpush.bf16.msra.mxu0 0
  %1657 = vmatpush.bf16.msra.mxu0 %v463
  %1658 = vmatpush.bf16.msra.mxu0 %v461
  %1659 = vmatpush.bf16.msra.mxu0 %v459
  %1660 = vmatpush.bf16.msra.mxu0 %v457
  %1661 = vmatmul.bf16.gmra.mxu0 %v1638
  %v1662 = vpop.f32.mrf.mxu0
  %v1663 = vadd.f32 %v1635, %v1662
  %v1664 = vpop.f32.mrf.mxu0
  %1665 = vdwg.mxu0
  %v1666 = vxor.u32 %v1650, 2147483648
  %v1667 = vmul.f32 %v1666, 1.442695
  %v1668 = vpow.pop %v1667
  %v1669 = vadd.f32 %v1668, 1.0
  %v1670 = vrcp.pop %v1669
  %v1671 = vmul.f32 %v1669, %v1670
  %v1672 = vsub.f32 1.0, %v1671
  %v1673 = vmul.f32 %v1670, %v1672
  %v1674 = vadd.f32 %v1670, %v1673
  %vm1675 = vweird.f32 %v1669
  %vm1676 = vweird.f32 %v1670
  %vm1677 = vmor %vm1675, %vm1676
  %v1678 = vsel %vm1677, %v1670, %v1674
  %v1679 = vand.u32 2147483647, %v1669
  %vm1680 = vcmp.eq.f32.partialorder %v1679, 8.507059e+37
  %v1681 = vand.u32 %v1669, 2147483648
  %v1682 = vor.u32 1.1754944e-38, %v1681
  %v1683 = vsel %vm1680, %v1682, %v1678
  %v1684 = vmul.f32 1.0, %v1683
  %v1685 = vmul.f32 %v1663, %v195
  %v1686 = vxor.u32 %v1685, 2147483648
  %v1687 = vmul.f32 %v1686, 1.442695
  %v1688 = vpow.pop %v1687
  %v1689 = vadd.f32 %v1688, 1.0
  %v1690 = vrcp.pop %v1689
  %v1691 = vmul.f32 %v1689, %v1690
  %v1692 = vsub.f32 1.0, %v1691
  %v1693 = vmul.f32 %v1690, %v1692
  %v1694 = vadd.f32 %v1690, %v1693
  %vm1695 = vweird.f32 %v1689
  %vm1696 = vweird.f32 %v1690
  %vm1697 = vmor %vm1695, %vm1696
  %v1698 = vsel %vm1697, %v1690, %v1694
  %v1699 = vand.u32 2147483647, %v1689
  %vm1700 = vcmp.eq.f32.partialorder %v1699, 8.507059e+37
  %v1701 = vand.u32 %v1689, 2147483648
  %v1702 = vor.u32 1.1754944e-38, %v1701
  %v1703 = vsel %vm1700, %v1702, %v1698
  %v1704 = vmul.f32 1.0, %v1703
  %v1705 = vmul.f32 %v1704, %v195
  %v1706 = vsub.f32 %v1705, %v196
  %v1707 = vsel %vm194, %v1631, %v1706
  %1708 = vrot.lane.b32.xlu0 %v1684, 64
  %v1709 = vpop.permute.xlu0 %1708
  %v1710 = vmul.f32 %v1709, %v1707
  %1711 = vrot.lane.b32.xlu0 %v1710, 64
  %v1712 = vpop.permute.xlu0 %1711
  %v1713 = vadd.f32 %v1710, %v1712
  %v1714 = vtanh.pop %v1713
  %v1715 = vmul.f32 %v1706, %v1714
  %v1716 = vld [vmem:[#allocation2 + $0xe0] sm:$0xff]
  %v1717 = vld [vmem:[#allocation2 + $0xe8] sm:$0xff]
  %v1718 = vpack.c.bf16 %v1715, %v1715
  %v1720 = vsel %vm472, %v1718, 0
  %1722 = vmatpush.bf16.msra.mxu0 0
  %1723 = vmatpush.bf16.msra.mxu0 0
  %1724 = vmatpush.bf16.msra.mxu0 0
  %1725 = vmatpush.bf16.msra.mxu0 0
  %1726 = vmatpush.bf16.msra.mxu0 %v462
  %1727 = vmatpush.bf16.msra.mxu0 %v460
  %1728 = vmatpush.bf16.msra.mxu0 %v458
  %1729 = vmatpush.bf16.msra.mxu0 %v456
  %1730 = vmatmul.bf16.gmra.mxu0 %v1720
  %v1731 = vpop.f32.mrf.mxu0
  %v1732 = vadd.f32 %v1716, %v1731
  %v1733 = vpop.f32.mrf.mxu0
  %1734 = vdwg.mxu0
  %1735 = vmatpush.bf16.msra.mxu0 0
  %1736 = vmatpush.bf16.msra.mxu0 0
  %1737 = vmatpush.bf16.msra.mxu0 0
  %1738 = vmatpush.bf16.msra.mxu0 0
  %1739 = vmatpush.bf16.msra.mxu0 %v463
  %1740 = vmatpush.bf16.msra.mxu0 %v461
  %1741 = vmatpush.bf16.msra.mxu0 %v459
  %1742 = vmatpush.bf16.msra.mxu0 %v457
  %1743 = vmatmul.bf16.gmra.mxu0 %v1720
  %v1744 = vpop.f32.mrf.mxu0
  %v1745 = vadd.f32 %v1717, %v1744
  %v1746 = vpop.f32.mrf.mxu0
  %1747 = vdwg.mxu0
  %v1748 = vxor.u32 %v1732, 2147483648
  %v1749 = vmul.f32 %v1748, 1.442695
  %v1750 = vpow.pop %v1749
  %v1751 = vadd.f32 %v1750, 1.0
  %v1752 = vrcp.pop %v1751
  %v1753 = vmul.f32 %v1751, %v1752
  %v1754 = vsub.f32 1.0, %v1753
  %v1755 = vmul.f32 %v1752, %v1754
  %v1756 = vadd.f32 %v1752, %v1755
  %vm1757 = vweird.f32 %v1751
  %vm1758 = vweird.f32 %v1752
  %vm1759 = vmor %vm1757, %vm1758
  %v1760 = vsel %vm1759, %v1752, %v1756
  %v1761 = vand.u32 2147483647, %v1751
  %vm1762 = vcmp.eq.f32.partialorder %v1761, 8.507059e+37
  %v1763 = vand.u32 %v1751, 2147483648
  %v1764 = vor.u32 1.1754944e-38, %v1763
  %v1765 = vsel %vm1762, %v1764, %v1760
  %v1766 = vmul.f32 1.0, %v1765
  %v1767 = vmul.f32 %v1745, %v195
  %v1768 = vxor.u32 %v1767, 2147483648
  %v1769 = vmul.f32 %v1768, 1.442695
  %v1770 = vpow.pop %v1769
  %v1771 = vadd.f32 %v1770, 1.0
  %v1772 = vrcp.pop %v1771
  %v1773 = vmul.f32 %v1771, %v1772
  %v1774 = vsub.f32 1.0, %v1773
  %v1775 = vmul.f32 %v1772, %v1774
  %v1776 = vadd.f32 %v1772, %v1775
  %vm1777 = vweird.f32 %v1771
  %vm1778 = vweird.f32 %v1772
  %vm1779 = vmor %vm1777, %vm1778
  %v1780 = vsel %vm1779, %v1772, %v1776
  %v1781 = vand.u32 2147483647, %v1771
  %vm1782 = vcmp.eq.f32.partialorder %v1781, 8.507059e+37
  %v1783 = vand.u32 %v1771, 2147483648
  %v1784 = vor.u32 1.1754944e-38, %v1783
  %v1785 = vsel %vm1782, %v1784, %v1780
  %v1786 = vmul.f32 1.0, %v1785
  %v1787 = vmul.f32 %v1786, %v195
  %v1788 = vsub.f32 %v1787, %v196
  %v1789 = vsel %vm194, %v1713, %v1788
  %1790 = vrot.lane.b32.xlu0 %v1766, 64
  %v1791 = vpop.permute.xlu0 %1790
  %v1792 = vmul.f32 %v1791, %v1789
  %1793 = vrot.lane.b32.xlu0 %v1792, 64
  %v1794 = vpop.permute.xlu0 %1793
  %v1795 = vadd.f32 %v1792, %v1794
  %v1796 = vtanh.pop %v1795
  %v1797 = vmul.f32 %v1788, %v1796
  %v1798 = vld [vmem:[#allocation2 + $0xf0] sm:$0xff]
  %v1799 = vld [vmem:[#allocation2 + $0xf8] sm:$0xff]
  %v1800 = vpack.c.bf16 %v1797, %v1797
  %v1802 = vsel %vm472, %v1800, 0
  %1804 = vmatpush.bf16.msra.mxu0 0
  %1805 = vmatpush.bf16.msra.mxu0 0
  %1806 = vmatpush.bf16.msra.mxu0 0
  %1807 = vmatpush.bf16.msra.mxu0 0
  %1808 = vmatpush.bf16.msra.mxu0 %v462
  %1809 = vmatpush.bf16.msra.mxu0 %v460
  %1810 = vmatpush.bf16.msra.mxu0 %v458
  %1811 = vmatpush.bf16.msra.mxu0 %v456
  %1812 = vmatmul.bf16.gmra.mxu0 %v1802
  %v1813 = vpop.f32.mrf.mxu0
  %v1814 = vadd.f32 %v1798, %v1813
  %v1815 = vpop.f32.mrf.mxu0
  %1816 = vdwg.mxu0
  %1817 = vmatpush.bf16.msra.mxu0 0
  %1818 = vmatpush.bf16.msra.mxu0 0
  %1819 = vmatpush.bf16.msra.mxu0 0
  %1820 = vmatpush.bf16.msra.mxu0 0
  %1821 = vmatpush.bf16.msra.mxu0 %v463
  %1822 = vmatpush.bf16.msra.mxu0 %v461
  %1823 = vmatpush.bf16.msra.mxu0 %v459
  %1824 = vmatpush.bf16.msra.mxu0 %v457
  %1825 = vmatmul.bf16.gmra.mxu0 %v1802
  %v1826 = vpop.f32.mrf.mxu0
  %v1827 = vadd.f32 %v1799, %v1826
  %v1828 = vpop.f32.mrf.mxu0
  %1829 = vdwg.mxu0
  %v1830 = vxor.u32 %v1814, 2147483648
  %v1831 = vmul.f32 %v1830, 1.442695
  %v1832 = vpow.pop %v1831
  %v1833 = vadd.f32 %v1832, 1.0
  %v1834 = vrcp.pop %v1833
  %v1835 = vmul.f32 %v1833, %v1834
  %v1836 = vsub.f32 1.0, %v1835
  %v1837 = vmul.f32 %v1834, %v1836
  %v1838 = vadd.f32 %v1834, %v1837
  %vm1839 = vweird.f32 %v1833
  %vm1840 = vweird.f32 %v1834
  %vm1841 = vmor %vm1839, %vm1840
  %v1842 = vsel %vm1841, %v1834, %v1838
  %v1843 = vand.u32 2147483647, %v1833
  %vm1844 = vcmp.eq.f32.partialorder %v1843, 8.507059e+37
  %v1845 = vand.u32 %v1833, 2147483648
  %v1846 = vor.u32 1.1754944e-38, %v1845
  %v1847 = vsel %vm1844, %v1846, %v1842
  %v1848 = vmul.f32 1.0, %v1847
  %v1849 = vmul.f32 %v1827, %v195
  %v1850 = vxor.u32 %v1849, 2147483648
  %v1851 = vmul.f32 %v1850, 1.442695
  %v1852 = vpow.pop %v1851
  %v1853 = vadd.f32 %v1852, 1.0
  %v1854 = vrcp.pop %v1853
  %v1855 = vmul.f32 %v1853, %v1854
  %v1856 = vsub.f32 1.0, %v1855
  %v1857 = vmul.f32 %v1854, %v1856
  %v1858 = vadd.f32 %v1854, %v1857
  %vm1859 = vweird.f32 %v1853
  %vm1860 = vweird.f32 %v1854
  %vm1861 = vmor %vm1859, %vm1860
  %v1862 = vsel %vm1861, %v1854, %v1858
  %v1863 = vand.u32 2147483647, %v1853
  %vm1864 = vcmp.eq.f32.partialorder %v1863, 8.507059e+37
  %v1865 = vand.u32 %v1853, 2147483648
  %v1866 = vor.u32 1.1754944e-38, %v1865
  %v1867 = vsel %vm1864, %v1866, %v1862
  %v1868 = vmul.f32 1.0, %v1867
  %v1869 = vmul.f32 %v1868, %v195
  %v1870 = vsub.f32 %v1869, %v196
  %v1871 = vsel %vm194, %v1795, %v1870
  %1872 = vrot.lane.b32.xlu0 %v1848, 64
  %v1873 = vpop.permute.xlu0 %1872
  %v1874 = vmul.f32 %v1873, %v1871
  %1875 = vrot.lane.b32.xlu0 %v1874, 64
  %v1876 = vpop.permute.xlu0 %1875
  %v1877 = vadd.f32 %v1874, %v1876
  %v1878 = vtanh.pop %v1877
  %v1879 = vmul.f32 %v1870, %v1878
  %v1880 = vld [vmem:[#allocation2 + $0x100] sm:$0xff]
  %v1881 = vld [vmem:[#allocation2 + $0x108] sm:$0xff]
  %v1882 = vpack.c.bf16 %v1879, %v1879
  %v1884 = vsel %vm472, %v1882, 0
  %1886 = vmatpush.bf16.msra.mxu0 0
  %1887 = vmatpush.bf16.msra.mxu0 0
  %1888 = vmatpush.bf16.msra.mxu0 0
  %1889 = vmatpush.bf16.msra.mxu0 0
  %1890 = vmatpush.bf16.msra.mxu0 %v462
  %1891 = vmatpush.bf16.msra.mxu0 %v460
  %1892 = vmatpush.bf16.msra.mxu0 %v458
  %1893 = vmatpush.bf16.msra.mxu0 %v456
  %1894 = vmatmul.bf16.gmra.mxu0 %v1884
  %v1895 = vpop.f32.mrf.mxu0
  %v1896 = vadd.f32 %v1880, %v1895
  %v1897 = vpop.f32.mrf.mxu0
  %1898 = vdwg.mxu0
  %1899 = vmatpush.bf16.msra.mxu0 0
  %1900 = vmatpush.bf16.msra.mxu0 0
  %1901 = vmatpush.bf16.msra.mxu0 0
  %1902 = vmatpush.bf16.msra.mxu0 0
  %1903 = vmatpush.bf16.msra.mxu0 %v463
  %1904 = vmatpush.bf16.msra.mxu0 %v461
  %1905 = vmatpush.bf16.msra.mxu0 %v459
  %1906 = vmatpush.bf16.msra.mxu0 %v457
  %1907 = vmatmul.bf16.gmra.mxu0 %v1884
  %v1908 = vpop.f32.mrf.mxu0
  %v1909 = vadd.f32 %v1881, %v1908
  %v1910 = vpop.f32.mrf.mxu0
  %1911 = vdwg.mxu0
  %v1912 = vxor.u32 %v1896, 2147483648
  %v1913 = vmul.f32 %v1912, 1.442695
  %v1914 = vpow.pop %v1913
  %v1915 = vadd.f32 %v1914, 1.0
  %v1916 = vrcp.pop %v1915
  %v1917 = vmul.f32 %v1915, %v1916
  %v1918 = vsub.f32 1.0, %v1917
  %v1919 = vmul.f32 %v1916, %v1918
  %v1920 = vadd.f32 %v1916, %v1919
  %vm1921 = vweird.f32 %v1915
  %vm1922 = vweird.f32 %v1916
  %vm1923 = vmor %vm1921, %vm1922
  %v1924 = vsel %vm1923, %v1916, %v1920
  %v1925 = vand.u32 2147483647, %v1915
  %vm1926 = vcmp.eq.f32.partialorder %v1925, 8.507059e+37
  %v1927 = vand.u32 %v1915, 2147483648
  %v1928 = vor.u32 1.1754944e-38, %v1927
  %v1929 = vsel %vm1926, %v1928, %v1924
  %v1930 = vmul.f32 1.0, %v1929
  %v1931 = vmul.f32 %v1909, %v195
  %v1932 = vxor.u32 %v1931, 2147483648
  %v1933 = vmul.f32 %v1932, 1.442695
  %v1934 = vpow.pop %v1933
  %v1935 = vadd.f32 %v1934, 1.0
  %v1936 = vrcp.pop %v1935
  %v1937 = vmul.f32 %v1935, %v1936
  %v1938 = vsub.f32 1.0, %v1937
  %v1939 = vmul.f32 %v1936, %v1938
  %v1940 = vadd.f32 %v1936, %v1939
  %vm1941 = vweird.f32 %v1935
  %vm1942 = vweird.f32 %v1936
  %vm1943 = vmor %vm1941, %vm1942
  %v1944 = vsel %vm1943, %v1936, %v1940
  %v1945 = vand.u32 2147483647, %v1935
  %vm1946 = vcmp.eq.f32.partialorder %v1945, 8.507059e+37
  %v1947 = vand.u32 %v1935, 2147483648
  %v1948 = vor.u32 1.1754944e-38, %v1947
  %v1949 = vsel %vm1946, %v1948, %v1944
  %v1950 = vmul.f32 1.0, %v1949
  %v1951 = vmul.f32 %v1950, %v195
  %v1952 = vsub.f32 %v1951, %v196
  %v1953 = vsel %vm194, %v1877, %v1952
  %1954 = vrot.lane.b32.xlu0 %v1930, 64
  %v1955 = vpop.permute.xlu0 %1954
  %v1956 = vmul.f32 %v1955, %v1953
  %1957 = vrot.lane.b32.xlu0 %v1956, 64
  %v1958 = vpop.permute.xlu0 %1957
  %v1959 = vadd.f32 %v1956, %v1958
  %v1960 = vtanh.pop %v1959
  %v1961 = vmul.f32 %v1952, %v1960
  %v1962 = vld [vmem:[#allocation2 + $0x110] sm:$0xff]
  %v1963 = vld [vmem:[#allocation2 + $0x118] sm:$0xff]
  %v1964 = vpack.c.bf16 %v1961, %v1961
  %v1966 = vsel %vm472, %v1964, 0
  %1968 = vmatpush.bf16.msra.mxu0 0
  %1969 = vmatpush.bf16.msra.mxu0 0
  %1970 = vmatpush.bf16.msra.mxu0 0
  %1971 = vmatpush.bf16.msra.mxu0 0
  %1972 = vmatpush.bf16.msra.mxu0 %v462
  %1973 = vmatpush.bf16.msra.mxu0 %v460
  %1974 = vmatpush.bf16.msra.mxu0 %v458
  %1975 = vmatpush.bf16.msra.mxu0 %v456
  %1976 = vmatmul.bf16.gmra.mxu0 %v1966
  %v1977 = vpop.f32.mrf.mxu0
  %v1978 = vadd.f32 %v1962, %v1977
  %v1979 = vpop.f32.mrf.mxu0
  %1980 = vdwg.mxu0
  %1981 = vmatpush.bf16.msra.mxu0 0
  %1982 = vmatpush.bf16.msra.mxu0 0
  %1983 = vmatpush.bf16.msra.mxu0 0
  %1984 = vmatpush.bf16.msra.mxu0 0
  %1985 = vmatpush.bf16.msra.mxu0 %v463
  %1986 = vmatpush.bf16.msra.mxu0 %v461
  %1987 = vmatpush.bf16.msra.mxu0 %v459
  %1988 = vmatpush.bf16.msra.mxu0 %v457
  %1989 = vmatmul.bf16.gmra.mxu0 %v1966
  %v1990 = vpop.f32.mrf.mxu0
  %v1991 = vadd.f32 %v1963, %v1990
  %v1992 = vpop.f32.mrf.mxu0
  %1993 = vdwg.mxu0
  %v1994 = vxor.u32 %v1978, 2147483648
  %v1995 = vmul.f32 %v1994, 1.442695
  %v1996 = vpow.pop %v1995
  %v1997 = vadd.f32 %v1996, 1.0
  %v1998 = vrcp.pop %v1997
  %v1999 = vmul.f32 %v1997, %v1998
  %v2000 = vsub.f32 1.0, %v1999
  %v2001 = vmul.f32 %v1998, %v2000
  %v2002 = vadd.f32 %v1998, %v2001
  %vm2003 = vweird.f32 %v1997
  %vm2004 = vweird.f32 %v1998
  %vm2005 = vmor %vm2003, %vm2004
  %v2006 = vsel %vm2005, %v1998, %v2002
  %v2007 = vand.u32 2147483647, %v1997
  %vm2008 = vcmp.eq.f32.partialorder %v2007, 8.507059e+37
  %v2009 = vand.u32 %v1997, 2147483648
  %v2010 = vor.u32 1.1754944e-38, %v2009
  %v2011 = vsel %vm2008, %v2010, %v2006
  %v2012 = vmul.f32 1.0, %v2011
  %v2013 = vmul.f32 %v1991, %v195
  %v2014 = vxor.u32 %v2013, 2147483648
  %v2015 = vmul.f32 %v2014, 1.442695
  %v2016 = vpow.pop %v2015
  %v2017 = vadd.f32 %v2016, 1.0
  %v2018 = vrcp.pop %v2017
  %v2019 = vmul.f32 %v2017, %v2018
  %v2020 = vsub.f32 1.0, %v2019
  %v2021 = vmul.f32 %v2018, %v2020
  %v2022 = vadd.f32 %v2018, %v2021
  %vm2023 = vweird.f32 %v2017
  %vm2024 = vweird.f32 %v2018
  %vm2025 = vmor %vm2023, %vm2024
  %v2026 = vsel %vm2025, %v2018, %v2022
  %v2027 = vand.u32 2147483647, %v2017
  %vm2028 = vcmp.eq.f32.partialorder %v2027, 8.507059e+37
  %v2029 = vand.u32 %v2017, 2147483648
  %v2030 = vor.u32 1.1754944e-38, %v2029
  %v2031 = vsel %vm2028, %v2030, %v2026
  %v2032 = vmul.f32 1.0, %v2031
  %v2033 = vmul.f32 %v2032, %v195
  %v2034 = vsub.f32 %v2033, %v196
  %v2035 = vsel %vm194, %v1959, %v2034
  %2036 = vrot.lane.b32.xlu0 %v2012, 64
  %v2037 = vpop.permute.xlu0 %2036
  %v2038 = vmul.f32 %v2037, %v2035
  %2039 = vrot.lane.b32.xlu0 %v2038, 64
  %v2040 = vpop.permute.xlu0 %2039
  %v2041 = vadd.f32 %v2038, %v2040
  %v2042 = vtanh.pop %v2041
  %v2043 = vmul.f32 %v2034, %v2042
  %v2044 = vld [vmem:[#allocation2 + $0x120] sm:$0xff]
  %v2045 = vld [vmem:[#allocation2 + $0x128] sm:$0xff]
  %v2046 = vpack.c.bf16 %v2043, %v2043
  %v2048 = vsel %vm472, %v2046, 0
  %2050 = vmatpush.bf16.msra.mxu0 0
  %2051 = vmatpush.bf16.msra.mxu0 0
  %2052 = vmatpush.bf16.msra.mxu0 0
  %2053 = vmatpush.bf16.msra.mxu0 0
  %2054 = vmatpush.bf16.msra.mxu0 %v462
  %2055 = vmatpush.bf16.msra.mxu0 %v460
  %2056 = vmatpush.bf16.msra.mxu0 %v458
  %2057 = vmatpush.bf16.msra.mxu0 %v456
  %2058 = vmatmul.bf16.gmra.mxu0 %v2048
  %v2059 = vpop.f32.mrf.mxu0
  %v2060 = vadd.f32 %v2044, %v2059
  %v2061 = vpop.f32.mrf.mxu0
  %2062 = vdwg.mxu0
  %2063 = vmatpush.bf16.msra.mxu0 0
  %2064 = vmatpush.bf16.msra.mxu0 0
  %2065 = vmatpush.bf16.msra.mxu0 0
  %2066 = vmatpush.bf16.msra.mxu0 0
  %2067 = vmatpush.bf16.msra.mxu0 %v463
  %2068 = vmatpush.bf16.msra.mxu0 %v461
  %2069 = vmatpush.bf16.msra.mxu0 %v459
  %2070 = vmatpush.bf16.msra.mxu0 %v457
  %2071 = vmatmul.bf16.gmra.mxu0 %v2048
  %v2072 = vpop.f32.mrf.mxu0
  %v2073 = vadd.f32 %v2045, %v2072
  %v2074 = vpop.f32.mrf.mxu0
  %2075 = vdwg.mxu0
  %v2076 = vxor.u32 %v2060, 2147483648
  %v2077 = vmul.f32 %v2076, 1.442695
  %v2078 = vpow.pop %v2077
  %v2079 = vadd.f32 %v2078, 1.0
  %v2080 = vrcp.pop %v2079
  %v2081 = vmul.f32 %v2079, %v2080
  %v2082 = vsub.f32 1.0, %v2081
  %v2083 = vmul.f32 %v2080, %v2082
  %v2084 = vadd.f32 %v2080, %v2083
  %vm2085 = vweird.f32 %v2079
  %vm2086 = vweird.f32 %v2080
  %vm2087 = vmor %vm2085, %vm2086
  %v2088 = vsel %vm2087, %v2080, %v2084
  %v2089 = vand.u32 2147483647, %v2079
  %vm2090 = vcmp.eq.f32.partialorder %v2089, 8.507059e+37
  %v2091 = vand.u32 %v2079, 2147483648
  %v2092 = vor.u32 1.1754944e-38, %v2091
  %v2093 = vsel %vm2090, %v2092, %v2088
  %v2094 = vmul.f32 1.0, %v2093
  %v2095 = vmul.f32 %v2073, %v195
  %v2096 = vxor.u32 %v2095, 2147483648
  %v2097 = vmul.f32 %v2096, 1.442695
  %v2098 = vpow.pop %v2097
  %v2099 = vadd.f32 %v2098, 1.0
  %v2100 = vrcp.pop %v2099
  %v2101 = vmul.f32 %v2099, %v2100
  %v2102 = vsub.f32 1.0, %v2101
  %v2103 = vmul.f32 %v2100, %v2102
  %v2104 = vadd.f32 %v2100, %v2103
  %vm2105 = vweird.f32 %v2099
  %vm2106 = vweird.f32 %v2100
  %vm2107 = vmor %vm2105, %vm2106
  %v2108 = vsel %vm2107, %v2100, %v2104
  %v2109 = vand.u32 2147483647, %v2099
  %vm2110 = vcmp.eq.f32.partialorder %v2109, 8.507059e+37
  %v2111 = vand.u32 %v2099, 2147483648
  %v2112 = vor.u32 1.1754944e-38, %v2111
  %v2113 = vsel %vm2110, %v2112, %v2108
  %v2114 = vmul.f32 1.0, %v2113
  %v2115 = vmul.f32 %v2114, %v195
  %v2116 = vsub.f32 %v2115, %v196
  %v2117 = vsel %vm194, %v2041, %v2116
  %2118 = vrot.lane.b32.xlu0 %v2094, 64
  %v2119 = vpop.permute.xlu0 %2118
  %v2120 = vmul.f32 %v2119, %v2117
  %2121 = vrot.lane.b32.xlu0 %v2120, 64
  %v2122 = vpop.permute.xlu0 %2121
  %v2123 = vadd.f32 %v2120, %v2122
  %v2124 = vtanh.pop %v2123
  %v2125 = vmul.f32 %v2116, %v2124
  %v2126 = vld [vmem:[#allocation2 + $0x130] sm:$0xff]
  %v2127 = vld [vmem:[#allocation2 + $0x138] sm:$0xff]
  %v2128 = vpack.c.bf16 %v2125, %v2125
  %v2130 = vsel %vm472, %v2128, 0
  %2132 = vmatpush.bf16.msra.mxu0 0
  %2133 = vmatpush.bf16.msra.mxu0 0
  %2134 = vmatpush.bf16.msra.mxu0 0
  %2135 = vmatpush.bf16.msra.mxu0 0
  %2136 = vmatpush.bf16.msra.mxu0 %v462
  %2137 = vmatpush.bf16.msra.mxu0 %v460
  %2138 = vmatpush.bf16.msra.mxu0 %v458
  %2139 = vmatpush.bf16.msra.mxu0 %v456
  %2140 = vmatmul.bf16.gmra.mxu0 %v2130
  %v2141 = vpop.f32.mrf.mxu0
  %v2142 = vadd.f32 %v2126, %v2141
  %v2143 = vpop.f32.mrf.mxu0
  %2144 = vdwg.mxu0
  %2145 = vmatpush.bf16.msra.mxu0 0
  %2146 = vmatpush.bf16.msra.mxu0 0
  %2147 = vmatpush.bf16.msra.mxu0 0
  %2148 = vmatpush.bf16.msra.mxu0 0
  %2149 = vmatpush.bf16.msra.mxu0 %v463
  %2150 = vmatpush.bf16.msra.mxu0 %v461
  %2151 = vmatpush.bf16.msra.mxu0 %v459
  %2152 = vmatpush.bf16.msra.mxu0 %v457
  %2153 = vmatmul.bf16.gmra.mxu0 %v2130
  %v2154 = vpop.f32.mrf.mxu0
  %v2155 = vadd.f32 %v2127, %v2154
  %v2156 = vpop.f32.mrf.mxu0
  %2157 = vdwg.mxu0
  %v2158 = vxor.u32 %v2142, 2147483648
  %v2159 = vmul.f32 %v2158, 1.442695
  %v2160 = vpow.pop %v2159
  %v2161 = vadd.f32 %v2160, 1.0
  %v2162 = vrcp.pop %v2161
  %v2163 = vmul.f32 %v2161, %v2162
  %v2164 = vsub.f32 1.0, %v2163
  %v2165 = vmul.f32 %v2162, %v2164
  %v2166 = vadd.f32 %v2162, %v2165
  %vm2167 = vweird.f32 %v2161
  %vm2168 = vweird.f32 %v2162
  %vm2169 = vmor %vm2167, %vm2168
  %v2170 = vsel %vm2169, %v2162, %v2166
  %v2171 = vand.u32 2147483647, %v2161
  %vm2172 = vcmp.eq.f32.partialorder %v2171, 8.507059e+37
  %v2173 = vand.u32 %v2161, 2147483648
  %v2174 = vor.u32 1.1754944e-38, %v2173
  %v2175 = vsel %vm2172, %v2174, %v2170
  %v2176 = vmul.f32 1.0, %v2175
  %v2177 = vmul.f32 %v2155, %v195
  %v2178 = vxor.u32 %v2177, 2147483648
  %v2179 = vmul.f32 %v2178, 1.442695
  %v2180 = vpow.pop %v2179
  %v2181 = vadd.f32 %v2180, 1.0
  %v2182 = vrcp.pop %v2181
  %v2183 = vmul.f32 %v2181, %v2182
  %v2184 = vsub.f32 1.0, %v2183
  %v2185 = vmul.f32 %v2182, %v2184
  %v2186 = vadd.f32 %v2182, %v2185
  %vm2187 = vweird.f32 %v2181
  %vm2188 = vweird.f32 %v2182
  %vm2189 = vmor %vm2187, %vm2188
  %v2190 = vsel %vm2189, %v2182, %v2186
  %v2191 = vand.u32 2147483647, %v2181
  %vm2192 = vcmp.eq.f32.partialorder %v2191, 8.507059e+37
  %v2193 = vand.u32 %v2181, 2147483648
  %v2194 = vor.u32 1.1754944e-38, %v2193
  %v2195 = vsel %vm2192, %v2194, %v2190
  %v2196 = vmul.f32 1.0, %v2195
  %v2197 = vmul.f32 %v2196, %v195
  %v2198 = vsub.f32 %v2197, %v196
  %v2199 = vsel %vm194, %v2123, %v2198
  %2200 = vrot.lane.b32.xlu0 %v2176, 64
  %v2201 = vpop.permute.xlu0 %2200
  %v2202 = vmul.f32 %v2201, %v2199
  %2203 = vrot.lane.b32.xlu0 %v2202, 64
  %v2204 = vpop.permute.xlu0 %2203
  %v2205 = vadd.f32 %v2202, %v2204
  %v2206 = vtanh.pop %v2205
  %v2207 = vmul.f32 %v2198, %v2206
  %v2208 = vld [vmem:[#allocation2 + $0x140] sm:$0xff]
  %v2209 = vld [vmem:[#allocation2 + $0x148] sm:$0xff]
  %v2210 = vpack.c.bf16 %v2207, %v2207
  %v2212 = vsel %vm472, %v2210, 0
  %2214 = vmatpush.bf16.msra.mxu0 0
  %2215 = vmatpush.bf16.msra.mxu0 0
  %2216 = vmatpush.bf16.msra.mxu0 0
  %2217 = vmatpush.bf16.msra.mxu0 0
  %2218 = vmatpush.bf16.msra.mxu0 %v462
  %2219 = vmatpush.bf16.msra.mxu0 %v460
  %2220 = vmatpush.bf16.msra.mxu0 %v458
  %2221 = vmatpush.bf16.msra.mxu0 %v456
  %2222 = vmatmul.bf16.gmra.mxu0 %v2212
  %v2223 = vpop.f32.mrf.mxu0
  %v2224 = vadd.f32 %v2208, %v2223
  %v2225 = vpop.f32.mrf.mxu0
  %2226 = vdwg.mxu0
  %2227 = vmatpush.bf16.msra.mxu0 0
  %2228 = vmatpush.bf16.msra.mxu0 0
  %2229 = vmatpush.bf16.msra.mxu0 0
  %2230 = vmatpush.bf16.msra.mxu0 0
  %2231 = vmatpush.bf16.msra.mxu0 %v463
  %2232 = vmatpush.bf16.msra.mxu0 %v461
  %2233 = vmatpush.bf16.msra.mxu0 %v459
  %2234 = vmatpush.bf16.msra.mxu0 %v457
  %2235 = vmatmul.bf16.gmra.mxu0 %v2212
  %v2236 = vpop.f32.mrf.mxu0
  %v2237 = vadd.f32 %v2209, %v2236
  %v2238 = vpop.f32.mrf.mxu0
  %2239 = vdwg.mxu0
  %v2240 = vxor.u32 %v2224, 2147483648
  %v2241 = vmul.f32 %v2240, 1.442695
  %v2242 = vpow.pop %v2241
  %v2243 = vadd.f32 %v2242, 1.0
  %v2244 = vrcp.pop %v2243
  %v2245 = vmul.f32 %v2243, %v2244
  %v2246 = vsub.f32 1.0, %v2245
  %v2247 = vmul.f32 %v2244, %v2246
  %v2248 = vadd.f32 %v2244, %v2247
  %vm2249 = vweird.f32 %v2243
  %vm2250 = vweird.f32 %v2244
  %vm2251 = vmor %vm2249, %vm2250
  %v2252 = vsel %vm2251, %v2244, %v2248
  %v2253 = vand.u32 2147483647, %v2243
  %vm2254 = vcmp.eq.f32.partialorder %v2253, 8.507059e+37
  %v2255 = vand.u32 %v2243, 2147483648
  %v2256 = vor.u32 1.1754944e-38, %v2255
  %v2257 = vsel %vm2254, %v2256, %v2252
  %v2258 = vmul.f32 1.0, %v2257
  %v2259 = vmul.f32 %v2237, %v195
  %v2260 = vxor.u32 %v2259, 2147483648
  %v2261 = vmul.f32 %v2260, 1.442695
  %v2262 = vpow.pop %v2261
  %v2263 = vadd.f32 %v2262, 1.0
  %v2264 = vrcp.pop %v2263
  %v2265 = vmul.f32 %v2263, %v2264
  %v2266 = vsub.f32 1.0, %v2265
  %v2267 = vmul.f32 %v2264, %v2266
  %v2268 = vadd.f32 %v2264, %v2267
  %vm2269 = vweird.f32 %v2263
  %vm2270 = vweird.f32 %v2264
  %vm2271 = vmor %vm2269, %vm2270
  %v2272 = vsel %vm2271, %v2264, %v2268
  %v2273 = vand.u32 2147483647, %v2263
  %vm2274 = vcmp.eq.f32.partialorder %v2273, 8.507059e+37
  %v2275 = vand.u32 %v2263, 2147483648
  %v2276 = vor.u32 1.1754944e-38, %v2275
  %v2277 = vsel %vm2274, %v2276, %v2272
  %v2278 = vmul.f32 1.0, %v2277
  %v2279 = vmul.f32 %v2278, %v195
  %v2280 = vsub.f32 %v2279, %v196
  %v2281 = vsel %vm194, %v2205, %v2280
  %2282 = vrot.lane.b32.xlu0 %v2258, 64
  %v2283 = vpop.permute.xlu0 %2282
  %v2284 = vmul.f32 %v2283, %v2281
  %2285 = vrot.lane.b32.xlu0 %v2284, 64
  %v2286 = vpop.permute.xlu0 %2285
  %v2287 = vadd.f32 %v2284, %v2286
  %v2288 = vtanh.pop %v2287
  %v2289 = vmul.f32 %v2280, %v2288
  %v2290 = vld [vmem:[#allocation2 + $0x150] sm:$0xff]
  %v2291 = vld [vmem:[#allocation2 + $0x158] sm:$0xff]
  %v2292 = vpack.c.bf16 %v2289, %v2289
  %v2294 = vsel %vm472, %v2292, 0
  %2296 = vmatpush.bf16.msra.mxu0 0
  %2297 = vmatpush.bf16.msra.mxu0 0
  %2298 = vmatpush.bf16.msra.mxu0 0
  %2299 = vmatpush.bf16.msra.mxu0 0
  %2300 = vmatpush.bf16.msra.mxu0 %v462
  %2301 = vmatpush.bf16.msra.mxu0 %v460
  %2302 = vmatpush.bf16.msra.mxu0 %v458
  %2303 = vmatpush.bf16.msra.mxu0 %v456
  %2304 = vmatmul.bf16.gmra.mxu0 %v2294
  %v2305 = vpop.f32.mrf.mxu0
  %v2306 = vadd.f32 %v2290, %v2305
  %v2307 = vpop.f32.mrf.mxu0
  %2308 = vdwg.mxu0
  %2309 = vmatpush.bf16.msra.mxu0 0
  %2310 = vmatpush.bf16.msra.mxu0 0
  %2311 = vmatpush.bf16.msra.mxu0 0
  %2312 = vmatpush.bf16.msra.mxu0 0
  %2313 = vmatpush.bf16.msra.mxu0 %v463
  %2314 = vmatpush.bf16.msra.mxu0 %v461
  %2315 = vmatpush.bf16.msra.mxu0 %v459
  %2316 = vmatpush.bf16.msra.mxu0 %v457
  %2317 = vmatmul.bf16.gmra.mxu0 %v2294
  %v2318 = vpop.f32.mrf.mxu0
  %v2319 = vadd.f32 %v2291, %v2318
  %v2320 = vpop.f32.mrf.mxu0
  %2321 = vdwg.mxu0
  %v2322 = vxor.u32 %v2306, 2147483648
  %v2323 = vmul.f32 %v2322, 1.442695
  %v2324 = vpow.pop %v2323
  %v2325 = vadd.f32 %v2324, 1.0
  %v2326 = vrcp.pop %v2325
  %v2327 = vmul.f32 %v2325, %v2326
  %v2328 = vsub.f32 1.0, %v2327
  %v2329 = vmul.f32 %v2326, %v2328
  %v2330 = vadd.f32 %v2326, %v2329
  %vm2331 = vweird.f32 %v2325
  %vm2332 = vweird.f32 %v2326
  %vm2333 = vmor %vm2331, %vm2332
  %v2334 = vsel %vm2333, %v2326, %v2330
  %v2335 = vand.u32 2147483647, %v2325
  %vm2336 = vcmp.eq.f32.partialorder %v2335, 8.507059e+37
  %v2337 = vand.u32 %v2325, 2147483648
  %v2338 = vor.u32 1.1754944e-38, %v2337
  %v2339 = vsel %vm2336, %v2338, %v2334
  %v2340 = vmul.f32 1.0, %v2339
  %v2341 = vmul.f32 %v2319, %v195
  %v2342 = vxor.u32 %v2341, 2147483648
  %v2343 = vmul.f32 %v2342, 1.442695
  %v2344 = vpow.pop %v2343
  %v2345 = vadd.f32 %v2344, 1.0
  %v2346 = vrcp.pop %v2345
  %v2347 = vmul.f32 %v2345, %v2346
  %v2348 = vsub.f32 1.0, %v2347
  %v2349 = vmul.f32 %v2346, %v2348
  %v2350 = vadd.f32 %v2346, %v2349
  %vm2351 = vweird.f32 %v2345
  %vm2352 = vweird.f32 %v2346
  %vm2353 = vmor %vm2351, %vm2352
  %v2354 = vsel %vm2353, %v2346, %v2350
  %v2355 = vand.u32 2147483647, %v2345
  %vm2356 = vcmp.eq.f32.partialorder %v2355, 8.507059e+37
  %v2357 = vand.u32 %v2345, 2147483648
  %v2358 = vor.u32 1.1754944e-38, %v2357
  %v2359 = vsel %vm2356, %v2358, %v2354
  %v2360 = vmul.f32 1.0, %v2359
  %v2361 = vmul.f32 %v2360, %v195
  %v2362 = vsub.f32 %v2361, %v196
  %v2363 = vsel %vm194, %v2287, %v2362
  %2364 = vrot.lane.b32.xlu0 %v2340, 64
  %v2365 = vpop.permute.xlu0 %2364
  %v2366 = vmul.f32 %v2365, %v2363
  %2367 = vrot.lane.b32.xlu0 %v2366, 64
  %v2368 = vpop.permute.xlu0 %2367
  %v2369 = vadd.f32 %v2366, %v2368
  %v2370 = vtanh.pop %v2369
  %v2371 = vmul.f32 %v2362, %v2370
  %v2372 = vld [vmem:[#allocation2 + $0x160] sm:$0xff]
  %v2373 = vld [vmem:[#allocation2 + $0x168] sm:$0xff]
  %v2374 = vpack.c.bf16 %v2371, %v2371
  %v2376 = vsel %vm472, %v2374, 0
  %2378 = vmatpush.bf16.msra.mxu0 0
  %2379 = vmatpush.bf16.msra.mxu0 0
  %2380 = vmatpush.bf16.msra.mxu0 0
  %2381 = vmatpush.bf16.msra.mxu0 0
  %2382 = vmatpush.bf16.msra.mxu0 %v462
  %2383 = vmatpush.bf16.msra.mxu0 %v460
  %2384 = vmatpush.bf16.msra.mxu0 %v458
  %2385 = vmatpush.bf16.msra.mxu0 %v456
  %2386 = vmatmul.bf16.gmra.mxu0 %v2376
  %v2387 = vpop.f32.mrf.mxu0
  %v2388 = vadd.f32 %v2372, %v2387
  %v2389 = vpop.f32.mrf.mxu0
  %2390 = vdwg.mxu0
  %2391 = vmatpush.bf16.msra.mxu0 0
  %2392 = vmatpush.bf16.msra.mxu0 0
  %2393 = vmatpush.bf16.msra.mxu0 0
  %2394 = vmatpush.bf16.msra.mxu0 0
  %2395 = vmatpush.bf16.msra.mxu0 %v463
  %2396 = vmatpush.bf16.msra.mxu0 %v461
  %2397 = vmatpush.bf16.msra.mxu0 %v459
  %2398 = vmatpush.bf16.msra.mxu0 %v457
  %2399 = vmatmul.bf16.gmra.mxu0 %v2376
  %v2400 = vpop.f32.mrf.mxu0
  %v2401 = vadd.f32 %v2373, %v2400
  %v2402 = vpop.f32.mrf.mxu0
  %2403 = vdwg.mxu0
  %v2404 = vxor.u32 %v2388, 2147483648
  %v2405 = vmul.f32 %v2404, 1.442695
  %v2406 = vpow.pop %v2405
  %v2407 = vadd.f32 %v2406, 1.0
  %v2408 = vrcp.pop %v2407
  %v2409 = vmul.f32 %v2407, %v2408
  %v2410 = vsub.f32 1.0, %v2409
  %v2411 = vmul.f32 %v2408, %v2410
  %v2412 = vadd.f32 %v2408, %v2411
  %vm2413 = vweird.f32 %v2407
  %vm2414 = vweird.f32 %v2408
  %vm2415 = vmor %vm2413, %vm2414
  %v2416 = vsel %vm2415, %v2408, %v2412
  %v2417 = vand.u32 2147483647, %v2407
  %vm2418 = vcmp.eq.f32.partialorder %v2417, 8.507059e+37
  %v2419 = vand.u32 %v2407, 2147483648
  %v2420 = vor.u32 1.1754944e-38, %v2419
  %v2421 = vsel %vm2418, %v2420, %v2416
  %v2422 = vmul.f32 1.0, %v2421
  %v2423 = vmul.f32 %v2401, %v195
  %v2424 = vxor.u32 %v2423, 2147483648
  %v2425 = vmul.f32 %v2424, 1.442695
  %v2426 = vpow.pop %v2425
  %v2427 = vadd.f32 %v2426, 1.0
  %v2428 = vrcp.pop %v2427
  %v2429 = vmul.f32 %v2427, %v2428
  %v2430 = vsub.f32 1.0, %v2429
  %v2431 = vmul.f32 %v2428, %v2430
  %v2432 = vadd.f32 %v2428, %v2431
  %vm2433 = vweird.f32 %v2427
  %vm2434 = vweird.f32 %v2428
  %vm2435 = vmor %vm2433, %vm2434
  %v2436 = vsel %vm2435, %v2428, %v2432
  %v2437 = vand.u32 2147483647, %v2427
  %vm2438 = vcmp.eq.f32.partialorder %v2437, 8.507059e+37
  %v2439 = vand.u32 %v2427, 2147483648
  %v2440 = vor.u32 1.1754944e-38, %v2439
  %v2441 = vsel %vm2438, %v2440, %v2436
  %v2442 = vmul.f32 1.0, %v2441
  %v2443 = vmul.f32 %v2442, %v195
  %v2444 = vsub.f32 %v2443, %v196
  %v2445 = vsel %vm194, %v2369, %v2444
  %2446 = vrot.lane.b32.xlu0 %v2422, 64
  %v2447 = vpop.permute.xlu0 %2446
  %v2448 = vmul.f32 %v2447, %v2445
  %2449 = vrot.lane.b32.xlu0 %v2448, 64
  %v2450 = vpop.permute.xlu0 %2449
  %v2451 = vadd.f32 %v2448, %v2450
  %v2452 = vtanh.pop %v2451
  %v2453 = vmul.f32 %v2444, %v2452
  %v2454 = vld [vmem:[#allocation2 + $0x170] sm:$0xff]
  %v2455 = vld [vmem:[#allocation2 + $0x178] sm:$0xff]
  %v2456 = vpack.c.bf16 %v2453, %v2453
  %v2458 = vsel %vm472, %v2456, 0
  %2460 = vmatpush.bf16.msra.mxu0 0
  %2461 = vmatpush.bf16.msra.mxu0 0
  %2462 = vmatpush.bf16.msra.mxu0 0
  %2463 = vmatpush.bf16.msra.mxu0 0
  %2464 = vmatpush.bf16.msra.mxu0 %v462
  %2465 = vmatpush.bf16.msra.mxu0 %v460
  %2466 = vmatpush.bf16.msra.mxu0 %v458
  %2467 = vmatpush.bf16.msra.mxu0 %v456
  %2468 = vmatmul.bf16.gmra.mxu0 %v2458
  %v2469 = vpop.f32.mrf.mxu0
  %v2470 = vadd.f32 %v2454, %v2469
  %v2471 = vpop.f32.mrf.mxu0
  %2472 = vdwg.mxu0
  %2473 = vmatpush.bf16.msra.mxu0 0
  %2474 = vmatpush.bf16.msra.mxu0 0
  %2475 = vmatpush.bf16.msra.mxu0 0
  %2476 = vmatpush.bf16.msra.mxu0 0
  %2477 = vmatpush.bf16.msra.mxu0 %v463
  %2478 = vmatpush.bf16.msra.mxu0 %v461
  %2479 = vmatpush.bf16.msra.mxu0 %v459
  %2480 = vmatpush.bf16.msra.mxu0 %v457
  %2481 = vmatmul.bf16.gmra.mxu0 %v2458
  %v2482 = vpop.f32.mrf.mxu0
  %v2483 = vadd.f32 %v2455, %v2482
  %v2484 = vpop.f32.mrf.mxu0
  %2485 = vdwg.mxu0
  %v2486 = vxor.u32 %v2470, 2147483648
  %v2487 = vmul.f32 %v2486, 1.442695
  %v2488 = vpow.pop %v2487
  %v2489 = vadd.f32 %v2488, 1.0
  %v2490 = vrcp.pop %v2489
  %v2491 = vmul.f32 %v2489, %v2490
  %v2492 = vsub.f32 1.0, %v2491
  %v2493 = vmul.f32 %v2490, %v2492
  %v2494 = vadd.f32 %v2490, %v2493
  %vm2495 = vweird.f32 %v2489
  %vm2496 = vweird.f32 %v2490
  %vm2497 = vmor %vm2495, %vm2496
  %v2498 = vsel %vm2497, %v2490, %v2494
  %v2499 = vand.u32 2147483647, %v2489
  %vm2500 = vcmp.eq.f32.partialorder %v2499, 8.507059e+37
  %v2501 = vand.u32 %v2489, 2147483648
  %v2502 = vor.u32 1.1754944e-38, %v2501
  %v2503 = vsel %vm2500, %v2502, %v2498
  %v2504 = vmul.f32 1.0, %v2503
  %v2505 = vmul.f32 %v2483, %v195
  %v2506 = vxor.u32 %v2505, 2147483648
  %v2507 = vmul.f32 %v2506, 1.442695
  %v2508 = vpow.pop %v2507
  %v2509 = vadd.f32 %v2508, 1.0
  %v2510 = vrcp.pop %v2509
  %v2511 = vmul.f32 %v2509, %v2510
  %v2512 = vsub.f32 1.0, %v2511
  %v2513 = vmul.f32 %v2510, %v2512
  %v2514 = vadd.f32 %v2510, %v2513
  %vm2515 = vweird.f32 %v2509
  %vm2516 = vweird.f32 %v2510
  %vm2517 = vmor %vm2515, %vm2516
  %v2518 = vsel %vm2517, %v2510, %v2514
  %v2519 = vand.u32 2147483647, %v2509
  %vm2520 = vcmp.eq.f32.partialorder %v2519, 8.507059e+37
  %v2521 = vand.u32 %v2509, 2147483648
  %v2522 = vor.u32 1.1754944e-38, %v2521
  %v2523 = vsel %vm2520, %v2522, %v2518
  %v2524 = vmul.f32 1.0, %v2523
  %v2525 = vmul.f32 %v2524, %v195
  %v2526 = vsub.f32 %v2525, %v196
  %v2527 = vsel %vm194, %v2451, %v2526
  %2528 = vrot.lane.b32.xlu0 %v2504, 64
  %v2529 = vpop.permute.xlu0 %2528
  %v2530 = vmul.f32 %v2529, %v2527
  %2531 = vrot.lane.b32.xlu0 %v2530, 64
  %v2532 = vpop.permute.xlu0 %2531
  %v2533 = vadd.f32 %v2530, %v2532
  %v2534 = vtanh.pop %v2533
  %v2535 = vmul.f32 %v2526, %v2534
  %v2536 = vld [vmem:[#allocation2 + $0x180] sm:$0xff]
  %v2537 = vld [vmem:[#allocation2 + $0x188] sm:$0xff]
  %v2538 = vpack.c.bf16 %v2535, %v2535
  %v2540 = vsel %vm472, %v2538, 0
  %2542 = vmatpush.bf16.msra.mxu0 0
  %2543 = vmatpush.bf16.msra.mxu0 0
  %2544 = vmatpush.bf16.msra.mxu0 0
  %2545 = vmatpush.bf16.msra.mxu0 0
  %2546 = vmatpush.bf16.msra.mxu0 %v462
  %2547 = vmatpush.bf16.msra.mxu0 %v460
  %2548 = vmatpush.bf16.msra.mxu0 %v458
  %2549 = vmatpush.bf16.msra.mxu0 %v456
  %2550 = vmatmul.bf16.gmra.mxu0 %v2540
  %v2551 = vpop.f32.mrf.mxu0
  %v2552 = vadd.f32 %v2536, %v2551
  %v2553 = vpop.f32.mrf.mxu0
  %2554 = vdwg.mxu0
  %2555 = vmatpush.bf16.msra.mxu0 0
  %2556 = vmatpush.bf16.msra.mxu0 0
  %2557 = vmatpush.bf16.msra.mxu0 0
  %2558 = vmatpush.bf16.msra.mxu0 0
  %2559 = vmatpush.bf16.msra.mxu0 %v463
  %2560 = vmatpush.bf16.msra.mxu0 %v461
  %2561 = vmatpush.bf16.msra.mxu0 %v459
  %2562 = vmatpush.bf16.msra.mxu0 %v457
  %2563 = vmatmul.bf16.gmra.mxu0 %v2540
  %v2564 = vpop.f32.mrf.mxu0
  %v2565 = vadd.f32 %v2537, %v2564
  %v2566 = vpop.f32.mrf.mxu0
  %2567 = vdwg.mxu0
  %v2568 = vxor.u32 %v2552, 2147483648
  %v2569 = vmul.f32 %v2568, 1.442695
  %v2570 = vpow.pop %v2569
  %v2571 = vadd.f32 %v2570, 1.0
  %v2572 = vrcp.pop %v2571
  %v2573 = vmul.f32 %v2571, %v2572
  %v2574 = vsub.f32 1.0, %v2573
  %v2575 = vmul.f32 %v2572, %v2574
  %v2576 = vadd.f32 %v2572, %v2575
  %vm2577 = vweird.f32 %v2571
  %vm2578 = vweird.f32 %v2572
  %vm2579 = vmor %vm2577, %vm2578
  %v2580 = vsel %vm2579, %v2572, %v2576
  %v2581 = vand.u32 2147483647, %v2571
  %vm2582 = vcmp.eq.f32.partialorder %v2581, 8.507059e+37
  %v2583 = vand.u32 %v2571, 2147483648
  %v2584 = vor.u32 1.1754944e-38, %v2583
  %v2585 = vsel %vm2582, %v2584, %v2580
  %v2586 = vmul.f32 1.0, %v2585
  %v2587 = vmul.f32 %v2565, %v195
  %v2588 = vxor.u32 %v2587, 2147483648
  %v2589 = vmul.f32 %v2588, 1.442695
  %v2590 = vpow.pop %v2589
  %v2591 = vadd.f32 %v2590, 1.0
  %v2592 = vrcp.pop %v2591
  %v2593 = vmul.f32 %v2591, %v2592
  %v2594 = vsub.f32 1.0, %v2593
  %v2595 = vmul.f32 %v2592, %v2594
  %v2596 = vadd.f32 %v2592, %v2595
  %vm2597 = vweird.f32 %v2591
  %vm2598 = vweird.f32 %v2592
  %vm2599 = vmor %vm2597, %vm2598
  %v2600 = vsel %vm2599, %v2592, %v2596
  %v2601 = vand.u32 2147483647, %v2591
  %vm2602 = vcmp.eq.f32.partialorder %v2601, 8.507059e+37
  %v2603 = vand.u32 %v2591, 2147483648
  %v2604 = vor.u32 1.1754944e-38, %v2603
  %v2605 = vsel %vm2602, %v2604, %v2600
  %v2606 = vmul.f32 1.0, %v2605
  %v2607 = vmul.f32 %v2606, %v195
  %v2608 = vsub.f32 %v2607, %v196
  %v2609 = vsel %vm194, %v2533, %v2608
  %2610 = vrot.lane.b32.xlu0 %v2586, 64
  %v2611 = vpop.permute.xlu0 %2610
  %v2612 = vmul.f32 %v2611, %v2609
  %2613 = vrot.lane.b32.xlu0 %v2612, 64
  %v2614 = vpop.permute.xlu0 %2613
  %v2615 = vadd.f32 %v2612, %v2614
  %v2616 = vtanh.pop %v2615
  %v2617 = vmul.f32 %v2608, %v2616
  %v2618 = vld [vmem:[#allocation2 + $0x190] sm:$0xff]
  %v2619 = vld [vmem:[#allocation2 + $0x198] sm:$0xff]
  %v2620 = vpack.c.bf16 %v2617, %v2617
  %v2622 = vsel %vm472, %v2620, 0
  %2624 = vmatpush.bf16.msra.mxu0 0
  %2625 = vmatpush.bf16.msra.mxu0 0
  %2626 = vmatpush.bf16.msra.mxu0 0
  %2627 = vmatpush.bf16.msra.mxu0 0
  %2628 = vmatpush.bf16.msra.mxu0 %v462
  %2629 = vmatpush.bf16.msra.mxu0 %v460
  %2630 = vmatpush.bf16.msra.mxu0 %v458
  %2631 = vmatpush.bf16.msra.mxu0 %v456
  %2632 = vmatmul.bf16.gmra.mxu0 %v2622
  %v2633 = vpop.f32.mrf.mxu0
  %v2634 = vadd.f32 %v2618, %v2633
  %v2635 = vpop.f32.mrf.mxu0
  %2636 = vdwg.mxu0
  %2637 = vmatpush.bf16.msra.mxu0 0
  %2638 = vmatpush.bf16.msra.mxu0 0
  %2639 = vmatpush.bf16.msra.mxu0 0
  %2640 = vmatpush.bf16.msra.mxu0 0
  %2641 = vmatpush.bf16.msra.mxu0 %v463
  %2642 = vmatpush.bf16.msra.mxu0 %v461
  %2643 = vmatpush.bf16.msra.mxu0 %v459
  %2644 = vmatpush.bf16.msra.mxu0 %v457
  %2645 = vmatmul.bf16.gmra.mxu0 %v2622
  %v2646 = vpop.f32.mrf.mxu0
  %v2647 = vadd.f32 %v2619, %v2646
  %v2648 = vpop.f32.mrf.mxu0
  %2649 = vdwg.mxu0
  %v2650 = vxor.u32 %v2634, 2147483648
  %v2651 = vmul.f32 %v2650, 1.442695
  %v2652 = vpow.pop %v2651
  %v2653 = vadd.f32 %v2652, 1.0
  %v2654 = vrcp.pop %v2653
  %v2655 = vmul.f32 %v2653, %v2654
  %v2656 = vsub.f32 1.0, %v2655
  %v2657 = vmul.f32 %v2654, %v2656
  %v2658 = vadd.f32 %v2654, %v2657
  %vm2659 = vweird.f32 %v2653
  %vm2660 = vweird.f32 %v2654
  %vm2661 = vmor %vm2659, %vm2660
  %v2662 = vsel %vm2661, %v2654, %v2658
  %v2663 = vand.u32 2147483647, %v2653
  %vm2664 = vcmp.eq.f32.partialorder %v2663, 8.507059e+37
  %v2665 = vand.u32 %v2653, 2147483648
  %v2666 = vor.u32 1.1754944e-38, %v2665
  %v2667 = vsel %vm2664, %v2666, %v2662
  %v2668 = vmul.f32 1.0, %v2667
  %v2669 = vmul.f32 %v2647, %v195
  %v2670 = vxor.u32 %v2669, 2147483648
  %v2671 = vmul.f32 %v2670, 1.442695
  %v2672 = vpow.pop %v2671
  %v2673 = vadd.f32 %v2672, 1.0
  %v2674 = vrcp.pop %v2673
  %v2675 = vmul.f32 %v2673, %v2674
  %v2676 = vsub.f32 1.0, %v2675
  %v2677 = vmul.f32 %v2674, %v2676
  %v2678 = vadd.f32 %v2674, %v2677
  %vm2679 = vweird.f32 %v2673
  %vm2680 = vweird.f32 %v2674
  %vm2681 = vmor %vm2679, %vm2680
  %v2682 = vsel %vm2681, %v2674, %v2678
  %v2683 = vand.u32 2147483647, %v2673
  %vm2684 = vcmp.eq.f32.partialorder %v2683, 8.507059e+37
  %v2685 = vand.u32 %v2673, 2147483648
  %v2686 = vor.u32 1.1754944e-38, %v2685
  %v2687 = vsel %vm2684, %v2686, %v2682
  %v2688 = vmul.f32 1.0, %v2687
  %v2689 = vmul.f32 %v2688, %v195
  %v2690 = vsub.f32 %v2689, %v196
  %v2691 = vsel %vm194, %v2615, %v2690
  %2692 = vrot.lane.b32.xlu0 %v2668, 64
  %v2693 = vpop.permute.xlu0 %2692
  %v2694 = vmul.f32 %v2693, %v2691
  %2695 = vrot.lane.b32.xlu0 %v2694, 64
  %v2696 = vpop.permute.xlu0 %2695
  %v2697 = vadd.f32 %v2694, %v2696
  %v2698 = vtanh.pop %v2697
  %v2699 = vmul.f32 %v2690, %v2698
  %v2700 = vld [vmem:[#allocation2 + $0x1a0] sm:$0xff]
  %v2701 = vld [vmem:[#allocation2 + $0x1a8] sm:$0xff]
  %v2702 = vpack.c.bf16 %v2699, %v2699
  %v2704 = vsel %vm472, %v2702, 0
  %2706 = vmatpush.bf16.msra.mxu0 0
  %2707 = vmatpush.bf16.msra.mxu0 0
  %2708 = vmatpush.bf16.msra.mxu0 0
  %2709 = vmatpush.bf16.msra.mxu0 0
  %2710 = vmatpush.bf16.msra.mxu0 %v462
  %2711 = vmatpush.bf16.msra.mxu0 %v460
  %2712 = vmatpush.bf16.msra.mxu0 %v458
  %2713 = vmatpush.bf16.msra.mxu0 %v456
  %2714 = vmatmul.bf16.gmra.mxu0 %v2704
  %v2715 = vpop.f32.mrf.mxu0
  %v2716 = vadd.f32 %v2700, %v2715
  %v2717 = vpop.f32.mrf.mxu0
  %2718 = vdwg.mxu0
  %2719 = vmatpush.bf16.msra.mxu0 0
  %2720 = vmatpush.bf16.msra.mxu0 0
  %2721 = vmatpush.bf16.msra.mxu0 0
  %2722 = vmatpush.bf16.msra.mxu0 0
  %2723 = vmatpush.bf16.msra.mxu0 %v463
  %2724 = vmatpush.bf16.msra.mxu0 %v461
  %2725 = vmatpush.bf16.msra.mxu0 %v459
  %2726 = vmatpush.bf16.msra.mxu0 %v457
  %2727 = vmatmul.bf16.gmra.mxu0 %v2704
  %v2728 = vpop.f32.mrf.mxu0
  %v2729 = vadd.f32 %v2701, %v2728
  %v2730 = vpop.f32.mrf.mxu0
  %2731 = vdwg.mxu0
  %v2732 = vxor.u32 %v2716, 2147483648
  %v2733 = vmul.f32 %v2732, 1.442695
  %v2734 = vpow.pop %v2733
  %v2735 = vadd.f32 %v2734, 1.0
  %v2736 = vrcp.pop %v2735
  %v2737 = vmul.f32 %v2735, %v2736
  %v2738 = vsub.f32 1.0, %v2737
  %v2739 = vmul.f32 %v2736, %v2738
  %v2740 = vadd.f32 %v2736, %v2739
  %vm2741 = vweird.f32 %v2735
  %vm2742 = vweird.f32 %v2736
  %vm2743 = vmor %vm2741, %vm2742
  %v2744 = vsel %vm2743, %v2736, %v2740
  %v2745 = vand.u32 2147483647, %v2735
  %vm2746 = vcmp.eq.f32.partialorder %v2745, 8.507059e+37
  %v2747 = vand.u32 %v2735, 2147483648
  %v2748 = vor.u32 1.1754944e-38, %v2747
  %v2749 = vsel %vm2746, %v2748, %v2744
  %v2750 = vmul.f32 1.0, %v2749
  %v2751 = vmul.f32 %v2729, %v195
  %v2752 = vxor.u32 %v2751, 2147483648
  %v2753 = vmul.f32 %v2752, 1.442695
  %v2754 = vpow.pop %v2753
  %v2755 = vadd.f32 %v2754, 1.0
  %v2756 = vrcp.pop %v2755
  %v2757 = vmul.f32 %v2755, %v2756
  %v2758 = vsub.f32 1.0, %v2757
  %v2759 = vmul.f32 %v2756, %v2758
  %v2760 = vadd.f32 %v2756, %v2759
  %vm2761 = vweird.f32 %v2755
  %vm2762 = vweird.f32 %v2756
  %vm2763 = vmor %vm2761, %vm2762
  %v2764 = vsel %vm2763, %v2756, %v2760
  %v2765 = vand.u32 2147483647, %v2755
  %vm2766 = vcmp.eq.f32.partialorder %v2765, 8.507059e+37
  %v2767 = vand.u32 %v2755, 2147483648
  %v2768 = vor.u32 1.1754944e-38, %v2767
  %v2769 = vsel %vm2766, %v2768, %v2764
  %v2770 = vmul.f32 1.0, %v2769
  %v2771 = vmul.f32 %v2770, %v195
  %v2772 = vsub.f32 %v2771, %v196
  %v2773 = vsel %vm194, %v2697, %v2772
  %2774 = vrot.lane.b32.xlu0 %v2750, 64
  %v2775 = vpop.permute.xlu0 %2774
  %v2776 = vmul.f32 %v2775, %v2773
  %2777 = vrot.lane.b32.xlu0 %v2776, 64
  %v2778 = vpop.permute.xlu0 %2777
  %v2779 = vadd.f32 %v2776, %v2778
  %v2780 = vtanh.pop %v2779
  %v2781 = vmul.f32 %v2772, %v2780
  %v2782 = vld [vmem:[#allocation2 + $0x1b0] sm:$0xff]
  %v2783 = vld [vmem:[#allocation2 + $0x1b8] sm:$0xff]
  %v2784 = vpack.c.bf16 %v2781, %v2781
  %v2786 = vsel %vm472, %v2784, 0
  %2788 = vmatpush.bf16.msra.mxu0 0
  %2789 = vmatpush.bf16.msra.mxu0 0
  %2790 = vmatpush.bf16.msra.mxu0 0
  %2791 = vmatpush.bf16.msra.mxu0 0
  %2792 = vmatpush.bf16.msra.mxu0 %v462
  %2793 = vmatpush.bf16.msra.mxu0 %v460
  %2794 = vmatpush.bf16.msra.mxu0 %v458
  %2795 = vmatpush.bf16.msra.mxu0 %v456
  %2796 = vmatmul.bf16.gmra.mxu0 %v2786
  %v2797 = vpop.f32.mrf.mxu0
  %v2798 = vadd.f32 %v2782, %v2797
  %v2799 = vpop.f32.mrf.mxu0
  %2800 = vdwg.mxu0
  %2801 = vmatpush.bf16.msra.mxu0 0
  %2802 = vmatpush.bf16.msra.mxu0 0
  %2803 = vmatpush.bf16.msra.mxu0 0
  %2804 = vmatpush.bf16.msra.mxu0 0
  %2805 = vmatpush.bf16.msra.mxu0 %v463
  %2806 = vmatpush.bf16.msra.mxu0 %v461
  %2807 = vmatpush.bf16.msra.mxu0 %v459
  %2808 = vmatpush.bf16.msra.mxu0 %v457
  %2809 = vmatmul.bf16.gmra.mxu0 %v2786
  %v2810 = vpop.f32.mrf.mxu0
  %v2811 = vadd.f32 %v2783, %v2810
  %v2812 = vpop.f32.mrf.mxu0
  %2813 = vdwg.mxu0
  %v2814 = vxor.u32 %v2798, 2147483648
  %v2815 = vmul.f32 %v2814, 1.442695
  %v2816 = vpow.pop %v2815
  %v2817 = vadd.f32 %v2816, 1.0
  %v2818 = vrcp.pop %v2817
  %v2819 = vmul.f32 %v2817, %v2818
  %v2820 = vsub.f32 1.0, %v2819
  %v2821 = vmul.f32 %v2818, %v2820
  %v2822 = vadd.f32 %v2818, %v2821
  %vm2823 = vweird.f32 %v2817
  %vm2824 = vweird.f32 %v2818
  %vm2825 = vmor %vm2823, %vm2824
  %v2826 = vsel %vm2825, %v2818, %v2822
  %v2827 = vand.u32 2147483647, %v2817
  %vm2828 = vcmp.eq.f32.partialorder %v2827, 8.507059e+37
  %v2829 = vand.u32 %v2817, 2147483648
  %v2830 = vor.u32 1.1754944e-38, %v2829
  %v2831 = vsel %vm2828, %v2830, %v2826
  %v2832 = vmul.f32 1.0, %v2831
  %v2833 = vmul.f32 %v2811, %v195
  %v2834 = vxor.u32 %v2833, 2147483648
  %v2835 = vmul.f32 %v2834, 1.442695
  %v2836 = vpow.pop %v2835
  %v2837 = vadd.f32 %v2836, 1.0
  %v2838 = vrcp.pop %v2837
  %v2839 = vmul.f32 %v2837, %v2838
  %v2840 = vsub.f32 1.0, %v2839
  %v2841 = vmul.f32 %v2838, %v2840
  %v2842 = vadd.f32 %v2838, %v2841
  %vm2843 = vweird.f32 %v2837
  %vm2844 = vweird.f32 %v2838
  %vm2845 = vmor %vm2843, %vm2844
  %v2846 = vsel %vm2845, %v2838, %v2842
  %v2847 = vand.u32 2147483647, %v2837
  %vm2848 = vcmp.eq.f32.partialorder %v2847, 8.507059e+37
  %v2849 = vand.u32 %v2837, 2147483648
  %v2850 = vor.u32 1.1754944e-38, %v2849
  %v2851 = vsel %vm2848, %v2850, %v2846
  %v2852 = vmul.f32 1.0, %v2851
  %v2853 = vmul.f32 %v2852, %v195
  %v2854 = vsub.f32 %v2853, %v196
  %v2855 = vsel %vm194, %v2779, %v2854
  %2856 = vrot.lane.b32.xlu0 %v2832, 64
  %v2857 = vpop.permute.xlu0 %2856
  %v2858 = vmul.f32 %v2857, %v2855
  %2859 = vrot.lane.b32.xlu0 %v2858, 64
  %v2860 = vpop.permute.xlu0 %2859
  %v2861 = vadd.f32 %v2858, %v2860
  %v2862 = vtanh.pop %v2861
  %v2863 = vmul.f32 %v2854, %v2862
  %v2864 = vld [vmem:[#allocation2 + $0x1c0] sm:$0xff]
  %v2865 = vld [vmem:[#allocation2 + $0x1c8] sm:$0xff]
  %v2866 = vpack.c.bf16 %v2863, %v2863
  %v2868 = vsel %vm472, %v2866, 0
  %2870 = vmatpush.bf16.msra.mxu0 0
  %2871 = vmatpush.bf16.msra.mxu0 0
  %2872 = vmatpush.bf16.msra.mxu0 0
  %2873 = vmatpush.bf16.msra.mxu0 0
  %2874 = vmatpush.bf16.msra.mxu0 %v462
  %2875 = vmatpush.bf16.msra.mxu0 %v460
  %2876 = vmatpush.bf16.msra.mxu0 %v458
  %2877 = vmatpush.bf16.msra.mxu0 %v456
  %2878 = vmatmul.bf16.gmra.mxu0 %v2868
  %v2879 = vpop.f32.mrf.mxu0
  %v2880 = vadd.f32 %v2864, %v2879
  %v2881 = vpop.f32.mrf.mxu0
  %2882 = vdwg.mxu0
  %2883 = vmatpush.bf16.msra.mxu0 0
  %2884 = vmatpush.bf16.msra.mxu0 0
  %2885 = vmatpush.bf16.msra.mxu0 0
  %2886 = vmatpush.bf16.msra.mxu0 0
  %2887 = vmatpush.bf16.msra.mxu0 %v463
  %2888 = vmatpush.bf16.msra.mxu0 %v461
  %2889 = vmatpush.bf16.msra.mxu0 %v459
  %2890 = vmatpush.bf16.msra.mxu0 %v457
  %2891 = vmatmul.bf16.gmra.mxu0 %v2868
  %v2892 = vpop.f32.mrf.mxu0
  %v2893 = vadd.f32 %v2865, %v2892
  %v2894 = vpop.f32.mrf.mxu0
  %2895 = vdwg.mxu0
  %v2896 = vxor.u32 %v2880, 2147483648
  %v2897 = vmul.f32 %v2896, 1.442695
  %v2898 = vpow.pop %v2897
  %v2899 = vadd.f32 %v2898, 1.0
  %v2900 = vrcp.pop %v2899
  %v2901 = vmul.f32 %v2899, %v2900
  %v2902 = vsub.f32 1.0, %v2901
  %v2903 = vmul.f32 %v2900, %v2902
  %v2904 = vadd.f32 %v2900, %v2903
  %vm2905 = vweird.f32 %v2899
  %vm2906 = vweird.f32 %v2900
  %vm2907 = vmor %vm2905, %vm2906
  %v2908 = vsel %vm2907, %v2900, %v2904
  %v2909 = vand.u32 2147483647, %v2899
  %vm2910 = vcmp.eq.f32.partialorder %v2909, 8.507059e+37
  %v2911 = vand.u32 %v2899, 2147483648
  %v2912 = vor.u32 1.1754944e-38, %v2911
  %v2913 = vsel %vm2910, %v2912, %v2908
  %v2914 = vmul.f32 1.0, %v2913
  %v2915 = vmul.f32 %v2893, %v195
  %v2916 = vxor.u32 %v2915, 2147483648
  %v2917 = vmul.f32 %v2916, 1.442695
  %v2918 = vpow.pop %v2917
  %v2919 = vadd.f32 %v2918, 1.0
  %v2920 = vrcp.pop %v2919
  %v2921 = vmul.f32 %v2919, %v2920
  %v2922 = vsub.f32 1.0, %v2921
  %v2923 = vmul.f32 %v2920, %v2922
  %v2924 = vadd.f32 %v2920, %v2923
  %vm2925 = vweird.f32 %v2919
  %vm2926 = vweird.f32 %v2920
  %vm2927 = vmor %vm2925, %vm2926
  %v2928 = vsel %vm2927, %v2920, %v2924
  %v2929 = vand.u32 2147483647, %v2919
  %vm2930 = vcmp.eq.f32.partialorder %v2929, 8.507059e+37
  %v2931 = vand.u32 %v2919, 2147483648
  %v2932 = vor.u32 1.1754944e-38, %v2931
  %v2933 = vsel %vm2930, %v2932, %v2928
  %v2934 = vmul.f32 1.0, %v2933
  %v2935 = vmul.f32 %v2934, %v195
  %v2936 = vsub.f32 %v2935, %v196
  %v2937 = vsel %vm194, %v2861, %v2936
  %2938 = vrot.lane.b32.xlu0 %v2914, 64
  %v2939 = vpop.permute.xlu0 %2938
  %v2940 = vmul.f32 %v2939, %v2937
  %2941 = vrot.lane.b32.xlu0 %v2940, 64
  %v2942 = vpop.permute.xlu0 %2941
  %v2943 = vadd.f32 %v2940, %v2942
  %v2944 = vtanh.pop %v2943
  %v2945 = vmul.f32 %v2936, %v2944
  %v2946 = vld [vmem:[#allocation2 + $0x1d0] sm:$0xff]
  %v2947 = vld [vmem:[#allocation2 + $0x1d8] sm:$0xff]
  %v2948 = vpack.c.bf16 %v2945, %v2945
  %v2950 = vsel %vm472, %v2948, 0
  %2952 = vmatpush.bf16.msra.mxu0 0
  %2953 = vmatpush.bf16.msra.mxu0 0
  %2954 = vmatpush.bf16.msra.mxu0 0
  %2955 = vmatpush.bf16.msra.mxu0 0
  %2956 = vmatpush.bf16.msra.mxu0 %v462
  %2957 = vmatpush.bf16.msra.mxu0 %v460
  %2958 = vmatpush.bf16.msra.mxu0 %v458
  %2959 = vmatpush.bf16.msra.mxu0 %v456
  %2960 = vmatmul.bf16.gmra.mxu0 %v2950
  %v2961 = vpop.f32.mrf.mxu0
  %v2962 = vadd.f32 %v2946, %v2961
  %v2963 = vpop.f32.mrf.mxu0
  %2964 = vdwg.mxu0
  %2965 = vmatpush.bf16.msra.mxu0 0
  %2966 = vmatpush.bf16.msra.mxu0 0
  %2967 = vmatpush.bf16.msra.mxu0 0
  %2968 = vmatpush.bf16.msra.mxu0 0
  %2969 = vmatpush.bf16.msra.mxu0 %v463
  %2970 = vmatpush.bf16.msra.mxu0 %v461
  %2971 = vmatpush.bf16.msra.mxu0 %v459
  %2972 = vmatpush.bf16.msra.mxu0 %v457
  %2973 = vmatmul.bf16.gmra.mxu0 %v2950
  %v2974 = vpop.f32.mrf.mxu0
  %v2975 = vadd.f32 %v2947, %v2974
  %v2976 = vpop.f32.mrf.mxu0
  %2977 = vdwg.mxu0
  %v2978 = vxor.u32 %v2962, 2147483648
  %v2979 = vmul.f32 %v2978, 1.442695
  %v2980 = vpow.pop %v2979
  %v2981 = vadd.f32 %v2980, 1.0
  %v2982 = vrcp.pop %v2981
  %v2983 = vmul.f32 %v2981, %v2982
  %v2984 = vsub.f32 1.0, %v2983
  %v2985 = vmul.f32 %v2982, %v2984
  %v2986 = vadd.f32 %v2982, %v2985
  %vm2987 = vweird.f32 %v2981
  %vm2988 = vweird.f32 %v2982
  %vm2989 = vmor %vm2987, %vm2988
  %v2990 = vsel %vm2989, %v2982, %v2986
  %v2991 = vand.u32 2147483647, %v2981
  %vm2992 = vcmp.eq.f32.partialorder %v2991, 8.507059e+37
  %v2993 = vand.u32 %v2981, 2147483648
  %v2994 = vor.u32 1.1754944e-38, %v2993
  %v2995 = vsel %vm2992, %v2994, %v2990
  %v2996 = vmul.f32 1.0, %v2995
  %v2997 = vmul.f32 %v2975, %v195
  %v2998 = vxor.u32 %v2997, 2147483648
  %v2999 = vmul.f32 %v2998, 1.442695
  %v3000 = vpow.pop %v2999
  %v3001 = vadd.f32 %v3000, 1.0
  %v3002 = vrcp.pop %v3001
  %v3003 = vmul.f32 %v3001, %v3002
  %v3004 = vsub.f32 1.0, %v3003
  %v3005 = vmul.f32 %v3002, %v3004
  %v3006 = vadd.f32 %v3002, %v3005
  %vm3007 = vweird.f32 %v3001
  %vm3008 = vweird.f32 %v3002
  %vm3009 = vmor %vm3007, %vm3008
  %v3010 = vsel %vm3009, %v3002, %v3006
  %v3011 = vand.u32 2147483647, %v3001
  %vm3012 = vcmp.eq.f32.partialorder %v3011, 8.507059e+37
  %v3013 = vand.u32 %v3001, 2147483648
  %v3014 = vor.u32 1.1754944e-38, %v3013
  %v3015 = vsel %vm3012, %v3014, %v3010
  %v3016 = vmul.f32 1.0, %v3015
  %v3017 = vmul.f32 %v3016, %v195
  %v3018 = vsub.f32 %v3017, %v196
  %v3019 = vsel %vm194, %v2943, %v3018
  %3020 = vrot.lane.b32.xlu0 %v2996, 64
  %v3021 = vpop.permute.xlu0 %3020
  %v3022 = vmul.f32 %v3021, %v3019
  %3023 = vrot.lane.b32.xlu0 %v3022, 64
  %v3024 = vpop.permute.xlu0 %3023
  %v3025 = vadd.f32 %v3022, %v3024
  %v3026 = vtanh.pop %v3025
  %v3027 = vmul.f32 %v3018, %v3026
  %v3029 = vrot.slane %v3027, 2
  %3030 = vrot.lane.b32.xlu0 %v3029, 64
  %v3031 = vpop.permute.xlu0 %3030
  %v3033 = vsel %vm472, %v3027, %v3031
  %v3034 = vld [vmem:[%s4] sm:$0xff]
  %v3035 = vld [vmem:[%s4 + $0x8] sm:$0xff]
  %v3036 = vld [vmem:[%s4 + $0x10] sm:$0xff]
  %v3037 = vld [vmem:[%s4 + $0x18] sm:$0xff]
  %v3038 = vld [vmem:[%s4 + $0x20] sm:$0xff]
  %v3039 = vld [vmem:[%s4 + $0x28] sm:$0xff]
  %v3040 = vld [vmem:[%s4 + $0x30] sm:$0xff]
  %v3041 = vld [vmem:[%s4 + $0x38] sm:$0xff]
  %v3042 = vld [vmem:[%s4 + $0x40] sm:$0xff]
  %v3043 = vld [vmem:[%s4 + $0x48] sm:$0xff]
  %v3044 = vld [vmem:[%s4 + $0x50] sm:$0xff]
  %v3045 = vld [vmem:[%s4 + $0x58] sm:$0xff]
  %v3046 = vld [vmem:[%s4 + $0x60] sm:$0xff]
  %v3047 = vld [vmem:[%s4 + $0x68] sm:$0xff]
  %v3048 = vld [vmem:[%s4 + $0x70] sm:$0xff]
  %v3049 = vld [vmem:[%s4 + $0x78] sm:$0xff]
  %v3050 = vld [vmem:[%s5] sm:$0x1]
  %v3052 = vperm.slane %v3050, 0
  %3054 = vmatpush.msra.mxu0 %v3049
  %3055 = vmatpush.msra.mxu0 %v3048
  %3056 = vmatpush.msra.mxu0 %v3047
  %3057 = vmatpush.msra.mxu0 %v3046
  %3058 = vmatpush.msra.mxu0 %v3045
  %3059 = vmatpush.msra.mxu0 %v3044
  %3060 = vmatpush.msra.mxu0 %v3043
  %3061 = vmatpush.msra.mxu0 %v3042
  %3062 = vmatpush.msra.mxu0 %v3041
  %3063 = vmatpush.msra.mxu0 %v3040
  %3064 = vmatpush.msra.mxu0 %v3039
  %3065 = vmatpush.msra.mxu0 %v3038
  %3066 = vmatpush.msra.mxu0 %v3037
  %3067 = vmatpush.msra.mxu0 %v3036
  %3068 = vmatpush.msra.mxu0 %v3035
  %3069 = vmatpush.msra.mxu0 %v3034
  %3070 = vmatmul.f32.gmra.mxu0 %v3033
  %v3071 = vpop.f32.mrf.mxu0
  %v3072 = vadd.f32 %v3052, %v3071
  %3073 = vdwg.mxu0
  %v3074 = vmax.f32 %v3072, 0.0
  %v3075 = vld [vmem:[%s6] sm:$0xff]
  %v3076 = vld [vmem:[%s6 + $0x8] sm:$0xff]
  %v3077 = vld [vmem:[%s6 + $0x10] sm:$0xff]
  %v3078 = vld [vmem:[%s6 + $0x18] sm:$0xff]
  %v3079 = vld [vmem:[%s7] sm:$0x1]
  %v3081 = vperm.slane %v3079, 0
  %vm3083 = vcmask 261120
  %v3085 = vsel %vm3083, %v3074, 0
  %3087 = vmatpush.msra.mxu0 0.0
  %3088 = vmatpush.msra.mxu0 0.0
  %3089 = vmatpush.msra.mxu0 0.0
  %3090 = vmatpush.msra.mxu0 0.0
  %3091 = vmatpush.msra.mxu0 0.0
  %3092 = vmatpush.msra.mxu0 0.0
  %3093 = vmatpush.msra.mxu0 0.0
  %3094 = vmatpush.msra.mxu0 0.0
  %3095 = vmatpush.msra.mxu0 0.0
  %3096 = vmatpush.msra.mxu0 0.0
  %3097 = vmatpush.msra.mxu0 0.0
  %3098 = vmatpush.msra.mxu0 0.0
  %3099 = vmatpush.msra.mxu0 %v3078
  %3100 = vmatpush.msra.mxu0 %v3077
  %3101 = vmatpush.msra.mxu0 %v3076
  %3102 = vmatpush.msra.mxu0 %v3075
  %3103 = vmatmul.f32.gmra.mxu0 %v3085
  %v3104 = vpop.f32.mrf.mxu0
  %v3105 = vadd.f32 %v3081, %v3104
  %3106 = vdwg.mxu0
  %v3107 = vmax.f32 %v3105, 0.0
  %v3108 = vld [vmem:[%s8] sm:$0xff]
  %v3109 = vld [vmem:[%s8 + $0x8] sm:$0xff]
  %v3110 = vld [vmem:[%s8 + $0x10] sm:$0xff]
  %v3111 = vld [vmem:[%s8 + $0x18] sm:$0xff]
  %v3112 = vld [vmem:[#allocation3] sm:$0x1]
  %v3114 = vperm.slane %v3112, 0
  %v3117 = vsel %vm3083, %v3107, 0
  %3119 = vmatpush.msra.mxu0 0.0
  %3120 = vmatpush.msra.mxu0 0.0
  %3121 = vmatpush.msra.mxu0 0.0
  %3122 = vmatpush.msra.mxu0 0.0
  %3123 = vmatpush.msra.mxu0 0.0
  %3124 = vmatpush.msra.mxu0 0.0
  %3125 = vmatpush.msra.mxu0 0.0
  %3126 = vmatpush.msra.mxu0 0.0
  %3127 = vmatpush.msra.mxu0 0.0
  %3128 = vmatpush.msra.mxu0 0.0
  %3129 = vmatpush.msra.mxu0 0.0
  %3130 = vmatpush.msra.mxu0 0.0
  %3131 = vmatpush.msra.mxu0 %v3111
  %3132 = vmatpush.msra.mxu0 %v3110
  %3133 = vmatpush.msra.mxu0 %v3109
  %3134 = vmatpush.msra.mxu0 %v3108
  %3135 = vmatmul.f32.gmra.mxu0 %v3117
  %v3136 = vpop.f32.mrf.mxu0
  %v3137 = vadd.f32 %v3114, %v3136
  %3138 = vdwg.mxu0
  %v3139 = vxor.u32 %v3137, 2147483648
  %v3140 = vmul.f32 %v3139, 1.442695
  %v3141 = vpow.pop %v3140
  %v3142 = vadd.f32 %v3141, 1.0
  %v3143 = vrcp.pop %v3142
  %v3144 = vmul.f32 %v3142, %v3143
  %v3145 = vsub.f32 1.0, %v3144
  %v3146 = vmul.f32 %v3143, %v3145
  %v3147 = vadd.f32 %v3143, %v3146
  %vm3148 = vweird.f32 %v3142
  %vm3149 = vweird.f32 %v3143
  %vm3150 = vmor %vm3148, %vm3149
  %v3151 = vsel %vm3150, %v3143, %v3147
  %v3152 = vand.u32 2147483647, %v3142
  %vm3153 = vcmp.eq.f32.partialorder %v3152, 8.507059e+37
  %v3154 = vand.u32 %v3142, 2147483648
  %v3155 = vor.u32 1.1754944e-38, %v3154
  %v3156 = vsel %vm3153, %v3155, %v3151
  %v3157 = vmul.f32 1.0, %v3156
  %vm3158 = vcmask 1024
  %3159 = vst.msk [vmem:[%s10] sm:$0x3] %vm3158, %v3157
  // Predicated region
  $region42: #{lstm_forward.1} parent=0 // pred_check
    _
  $region43: #{lstm_forward.1} parent=0 // pred_check_branch
    %3161 = sbr.rel (0) target = $region45
  $region44: #{lstm_forward.1} parent=0 // pred_region
    _
  $region45: #{lstm_forward.1} parent=0 // pred_fallthru
    _
  // Predicated region
  $region46: #{lstm_forward.1} parent=0 // pred_check
    _
  $region47: #{lstm_forward.1} parent=0 // pred_check_branch
    %3163 = sbr.rel (0) target = $region49
  $region48: #{lstm_forward.1} parent=0 // pred_region
    _
  $region49: #{lstm_forward.1} parent=0 // pred_fallthru
    _

</llo_original>
